<compile_context>
chip_gen: v5e
topology: v5e:2x2
jax: 0.10.0
libtpu: 0.0.40
codegen_flags: <defaults>
</compile_context>

<pallas_src>
import functools

import jax
import jax.numpy as jnp
from jax.experimental import pallas as pl
from jax.experimental.pallas import tpu as pltpu


# --------------------------------------------------------------------------
# Kernels
# --------------------------------------------------------------------------

def _mm_bias_kernel_single(x_ref, w_ref, b_ref, o_ref, *, relu):
    """Single-K-block GEMM: y = x @ w + b (optional ReLU)."""
    acc = jnp.dot(x_ref[...], w_ref[...], preferred_element_type=jnp.float32)
    acc = acc + b_ref[...]
    if relu:
        acc = jnp.maximum(acc, 0.0)
    o_ref[...] = acc.astype(o_ref.dtype)


def _mm_bias_kernel_acc(x_ref, w_ref, b_ref, o_ref, acc_ref, *, relu, nk):
    """K-tiled GEMM with f32 VMEM accumulator; bias/ReLU on the last K step."""
    k = pl.program_id(1)

    @pl.when(k == 0)
    def _():
        acc_ref[...] = jnp.zeros_like(acc_ref)

    acc_ref[...] += jnp.dot(x_ref[...], w_ref[...],
                            preferred_element_type=jnp.float32)

    @pl.when(k == nk - 1)
    def _():
        y = acc_ref[...] + b_ref[...]
        if relu:
            y = jnp.maximum(y, 0.0)
        o_ref[...] = y.astype(o_ref.dtype)


def _conv2_pool_relu_kernel(p0_ref, p1_ref, p2_ref, p3_ref, w_ref, b_ref, o_ref):
    """Fused conv2 (as GEMM on 4 pool-tap patch mats) + 2x2 maxpool + bias + ReLU."""
    w = w_ref[...]
    a0 = jnp.dot(p0_ref[...], w, preferred_element_type=jnp.float32)
    a1 = jnp.dot(p1_ref[...], w, preferred_element_type=jnp.float32)
    a2 = jnp.dot(p2_ref[...], w, preferred_element_type=jnp.float32)
    a3 = jnp.dot(p3_ref[...], w, preferred_element_type=jnp.float32)
    m = jnp.maximum(jnp.maximum(a0, a1), jnp.maximum(a2, a3))
    o_ref[...] = jnp.maximum(m + b_ref[...], 0.0).astype(o_ref.dtype)


# --------------------------------------------------------------------------
# Pallas wrappers
# --------------------------------------------------------------------------

_VMEM_LIMIT = 32 * 1024 * 1024  # fits tiles below with headroom on v5e/v6e/v7x


def matmul_bias(x, w, b, *, relu=False, tm=256, tk=None, out_dtype=jnp.bfloat16):
    """y = x @ w + b (optional ReLU).

    x: [M, K], w: [Kw, N] with Kw >= K (extra rows must be zero), b: [N].
    bf16 operands on the MXU, f32 accumulation.  M is tiled (parallel axis);
    if `tk` is given the contraction is K-tiled (arbitrary axis) with a VMEM
    accumulator.
    """
    M, K = x.shape
    Kw, N = w.shape
    assert Kw >= K and b.shape == (N,)

    # --- K tiling (pad contraction with zeros; zeros do not change the result)
    if tk is None or tk >= Kw:
        tk_eff, Kp = Kw, Kw
    else:
        assert tk % 128 == 0
        Kp = ((Kw + tk - 1) // tk) * tk
        tk_eff = tk
    if Kp > Kw:
        w = jnp.pad(w, ((0, Kp - Kw), (0, 0)))
    if Kp > K:
        x = jnp.pad(x, ((0, 0), (0, Kp - K)))
    nk = Kp // tk_eff

    # --- M tiling
    tm_eff = M if M <= tm else tm
    Mp = ((M + tm_eff - 1) // tm_eff) * tm_eff
    if Mp > M:
        x = jnp.pad(x, ((0, Mp - M), (0, 0)))
    nm = Mp // tm_eff

    xb = x.astype(jnp.bfloat16)
    wb = w.astype(jnp.bfloat16)
    b2 = b.astype(jnp.float32).reshape(1, N)

    if nk == 1:
        out = pl.pallas_call(
            functools.partial(_mm_bias_kernel_single, relu=relu),
            out_shape=jax.ShapeDtypeStruct((Mp, N), out_dtype),
            grid=(nm,),
            in_specs=[pl.BlockSpec((tm_eff, Kp), lambda i: (i, 0)),
                      pl.BlockSpec((Kp, N), lambda i: (0, 0)),
                      pl.BlockSpec((1, N), lambda i: (0, 0))],
            out_specs=pl.BlockSpec((tm_eff, N), lambda i: (i, 0)),
            compiler_params=pltpu.CompilerParams(
                dimension_semantics=("parallel",),
                vmem_limit_bytes=_VMEM_LIMIT),
        )(xb, wb, b2)
    else:
        out = pl.pallas_call(
            functools.partial(_mm_bias_kernel_acc, relu=relu, nk=nk),
            out_shape=jax.ShapeDtypeStruct((Mp, N), out_dtype),
            grid=(nm, nk),
            in_specs=[pl.BlockSpec((tm_eff, tk_eff), lambda i, k: (i, k)),
                      pl.BlockSpec((tk_eff, N), lambda i, k: (k, 0)),
                      pl.BlockSpec((1, N), lambda i, k: (0, 0))],
            out_specs=pl.BlockSpec((tm_eff, N), lambda i, k: (i, 0)),
            scratch_shapes=[pltpu.VMEM((tm_eff, N), jnp.float32)],
            compiler_params=pltpu.CompilerParams(
                dimension_semantics=("parallel", "arbitrary"),
                vmem_limit_bytes=_VMEM_LIMIT),
        )(xb, wb, b2)

    return out[:M] if Mp > M else out


def conv2_pool_relu(p_taps, w, b, *, tm=400, out_dtype=jnp.bfloat16):
    """Fused conv2 + 2x2 maxpool + ReLU.

    p_taps: 4 im2col patch matrices [M, K] (one per pool tap), w: [K, N], b: [N].
    Bias is per-channel so max(conv)+b == max(conv+b); ReLU applied after.
    """
    M, K = p_taps[0].shape
    Kw, N = w.shape
    assert Kw == K and b.shape == (N,)

    tm_eff = M if M <= tm else tm
    Mp = ((M + tm_eff - 1) // tm_eff) * tm_eff
    taps = []
    for p in p_taps:
        if Mp > M:
            p = jnp.pad(p, ((0, Mp - M), (0, 0)))
        taps.append(p.astype(jnp.bfloat16))
    nm = Mp // tm_eff
    b2 = b.astype(jnp.float32).reshape(1, N)

    out = pl.pallas_call(
        _conv2_pool_relu_kernel,
        out_shape=jax.ShapeDtypeStruct((Mp, N), out_dtype),
        grid=(nm,),
        in_specs=[pl.BlockSpec((tm_eff, K), lambda i: (i, 0))] * 4
                 + [pl.BlockSpec((K, N), lambda i: (0, 0)),
                    pl.BlockSpec((1, N), lambda i: (0, 0))],
        out_specs=pl.BlockSpec((tm_eff, N), lambda i: (i, 0)),
        compiler_params=pltpu.CompilerParams(
            dimension_semantics=("parallel",),
            vmem_limit_bytes=_VMEM_LIMIT),
    )(*taps, w.astype(jnp.bfloat16), b2)

    return out[:M] if Mp > M else out


# --------------------------------------------------------------------------
# Plain-JAX im2col glue (NHWC, patch order = (kh, kw, cin))
# --------------------------------------------------------------------------

def im2col_conv1(x):
    """x: [B, H, W, C] NHWC -> patches [B*Ho*Wo, 25*C] for a 5x5 valid conv."""
    B, H, W, C = x.shape
    k = 5
    Ho, Wo = H - k + 1, W - k + 1
    cols = []
    for i in range(k):
        for j in range(k):
            cols.append(x[:, i:i + Ho, j:j + Wo, :])
    p = jnp.stack(cols, axis=3)                      # [B, Ho, Wo, 25, C]
    return p.reshape(B * Ho * Wo, k * k * C), (B, Ho, Wo)


def im2col_conv2_taps(y):
    """y: [B, H, W, C] (conv1 output, NHWC).

    Returns 4 patch matrices [B*Ho*Wo, 25*C], one per 2x2 pool tap, so the
    2x2 maxpool can be fused into the conv2 GEMM epilogue (rows are indexed
    by pooled output position).
    """
    B, H, W, C = y.shape
    k = 5
    Ho = (H - k + 1) // 2
    Wo = (W - k + 1) // 2
    taps = []
    for dh in range(2):
        for dw in range(2):
            cols = []
            for i in range(k):
                for j in range(k):
                    hs, ws = dh + i, dw + j
                    cols.append(y[:, hs:hs + 2 * Ho - 1:2, ws:ws + 2 * Wo - 1:2, :])
            p = jnp.stack(cols, axis=3)              # [B, Ho, Wo, 25, C]
            taps.append(p.reshape(B * Ho * Wo, k * k * C))
    return taps, (B, Ho, Wo)


# --------------------------------------------------------------------------
# Parameters
# --------------------------------------------------------------------------

FC1_KPAD = 3072   # 3000 -> multiple of 128 so fc1's contraction can be K-tiled
FC1_NPAD = 512    # 500  -> lane-dense fc1 output / fc2 contraction


def init_torch_layout_params(key):
    """Synthetic params in torch's native layouts (uniform(-1/sqrt(fan_in), .))."""
    ks = jax.random.split(key, 8)

    def u(k, shape, fan_in):
        bound = 1.0 / jnp.sqrt(float(fan_in))
        return jax.random.uniform(k, shape, jnp.float32, -bound, bound)

    return dict(
        conv1_w=u(ks[0], (20, 1, 5, 5), 25),     conv1_b=u(ks[1], (20,), 25),
        conv2_w=u(ks[2], (30, 20, 5, 5), 500),   conv2_b=u(ks[3], (30,), 500),
        fc1_w=u(ks[4], (500, 3000), 3000),       fc1_b=u(ks[5], (500,), 3000),
        fc2_w=u(ks[6], (10, 500), 500),          fc2_b=u(ks[7], (10,), 500),
    )


def prepare_params(tp):
    """torch-layout f32 params -> kernel layout (bf16 weights, padded, NHWC order)."""
    # conv weights: (Cout, Cin, kh, kw) -> [(kh, kw, cin), Cout] to match im2col.
    w1 = tp['conv1_w'].transpose(2, 3, 1, 0).reshape(25, 20)
    w2 = tp['conv2_w'].transpose(2, 3, 1, 0).reshape(500, 30)
    # fc1: torch flattens NCHW -> (c, h, w); our activations flatten NHWC ->
    # (h, w, c), so permute fc1's input axis, transpose to [in, out], and
    # zero-pad K 3000->3072 / N 500->512.
    wf1 = tp['fc1_w'].reshape(500, 30, 10, 10).transpose(2, 3, 1, 0).reshape(3000, 500)
    wf1 = jnp.pad(wf1, ((0, FC1_KPAD - 3000), (0, FC1_NPAD - 500)))
    bf1 = jnp.pad(tp['fc1_b'], (0, FC1_NPAD - 500))
    # fc2: [out, in] -> [in, out], zero-pad K 500->512 (padded fc1 cols are 0).
    wf2 = jnp.pad(tp['fc2_w'].T, ((0, FC1_NPAD - 500), (0, 0)))
    return dict(
        w1=w1.astype(jnp.bfloat16), b1=tp['conv1_b'],
        w2=w2.astype(jnp.bfloat16), b2=tp['conv2_b'],
        wf1=wf1.astype(jnp.bfloat16), bf1=bf1,
        wf2=wf2.astype(jnp.bfloat16), bf2=tp['fc2_b'],
    )


# --------------------------------------------------------------------------
# Model forward
# --------------------------------------------------------------------------

def mnist_cnn_forward(params, x):
    """x: [B, 1, 28, 28] f32 (NCHW, torch convention) -> logits [B, 10] f32."""
    B = x.shape[0]
    # one-time layout change: NHWC keeps channels on the lane dim everywhere.
    x = jnp.transpose(x, (0, 2, 3, 1)).astype(jnp.bfloat16)      # [B, 28, 28, 1]

    # conv1 (5x5 valid) + ReLU as im2col GEMM: [B*576, 25] @ [25, 20]
    p1, (_, Ho1, Wo1) = im2col_conv1(x)
    y1 = matmul_bias(p1, params['w1'], params['b1'], relu=True, tm=256)
    y1 = y1.reshape(B, Ho1, Wo1, 20)                              # [B, 24, 24, 20]

    # conv2 + Dropout2d (identity at inference) + 2x2 maxpool + ReLU, fused.
    # TODO(synk): training-mode Dropout2d (per-channel zeroing) not implemented.
    taps, (_, Ho2, Wo2) = im2col_conv2_taps(y1)
    y2 = conv2_pool_relu(taps, params['w2'], params['b2'], tm=400)  # [B*100, 30]

    # flatten in (h, w, c) order; wf1 rows were permuted to match torch's
    # (c, h, w) flatten of .view(-1, 3000).
    feat = y2.reshape(B, Ho2 * Wo2 * 30)                          # [B, 3000]
    h = matmul_bias(feat, params['wf1'], params['bf1'],
                    relu=True, tm=256, tk=1024)                   # [B, 512] (500 real)
    logits = matmul_bias(h, params['wf2'], params['bf2'],
                         relu=False, out_dtype=jnp.float32)       # [B, 10]
    return logits


if __name__ == "__main__":
    key = jax.random.PRNGKey(0)
    pkey, xkey = jax.random.split(key)
    params = prepare_params(init_torch_layout_params(pkey))
    # MNIST geometry is required by the 3000-feature flatten: 1x28x28 input.
    x = jax.random.normal(xkey, (2, 1, 28, 28), dtype=jnp.float32)

    fwd = jax.jit(mnist_cnn_forward)
    logits = fwd(params, x)
    jax.block_until_ready(logits)
    assert logits.shape == (2, 10) and logits.dtype == jnp.float32
    print("KERNEL_OK")
</pallas_src>

<mosaic_0001>
module attributes {stable_mosaic.version = 11 : i64} {
  func.func @_mm_bias_kernel_single(%arg0: i32, %arg1: memref<256x25xbf16, #tpu.memory_space<vmem>>, %arg2: memref<25x20xbf16, #tpu.memory_space<vmem>>, %arg3: memref<1x20xf32, #tpu.memory_space<vmem>>, %arg4: memref<256x20xbf16, #tpu.memory_space<vmem>>) attributes {dimension_semantics = [#tpu.dimension_semantics<parallel>], iteration_bounds = array<i64: 5>, scalar_prefetch = 0 : i64, scratch_operands = 0 : i64, tpu.core_type = #tpu.core_type<tc>, window_params = [{transform_indices = @transform_0, window_bounds = array<i64: 256, 25>}, {pipeline_mode = #tpu.pipeline_mode<synchronous>, transform_indices = @transform_1, window_bounds = array<i64: 25, 20>}, {pipeline_mode = #tpu.pipeline_mode<synchronous>, transform_indices = @transform_2, window_bounds = array<i64: 1, 20>}, {transform_indices = @transform_3, window_bounds = array<i64: 256, 20>}]} {
    %c0 = arith.constant 0 : index
    %c0_0 = arith.constant 0 : index
    %0 = vector.load %arg1[%c0, %c0_0] : memref<256x25xbf16, #tpu.memory_space<vmem>>, vector<256x25xbf16>
    %c0_1 = arith.constant 0 : index
    %c0_2 = arith.constant 0 : index
    %1 = vector.load %arg2[%c0_1, %c0_2] : memref<25x20xbf16, #tpu.memory_space<vmem>>, vector<25x20xbf16>
    %cst = arith.constant dense<0.000000e+00> : vector<256x20xf32>
    %2 = tpu.matmul %0, %1, %cst {dimension_numbers = #tpu.dot_dimension_numbers<[1], [0], [0], [1], [0, 0, 1, 1], [], []>} : vector<256x25xbf16>, vector<25x20xbf16>, vector<256x20xf32> -> vector<256x20xf32>
    %c0_3 = arith.constant 0 : index
    %c0_4 = arith.constant 0 : index
    %3 = vector.load %arg3[%c0_3, %c0_4] : memref<1x20xf32, #tpu.memory_space<vmem>>, vector<1x20xf32>
    %4 = vector.broadcast %3 : vector<1x20xf32> to vector<256x20xf32>
    %5 = arith.addf %2, %4 : vector<256x20xf32>
    %cst_5 = arith.constant 0.000000e+00 : f32
    %6 = vector.broadcast %cst_5 : f32 to vector<256x20xf32>
    %7 = arith.maximumf %5, %6 : vector<256x20xf32>
    %8 = arith.truncf %7 : vector<256x20xf32> to vector<256x20xbf16>
    %c0_6 = arith.constant 0 : index
    %c0_7 = arith.constant 0 : index
    %9 = vector.load %arg4[%c0_6, %c0_7] : memref<256x20xbf16, #tpu.memory_space<vmem>>, vector<256x20xbf16>
    tpu.vector_store %arg4[%c0_6, %c0_7], %8 {strides = array<i32>} : memref<256x20xbf16, #tpu.memory_space<vmem>>, vector<256x20xbf16>,
    return
  }
  func.func @transform_0(%arg0: i32) -> (i32, i32) {
    %c0_i32 = arith.constant 0 : i32
    %c0_i32_0 = arith.constant 0 : i32
    return %arg0, %c0_i32 : i32, i32
  }
  func.func @transform_1(%arg0: i32) -> (i32, i32) {
    %c0_i32 = arith.constant 0 : i32
    %c0_i32_0 = arith.constant 0 : i32
    %c0_i32_1 = arith.constant 0 : i32
    return %c0_i32, %c0_i32_0 : i32, i32
  }
  func.func @transform_2(%arg0: i32) -> (i32, i32) {
    %c0_i32 = arith.constant 0 : i32
    %c0_i32_0 = arith.constant 0 : i32
    %c0_i32_1 = arith.constant 0 : i32
    return %c0_i32, %c0_i32_0 : i32, i32
  }
  func.func @transform_3(%arg0: i32) -> (i32, i32) {
    %c0_i32 = arith.constant 0 : i32
    %c0_i32_0 = arith.constant 0 : i32
    return %arg0, %c0_i32 : i32, i32
  }
}

module attributes {stable_mosaic.version = 11 : i64} {
  func.func @_conv2_pool_relu_kernel(%arg0: i32, %arg1: memref<200x500xbf16, #tpu.memory_space<vmem>>, %arg2: memref<200x500xbf16, #tpu.memory_space<vmem>>, %arg3: memref<200x500xbf16, #tpu.memory_space<vmem>>, %arg4: memref<200x500xbf16, #tpu.memory_space<vmem>>, %arg5: memref<500x30xbf16, #tpu.memory_space<vmem>>, %arg6: memref<1x30xf32, #tpu.memory_space<vmem>>, %arg7: memref<200x30xbf16, #tpu.memory_space<vmem>>) attributes {dimension_semantics = [#tpu.dimension_semantics<parallel>], iteration_bounds = array<i64: 1>, scalar_prefetch = 0 : i64, scratch_operands = 0 : i64, tpu.core_type = #tpu.core_type<tc>, window_params = [{transform_indices = @transform_0, window_bounds = array<i64: 200, 500>}, {transform_indices = @transform_1, window_bounds = array<i64: 200, 500>}, {transform_indices = @transform_2, window_bounds = array<i64: 200, 500>}, {transform_indices = @transform_3, window_bounds = array<i64: 200, 500>}, {pipeline_mode = #tpu.pipeline_mode<synchronous>, transform_indices = @transform_4, window_bounds = array<i64: 500, 30>}, {pipeline_mode = #tpu.pipeline_mode<synchronous>, transform_indices = @transform_5, window_bounds = array<i64: 1, 30>}, {transform_indices = @transform_6, window_bounds = array<i64: 200, 30>}]} {
    %c0 = arith.constant 0 : index
    %c0_0 = arith.constant 0 : index
    %0 = vector.load %arg5[%c0, %c0_0] : memref<500x30xbf16, #tpu.memory_space<vmem>>, vector<500x30xbf16>
    %c0_1 = arith.constant 0 : index
    %c0_2 = arith.constant 0 : index
    %1 = vector.load %arg1[%c0_1, %c0_2] : memref<200x500xbf16, #tpu.memory_space<vmem>>, vector<200x500xbf16>
    %cst = arith.constant dense<0.000000e+00> : vector<200x30xf32>
    %2 = tpu.matmul %1, %0, %cst {dimension_numbers = #tpu.dot_dimension_numbers<[1], [0], [0], [1], [0, 0, 1, 1], [], []>} : vector<200x500xbf16>, vector<500x30xbf16>, vector<200x30xf32> -> vector<200x30xf32>
    %c0_3 = arith.constant 0 : index
    %c0_4 = arith.constant 0 : index
    %3 = vector.load %arg2[%c0_3, %c0_4] : memref<200x500xbf16, #tpu.memory_space<vmem>>, vector<200x500xbf16>
    %cst_5 = arith.constant dense<0.000000e+00> : vector<200x30xf32>
    %4 = tpu.matmul %3, %0, %cst_5 {dimension_numbers = #tpu.dot_dimension_numbers<[1], [0], [0], [1], [0, 0, 1, 1], [], []>} : vector<200x500xbf16>, vector<500x30xbf16>, vector<200x30xf32> -> vector<200x30xf32>
    %c0_6 = arith.constant 0 : index
    %c0_7 = arith.constant 0 : index
    %5 = vector.load %arg3[%c0_6, %c0_7] : memref<200x500xbf16, #tpu.memory_space<vmem>>, vector<200x500xbf16>
    %cst_8 = arith.constant dense<0.000000e+00> : vector<200x30xf32>
    %6 = tpu.matmul %5, %0, %cst_8 {dimension_numbers = #tpu.dot_dimension_numbers<[1], [0], [0], [1], [0, 0, 1, 1], [], []>} : vector<200x500xbf16>, vector<500x30xbf16>, vector<200x30xf32> -> vector<200x30xf32>
    %c0_9 = arith.constant 0 : index
    %c0_10 = arith.constant 0 : index
    %7 = vector.load %arg4[%c0_9, %c0_10] : memref<200x500xbf16, #tpu.memory_space<vmem>>, vector<200x500xbf16>
    %cst_11 = arith.constant dense<0.000000e+00> : vector<200x30xf32>
    %8 = tpu.matmul %7, %0, %cst_11 {dimension_numbers = #tpu.dot_dimension_numbers<[1], [0], [0], [1], [0, 0, 1, 1], [], []>} : vector<200x500xbf16>, vector<500x30xbf16>, vector<200x30xf32> -> vector<200x30xf32>
    %9 = arith.maximumf %2, %4 : vector<200x30xf32>
    %10 = arith.maximumf %6, %8 : vector<200x30xf32>
    %11 = arith.maximumf %9, %10 : vector<200x30xf32>
    %c0_12 = arith.constant 0 : index
    %c0_13 = arith.constant 0 : index
    %12 = vector.load %arg6[%c0_12, %c0_13] : memref<1x30xf32, #tpu.memory_space<vmem>>, vector<1x30xf32>
    %13 = vector.broadcast %12 : vector<1x30xf32> to vector<200x30xf32>
    %14 = arith.addf %11, %13 : vector<200x30xf32>
    %cst_14 = arith.constant 0.000000e+00 : f32
    %15 = vector.broadcast %cst_14 : f32 to vector<200x30xf32>
    %16 = arith.maximumf %14, %15 : vector<200x30xf32>
    %17 = arith.truncf %16 : vector<200x30xf32> to vector<200x30xbf16>
    %c0_15 = arith.constant 0 : index
    %c0_16 = arith.constant 0 : index
    %18 = vector.load %arg7[%c0_15, %c0_16] : memref<200x30xbf16, #tpu.memory_space<vmem>>, vector<200x30xbf16>
    tpu.vector_store %arg7[%c0_15, %c0_16], %17 {strides = array<i32>} : memref<200x30xbf16, #tpu.memory_space<vmem>>, vector<200x30xbf16>,
    return
  }
  func.func @transform_0(%arg0: i32) -> (i32, i32) {
    %c0_i32 = arith.constant 0 : i32
    %c0_i32_0 = arith.constant 0 : i32
    return %arg0, %c0_i32 : i32, i32
  }
  func.func @transform_1(%arg0: i32) -> (i32, i32) {
    %c0_i32 = arith.constant 0 : i32
    %c0_i32_0 = arith.constant 0 : i32
    return %arg0, %c0_i32 : i32, i32
  }
  func.func @transform_2(%arg0: i32) -> (i32, i32) {
    %c0_i32 = arith.constant 0 : i32
    %c0_i32_0 = arith.constant 0 : i32
    return %arg0, %c0_i32 : i32, i32
  }
  func.func @transform_3(%arg0: i32) -> (i32, i32) {
    %c0_i32 = arith.constant 0 : i32
    %c0_i32_0 = arith.constant 0 : i32
    return %arg0, %c0_i32 : i32, i32
  }
  func.func @transform_4(%arg0: i32) -> (i32, i32) {
    %c0_i32 = arith.constant 0 : i32
    %c0_i32_0 = arith.constant 0 : i32
    %c0_i32_1 = arith.constant 0 : i32
    return %c0_i32, %c0_i32_0 : i32, i32
  }
  func.func @transform_5(%arg0: i32) -> (i32, i32) {
    %c0_i32 = arith.constant 0 : i32
    %c0_i32_0 = arith.constant 0 : i32
    %c0_i32_1 = arith.constant 0 : i32
    return %c0_i32, %c0_i32_0 : i32, i32
  }
  func.func @transform_6(%arg0: i32) -> (i32, i32) {
    %c0_i32 = arith.constant 0 : i32
    %c0_i32_0 = arith.constant 0 : i32
    return %arg0, %c0_i32 : i32, i32
  }
}

module attributes {stable_mosaic.version = 11 : i64} {
  func.func @_mm_bias_kernel_acc(%arg0: i32, %arg1: i32, %arg2: memref<2x1024xbf16, #tpu.memory_space<vmem>>, %arg3: memref<1024x512xbf16, #tpu.memory_space<vmem>>, %arg4: memref<1x512xf32, #tpu.memory_space<vmem>>, %arg5: memref<2x512xbf16, #tpu.memory_space<vmem>>, %arg6: memref<2x512xf32, #tpu.memory_space<vmem>>) attributes {dimension_semantics = [#tpu.dimension_semantics<parallel>, #tpu.dimension_semantics<arbitrary>], iteration_bounds = array<i64: 1, 3>, scalar_prefetch = 0 : i64, scratch_operands = 1 : i64, tpu.core_type = #tpu.core_type<tc>, window_params = [{transform_indices = @transform_0, window_bounds = array<i64: 2, 1024>}, {transform_indices = @transform_1, window_bounds = array<i64: 1024, 512>}, {pipeline_mode = #tpu.pipeline_mode<synchronous>, transform_indices = @transform_2, window_bounds = array<i64: 1, 512>}, {transform_indices = @transform_3, window_bounds = array<i64: 2, 512>}]} {
    %c0_i32 = arith.constant 0 : i32
    %0 = arith.cmpi eq, %arg1, %c0_i32 : i32
    %1 = arith.extui %0 : i1 to i32
    %c0_i32_0 = arith.constant 0 : i32
    %2 = arith.cmpi ne, %1, %c0_i32_0 : i32
    scf.if %2 {
      %cst_9 = arith.constant 0.000000e+00 : f32
      %12 = vector.broadcast %cst_9 : f32 to vector<2x512xf32>
      %c0_10 = arith.constant 0 : index
      %c0_11 = arith.constant 0 : index
      %13 = vector.load %arg6[%c0_10, %c0_11] : memref<2x512xf32, #tpu.memory_space<vmem>>, vector<2x512xf32>
      tpu.vector_store %arg6[%c0_10, %c0_11], %12 {strides = array<i32>} : memref<2x512xf32, #tpu.memory_space<vmem>>, vector<2x512xf32>,
    } else {
    }
    %c0 = arith.constant 0 : index
    %c0_1 = arith.constant 0 : index
    %3 = vector.load %arg6[%c0, %c0_1] : memref<2x512xf32, #tpu.memory_space<vmem>>, vector<2x512xf32>
    %c0_2 = arith.constant 0 : index
    %c0_3 = arith.constant 0 : index
    %4 = vector.load %arg2[%c0_2, %c0_3] : memref<2x1024xbf16, #tpu.memory_space<vmem>>, vector<2x1024xbf16>
    %c0_4 = arith.constant 0 : index
    %c0_5 = arith.constant 0 : index
    %5 = vector.load %arg3[%c0_4, %c0_5] : memref<1024x512xbf16, #tpu.memory_space<vmem>>, vector<1024x512xbf16>
    %cst = arith.constant dense<0.000000e+00> : vector<2x512xf32>
    %6 = tpu.matmul %4, %5, %cst {dimension_numbers = #tpu.dot_dimension_numbers<[1], [0], [0], [1], [0, 0, 1, 1], [], []>} : vector<2x1024xbf16>, vector<1024x512xbf16>, vector<2x512xf32> -> vector<2x512xf32>
    %7 = arith.addf %3, %6 : vector<2x512xf32>
    %c0_6 = arith.constant 0 : index
    %c0_7 = arith.constant 0 : index
    %8 = vector.load %arg6[%c0_6, %c0_7] : memref<2x512xf32, #tpu.memory_space<vmem>>, vector<2x512xf32>
    tpu.vector_store %arg6[%c0_6, %c0_7], %7 {strides = array<i32>} : memref<2x512xf32, #tpu.memory_space<vmem>>, vector<2x512xf32>,
    %c2_i32 = arith.constant 2 : i32
    %9 = arith.cmpi eq, %arg1, %c2_i32 : i32
    %10 = arith.extui %9 : i1 to i32
    %c0_i32_8 = arith.constant 0 : i32
    %11 = arith.cmpi ne, %10, %c0_i32_8 : i32
    scf.if %11 {
      %c0_9 = arith.constant 0 : index
      %c0_10 = arith.constant 0 : index
      %12 = vector.load %arg6[%c0_9, %c0_10] : memref<2x512xf32, #tpu.memory_space<vmem>>, vector<2x512xf32>
      %c0_11 = arith.constant 0 : index
      %c0_12 = arith.constant 0 : index
      %13 = vector.load %arg4[%c0_11, %c0_12] : memref<1x512xf32, #tpu.memory_space<vmem>>, vector<1x512xf32>
      %14 = vector.broadcast %13 : vector<1x512xf32> to vector<2x512xf32>
      %15 = arith.addf %12, %14 : vector<2x512xf32>
      %cst_13 = arith.constant 0.000000e+00 : f32
      %16 = vector.broadcast %cst_13 : f32 to vector<2x512xf32>
      %17 = arith.maximumf %15, %16 : vector<2x512xf32>
      %18 = arith.truncf %17 : vector<2x512xf32> to vector<2x512xbf16>
      %c0_14 = arith.constant 0 : index
      %c0_15 = arith.constant 0 : index
      %19 = vector.load %arg5[%c0_14, %c0_15] : memref<2x512xbf16, #tpu.memory_space<vmem>>, vector<2x512xbf16>
      tpu.vector_store %arg5[%c0_14, %c0_15], %18 {strides = array<i32>} : memref<2x512xbf16, #tpu.memory_space<vmem>>, vector<2x512xbf16>,
    } else {
    }
    return
  }
  func.func @transform_0(%arg0: i32, %arg1: i32) -> (i32, i32) {
    %c0_i32 = arith.constant 0 : i32
    return %arg0, %arg1 : i32, i32
  }
  func.func @transform_1(%arg0: i32, %arg1: i32) -> (i32, i32) {
    %c0_i32 = arith.constant 0 : i32
    %c0_i32_0 = arith.constant 0 : i32
    return %arg1, %c0_i32 : i32, i32
  }
  func.func @transform_2(%arg0: i32, %arg1: i32) -> (i32, i32) {
    %c0_i32 = arith.constant 0 : i32
    %c0_i32_0 = arith.constant 0 : i32
    %c0_i32_1 = arith.constant 0 : i32
    return %c0_i32, %c0_i32_0 : i32, i32
  }
  func.func @transform_3(%arg0: i32, %arg1: i32) -> (i32, i32) {
    %c0_i32 = arith.constant 0 : i32
    %c0_i32_0 = arith.constant 0 : i32
    return %arg0, %c0_i32 : i32, i32
  }
}

module attributes {stable_mosaic.version = 11 : i64} {
  func.func @_mm_bias_kernel_single(%arg0: i32, %arg1: memref<2x512xbf16, #tpu.memory_space<vmem>>, %arg2: memref<512x10xbf16, #tpu.memory_space<vmem>>, %arg3: memref<1x10xf32, #tpu.memory_space<vmem>>, %arg4: memref<2x10xf32, #tpu.memory_space<vmem>>) attributes {dimension_semantics = [#tpu.dimension_semantics<parallel>], iteration_bounds = array<i64: 1>, scalar_prefetch = 0 : i64, scratch_operands = 0 : i64, tpu.core_type = #tpu.core_type<tc>, window_params = [{transform_indices = @transform_0, window_bounds = array<i64: 2, 512>}, {pipeline_mode = #tpu.pipeline_mode<synchronous>, transform_indices = @transform_1, window_bounds = array<i64: 512, 10>}, {pipeline_mode = #tpu.pipeline_mode<synchronous>, transform_indices = @transform_2, window_bounds = array<i64: 1, 10>}, {transform_indices = @transform_3, window_bounds = array<i64: 2, 10>}]} {
    %c0 = arith.constant 0 : index
    %c0_0 = arith.constant 0 : index
    %0 = vector.load %arg1[%c0, %c0_0] : memref<2x512xbf16, #tpu.memory_space<vmem>>, vector<2x512xbf16>
    %c0_1 = arith.constant 0 : index
    %c0_2 = arith.constant 0 : index
    %1 = vector.load %arg2[%c0_1, %c0_2] : memref<512x10xbf16, #tpu.memory_space<vmem>>, vector<512x10xbf16>
    %cst = arith.constant dense<0.000000e+00> : vector<2x10xf32>
    %2 = tpu.matmul %0, %1, %cst {dimension_numbers = #tpu.dot_dimension_numbers<[1], [0], [0], [1], [0, 0, 1, 1], [], []>} : vector<2x512xbf16>, vector<512x10xbf16>, vector<2x10xf32> -> vector<2x10xf32>
    %c0_3 = arith.constant 0 : index
    %c0_4 = arith.constant 0 : index
    %3 = vector.load %arg3[%c0_3, %c0_4] : memref<1x10xf32, #tpu.memory_space<vmem>>, vector<1x10xf32>
    %4 = vector.broadcast %3 : vector<1x10xf32> to vector<2x10xf32>
    %5 = arith.addf %2, %4 : vector<2x10xf32>
    %c0_5 = arith.constant 0 : index
    %c0_6 = arith.constant 0 : index
    %6 = vector.load %arg4[%c0_5, %c0_6] : memref<2x10xf32, #tpu.memory_space<vmem>>, vector<2x10xf32>
    tpu.vector_store %arg4[%c0_5, %c0_6], %5 {strides = array<i32>} : memref<2x10xf32, #tpu.memory_space<vmem>>, vector<2x10xf32>,
    return
  }
  func.func @transform_0(%arg0: i32) -> (i32, i32) {
    %c0_i32 = arith.constant 0 : i32
    %c0_i32_0 = arith.constant 0 : i32
    return %arg0, %c0_i32 : i32, i32
  }
  func.func @transform_1(%arg0: i32) -> (i32, i32) {
    %c0_i32 = arith.constant 0 : i32
    %c0_i32_0 = arith.constant 0 : i32
    %c0_i32_1 = arith.constant 0 : i32
    return %c0_i32, %c0_i32_0 : i32, i32
  }
  func.func @transform_2(%arg0: i32) -> (i32, i32) {
    %c0_i32 = arith.constant 0 : i32
    %c0_i32_0 = arith.constant 0 : i32
    %c0_i32_1 = arith.constant 0 : i32
    return %c0_i32, %c0_i32_0 : i32, i32
  }
  func.func @transform_3(%arg0: i32) -> (i32, i32) {
    %c0_i32 = arith.constant 0 : i32
    %c0_i32_0 = arith.constant 0 : i32
    return %arg0, %c0_i32 : i32, i32
  }
}

</mosaic_0001>

<llo_original>
// kernel: mnist_cnn_forward.4
$region0: #{mnist_cnn_forward.4}
  #allocation0 [shape = 'u32[]', space=smem, size = 0x4, offset = 0x4, fixed_abs, tag = 'smem constant byte address 0x4 - core index']
  #allocation1 [shape = 'u32[72,128]{1,0:T(1,128)}', space=vmem, size = 0x9000, scoped, tag = 'internal scratch']
  %s0 = inlined_call_operand.vmem [shape: bf16[1280,25], index: 0, kind: input, shape index: {}]
  %s1 = inlined_call_operand.vmem [shape: bf16[25,20], index: 1, kind: input, shape index: {}]
  %s2 = inlined_call_operand.vmem [shape: f32[1,20], index: 2, kind: input, shape index: {}]
  %s3 = inlined_call_operand.vmem [shape: bf16[1280,20], index: 3, kind: output, shape index: {}]
  %s4 = sld [smem:[#allocation0]]
  $region45: #{mnist_cnn_forward.4} parent=0
    _
  %s6 = ssub.s32 1, %s4
  %s7 = scalar_select 0, %s6, %s4
  loop: start=0, step=1, limit=7
  $region2: #{mnist_cnn_forward.4} parent=0 // loop_pre_header
    _
  $region3: #{mnist_cnn_forward.4} parent=0 // loop_header
    %s9 = sphi 0, %s13
    %p10 = scmp.ge.s32.totalorder %s9, 7
    %s19 = sphi 0, %s21
    %s22 = sphi 0, %s19
    %s23 = sphi 0, %s22
    %s39 = sphi 0, %s23
    %s43 = sphi 0, %s43
    %s45 = sphi 0, %s43
    %s46 = sphi 0, %s45
    %s60 = sphi 0, %s46
    %s64 = sphi 0, %s64
    %s66 = sphi 0, %s64
    %s67 = sphi 0, %s66
    %s81 = sphi 0, %s67
    %s87 = sphi 0, %s89
    %s90 = sphi 0, %s87
    %s91 = sphi 0, %s90
    %s107 = sphi 0, %s91
  $region4: #{mnist_cnn_forward.4} parent=0 // loop_header_branch
    %12 = sbr.rel (%p10) target = $region8
  $region5: #{mnist_cnn_forward.4} parent=0 // loop_body
    %s14 = ssub.s32 %s9, 1
    %s15 = ssub.s32 %s9, 2
    %s16 = sadd.s32 %s9, 1
    %s17 = ssub.s32 %s9, %s16
    %p18 = scmp.eq.s32.totalorder %s17, 0
    %s20 = sadd.s32 %s19, 1
    %s21 = scalar_select %p18, %s19, %s20
    %p24 = pneg %p18
    %p25 = scmp.eq.s32.totalorder %s9, 4
    %p26 = por %p24, %p25
    %p27 = scmp.ne.s32.totalorder %s19, %s22
    %p28 = scmp.eq.s32.totalorder %s9, 0
    %p29 = por %p27, %p28
    %p30 = scmp.ne.s32.totalorder %s19, %s22
    %p31 = scmp.eq.s32.totalorder %s14, 4
    %p32 = por %p30, %p31
    %p33 = scmp.ne.s32.totalorder %s22, %s23
    %p34 = scmp.eq.s32.totalorder %s14, 0
    %p35 = por %p33, %p34
    %p36 = scmp.ne.s32.totalorder %s22, %s23
    %p37 = scmp.eq.s32.totalorder %s15, 4
    %p38 = por %p36, %p37
    %p40 = scmp.ne.s32.totalorder %s23, %s39
    %p41 = scmp.eq.s32.totalorder %s15, 0
    %p42 = por %p40, %p41
    %s44 = sadd.s32 %s43, 1
    %p47 = scmp.eq.s32.totalorder %s9, 4
    %p48 = scmp.ne.s32.totalorder %s43, %s45
    %p49 = scmp.eq.s32.totalorder %s9, 0
    %p50 = por %p48, %p49
    %p51 = scmp.ne.s32.totalorder %s43, %s45
    %p52 = scmp.eq.s32.totalorder %s14, 4
    %p53 = por %p51, %p52
    %p54 = scmp.ne.s32.totalorder %s45, %s46
    %p55 = scmp.eq.s32.totalorder %s14, 0
    %p56 = por %p54, %p55
    %p57 = scmp.ne.s32.totalorder %s45, %s46
    %p58 = scmp.eq.s32.totalorder %s15, 4
    %p59 = por %p57, %p58
    %p61 = scmp.ne.s32.totalorder %s46, %s60
    %p62 = scmp.eq.s32.totalorder %s15, 0
    %p63 = por %p61, %p62
    %s65 = sadd.s32 %s64, 1
    %p68 = scmp.eq.s32.totalorder %s9, 4
    %p69 = scmp.ne.s32.totalorder %s64, %s66
    %p70 = scmp.eq.s32.totalorder %s9, 0
    %p71 = por %p69, %p70
    %p72 = scmp.ne.s32.totalorder %s64, %s66
    %p73 = scmp.eq.s32.totalorder %s14, 4
    %p74 = por %p72, %p73
    %p75 = scmp.ne.s32.totalorder %s66, %s67
    %p76 = scmp.eq.s32.totalorder %s14, 0
    %p77 = por %p75, %p76
    %p78 = scmp.ne.s32.totalorder %s66, %s67
    %p79 = scmp.eq.s32.totalorder %s15, 4
    %p80 = por %p78, %p79
    %p82 = scmp.ne.s32.totalorder %s67, %s81
    %p83 = scmp.eq.s32.totalorder %s15, 0
    %p84 = por %p82, %p83
    %s85 = ssub.s32 %s9, %s16
    %p86 = scmp.eq.s32.totalorder %s85, 0
    %s88 = sadd.s32 %s87, 1
    %s89 = scalar_select %p86, %s87, %s88
    %p92 = pneg %p86
    %p93 = scmp.eq.s32.totalorder %s9, 4
    %p94 = por %p92, %p93
    %p95 = scmp.ne.s32.totalorder %s87, %s90
    %p96 = scmp.eq.s32.totalorder %s9, 0
    %p97 = por %p95, %p96
    %p98 = scmp.ne.s32.totalorder %s87, %s90
    %p99 = scmp.eq.s32.totalorder %s14, 4
    %p100 = por %p98, %p99
    %p101 = scmp.ne.s32.totalorder %s90, %s91
    %p102 = scmp.eq.s32.totalorder %s14, 0
    %p103 = por %p101, %p102
    %p104 = scmp.ne.s32.totalorder %s90, %s91
    %p105 = scmp.eq.s32.totalorder %s15, 4
    %p106 = por %p104, %p105
    %p108 = scmp.ne.s32.totalorder %s91, %s107
    %p109 = scmp.eq.s32.totalorder %s15, 0
    %p110 = por %p108, %p109
    %p111 = scmp.le.s32.totalorder 1, %s9
    %p112 = scmp.lt.s32.totalorder %s9, 6
    %p113 = pnand %p111, %p112
    %p114 = pneg %p113
    // Predicated region
    $region9: #{mnist_cnn_forward.4} parent=5 // pred_check
      _
    $region10: #{mnist_cnn_forward.4} parent=5 // pred_check_branch
      %116 = sbr.rel (%p113) target = $region12
    $region11: #{mnist_cnn_forward.4} parent=5 // pred_region
      %s117 = ssub.s32 %s9, 1
      // Predicated region
      $region13: #{mnist_cnn_forward.4} parent=11 // pred_check
        %p118 = pneg %p56
      $region14: #{mnist_cnn_forward.4} parent=11 // pred_check_branch
        %120 = sbr.rel (%p118) target = $region16
      $region15: #{mnist_cnn_forward.4} parent=11 // pred_region
        _
      $region16: #{mnist_cnn_forward.4} parent=11 // pred_fallthru
        _
      // Predicated region
      $region17: #{mnist_cnn_forward.4} parent=11 // pred_check
        %p121 = pneg %p77
      $region18: #{mnist_cnn_forward.4} parent=11 // pred_check_branch
        %123 = sbr.rel (%p121) target = $region20
      $region19: #{mnist_cnn_forward.4} parent=11 // pred_region
        _
      $region20: #{mnist_cnn_forward.4} parent=11 // pred_fallthru
        _
    $region12: #{mnist_cnn_forward.4} parent=5 // pred_fallthru
      _
    %p124 = scmp.lt.s32.totalorder %s9, 5
    // Predicated region
    $region21: #{mnist_cnn_forward.4} parent=5 // pred_check
      %p125 = pneg %p124
    $region22: #{mnist_cnn_forward.4} parent=5 // pred_check_branch
      %127 = sbr.rel (%p125) target = $region24
    $region23: #{mnist_cnn_forward.4} parent=5 // pred_region
      // Predicated region
      $region25: #{mnist_cnn_forward.4} parent=23 // pred_check
        %p128 = pneg %p29
      $region26: #{mnist_cnn_forward.4} parent=23 // pred_check_branch
        %130 = sbr.rel (%p128) target = $region28
      $region27: #{mnist_cnn_forward.4} parent=23 // pred_region
        %s131 = smul.u32 32, %s9
        %p132 = scmp.lt.s32.totalorder %s131, 159
        %s133 = scalar_select %p132, %s131, 159
        %s134 = smul.addr %s133, 4
        %s135 = scalar_lea.vmem %s0, %s134
        %s136 = smul.u32 32, %s9
      $region28: #{mnist_cnn_forward.4} parent=23 // pred_fallthru
        _
    $region24: #{mnist_cnn_forward.4} parent=5 // pred_fallthru
      _
    %p137 = scmp.le.s32.totalorder 1, %s9
    %p138 = scmp.lt.s32.totalorder %s9, 6
    %p139 = pnand %p137, %p138
    %p140 = pneg %p139
    // Predicated region
    $region29: #{mnist_cnn_forward.4} parent=5 // pred_check
      _
    $region30: #{mnist_cnn_forward.4} parent=5 // pred_check_branch
      %142 = sbr.rel (%p139) target = $region32
    $region31: #{mnist_cnn_forward.4} parent=5 // pred_region
      %s143 = ssub.s32 %s9, 1
      %s144 = smul.u32 32, %s14
      %p145 = scmp.lt.s32.totalorder %s144, 159
      %s146 = scalar_select %p145, %s144, 159
      %s147 = smul.addr %s146, 4
      %s148 = scalar_lea.vmem %s0, %s147
      %p149 = pneg %p35
      %p150 = pneg %p32
      %p151 = pneg %p56
      %p152 = pneg %p53
      %p153 = pneg %p77
      %p154 = pneg %p74
      %p155 = pneg %p103
      %p156 = pneg %p100
      %s157 = smul.u32 32, %s14
      %p158 = scmp.lt.s32.totalorder %s157, 159
      %s159 = scalar_select %p158, %s157, 159
      %s160 = smul.addr %s159, 4
      %s161 = scalar_lea.vmem %s3, %s160
      %s162 = smul.u32 32, %s14
      %p163 = scmp.lt.s32.totalorder %s162, 159
      %s164 = scalar_select %p163, %s162, 159
      %s165 = smul.addr %s164, 4
      %s166 = scalar_lea.vmem %s0, %s165
      %s167 = smul.u32 32, %s14
      %s168 = smul.u32 32, %s14
      %p169 = scmp.lt.s32.totalorder %s168, 159
      %s170 = scalar_select %p169, %s168, 159
      %s171 = smul.addr %s170, 4
      %s172 = scalar_lea.vmem %s3, %s171
      %s173 = smul.u32 32, %s14
      %v175 = vld [vmem:[%s166] sm:$0xf]
      %v176 = vld [vmem:[%s166 + $0x4] sm:$0xf]
      %v177 = vld [vmem:[%s166 + $0x8] sm:$0xf]
      %v178 = vld [vmem:[%s166 + $0xc] sm:$0xf]
      %v179 = vld [vmem:[%s166 + $0x10] sm:$0xf]
      %v180 = vld [vmem:[%s166 + $0x14] sm:$0xf]
      %v181 = vld [vmem:[%s166 + $0x18] sm:$0xf]
      %v182 = vld [vmem:[%s166 + $0x1c] sm:$0xf]
      %v183 = vld [vmem:[%s166 + $0x20] sm:$0xf]
      %v184 = vld [vmem:[%s166 + $0x24] sm:$0xf]
      %v185 = vld [vmem:[%s166 + $0x28] sm:$0xf]
      %v186 = vld [vmem:[%s166 + $0x2c] sm:$0xf]
      %v187 = vld [vmem:[%s166 + $0x30] sm:$0xf]
      %v188 = vld [vmem:[%s166 + $0x34] sm:$0xf]
      %v189 = vld [vmem:[%s166 + $0x38] sm:$0xf]
      %v190 = vld [vmem:[%s166 + $0x3c] sm:$0xf]
      %v191 = vld [vmem:[%s166 + $0x40] sm:$0xf]
      %v192 = vld [vmem:[%s166 + $0x44] sm:$0xf]
      %v193 = vld [vmem:[%s166 + $0x48] sm:$0xf]
      %v194 = vld [vmem:[%s166 + $0x4c] sm:$0xf]
      %v195 = vld [vmem:[%s166 + $0x50] sm:$0xf]
      %v196 = vld [vmem:[%s166 + $0x54] sm:$0xf]
      %v197 = vld [vmem:[%s166 + $0x58] sm:$0xf]
      %v198 = vld [vmem:[%s166 + $0x5c] sm:$0xf]
      %v199 = vld [vmem:[%s166 + $0x60] sm:$0xf]
      %v200 = vld [vmem:[%s166 + $0x64] sm:$0xf]
      %v201 = vld [vmem:[%s166 + $0x68] sm:$0xf]
      %v202 = vld [vmem:[%s166 + $0x6c] sm:$0xf]
      %v203 = vld [vmem:[%s166 + $0x70] sm:$0xf]
      %v204 = vld [vmem:[%s166 + $0x74] sm:$0xf]
      %v205 = vld [vmem:[%s166 + $0x78] sm:$0xf]
      %v206 = vld [vmem:[%s166 + $0x7c] sm:$0xf]
      %v207 = vld [vmem:[%s1] sm:$0xf]
      %v208 = vld [vmem:[%s1 + $0x4] sm:$0xf]
      %v209 = vld [vmem:[%s1 + $0x8] sm:$0xf]
      %v210 = vld [vmem:[%s1 + $0xc] sm:$0x1]
      %v211 = vld [vmem:[%s2] sm:$0x1]
      %v213 = vperm.slane %v211, 0
      %v247 = vunpack.c.l.b16 %v175
      %v248 = vunpack.c.l.b16 %v176
      %v249 = vunpack.c.l.b16 %v177
      %v250 = vunpack.c.l.b16 %v178
      %v251 = vunpack.c.l.b16 %v179
      %v252 = vunpack.c.l.b16 %v180
      %v253 = vunpack.c.l.b16 %v181
      %v254 = vunpack.c.l.b16 %v182
      %v255 = vunpack.c.l.b16 %v183
      %v256 = vunpack.c.l.b16 %v184
      %v257 = vunpack.c.l.b16 %v185
      %v258 = vunpack.c.l.b16 %v186
      %v259 = vunpack.c.l.b16 %v187
      %v260 = vunpack.c.l.b16 %v188
      %v261 = vunpack.c.l.b16 %v189
      %v262 = vunpack.c.l.b16 %v190
      %v263 = vunpack.c.l.b16 %v191
      %v264 = vunpack.c.l.b16 %v192
      %v265 = vunpack.c.l.b16 %v193
      %v266 = vunpack.c.l.b16 %v194
      %v267 = vunpack.c.l.b16 %v195
      %v268 = vunpack.c.l.b16 %v196
      %v269 = vunpack.c.l.b16 %v197
      %v270 = vunpack.c.l.b16 %v198
      %v271 = vunpack.c.l.b16 %v199
      %v272 = vunpack.c.l.b16 %v200
      %v273 = vunpack.c.l.b16 %v201
      %v274 = vunpack.c.l.b16 %v202
      %v275 = vunpack.c.l.b16 %v203
      %v276 = vunpack.c.l.b16 %v204
      %v277 = vunpack.c.l.b16 %v205
      %v278 = vunpack.c.l.b16 %v206
      %v279 = vpack.c.b16 %v248, %v247
      %v280 = vpack.c.b16 %v250, %v249
      %v281 = vpack.c.b16 %v252, %v251
      %v282 = vpack.c.b16 %v254, %v253
      %v283 = vpack.c.b16 %v256, %v255
      %v284 = vpack.c.b16 %v258, %v257
      %v285 = vpack.c.b16 %v260, %v259
      %v286 = vpack.c.b16 %v262, %v261
      %v287 = vpack.c.b16 %v264, %v263
      %v288 = vpack.c.b16 %v266, %v265
      %v289 = vpack.c.b16 %v268, %v267
      %v290 = vpack.c.b16 %v270, %v269
      %v291 = vpack.c.b16 %v272, %v271
      %v292 = vpack.c.b16 %v274, %v273
      %v293 = vpack.c.b16 %v276, %v275
      %v294 = vpack.c.b16 %v278, %v277
      %v299 = vunpack.c.l.b16 %v207
      %v300 = vunpack.c.l.b16 %v208
      %v301 = vunpack.c.l.b16 %v209
      %v302 = vunpack.c.l.b16 %v210
      %v303 = vpack.c.b16 %v300, %v299
      %v304 = vpack.c.b16 %v302, %v301
      %vm306 = vcmask 203776
      %v308 = vsel %vm306, %v279, 0
      %v311 = vsel %vm306, %v280, 0
      %v314 = vsel %vm306, %v281, 0
      %v317 = vsel %vm306, %v282, 0
      %v320 = vsel %vm306, %v283, 0
      %v323 = vsel %vm306, %v284, 0
      %v326 = vsel %vm306, %v285, 0
      %v329 = vsel %vm306, %v286, 0
      %v332 = vsel %vm306, %v287, 0
      %v335 = vsel %vm306, %v288, 0
      %v338 = vsel %vm306, %v289, 0
      %v341 = vsel %vm306, %v290, 0
      %v344 = vsel %vm306, %v291, 0
      %v347 = vsel %vm306, %v292, 0
      %v350 = vsel %vm306, %v293, 0
      %v353 = vsel %vm306, %v294, 0
      %vm355 = vcmask 1043456
      %vm356 = vcmask 1044480
      %v357 = vsel %vm355, 4294967295, 65535
      %v358 = vsel %vm356, %v357, 0
      %v360 = vand.u32 %v304, %v358
      %362 = vmatpush.bf16.msra.mxu0 0
      %363 = vmatpush.bf16.msra.mxu0 0
      %364 = vmatpush.bf16.msra.mxu0 0
      %365 = vmatpush.bf16.msra.mxu0 0
      %366 = vmatpush.bf16.msra.mxu0 0
      %367 = vmatpush.bf16.msra.mxu0 0
      %368 = vmatpush.bf16.msra.mxu0 %v360
      %369 = vmatpush.bf16.msra.mxu0 %v303
      %370 = vmatmul.bf16.gmra.mxu0 %v308
      %v371 = vpop.f32.mrf.mxu0
      %v372 = vadd.f32 %v213, %v371
      %v373 = vpop.f32.mrf.mxu0
      %v374 = vadd.f32 %v213, %v373
      %375 = vmatmul.bf16.gmra.mxu0 %v311
      %v376 = vpop.f32.mrf.mxu0
      %v377 = vadd.f32 %v213, %v376
      %v378 = vpop.f32.mrf.mxu0
      %v379 = vadd.f32 %v213, %v378
      %380 = vmatmul.bf16.gmra.mxu0 %v314
      %v381 = vpop.f32.mrf.mxu0
      %v382 = vadd.f32 %v213, %v381
      %v383 = vpop.f32.mrf.mxu0
      %v384 = vadd.f32 %v213, %v383
      %385 = vmatmul.bf16.gmra.mxu0 %v317
      %v386 = vpop.f32.mrf.mxu0
      %v387 = vadd.f32 %v213, %v386
      %v388 = vpop.f32.mrf.mxu0
      %v389 = vadd.f32 %v213, %v388
      %390 = vmatmul.bf16.gmra.mxu0 %v320
      %v391 = vpop.f32.mrf.mxu0
      %v392 = vadd.f32 %v213, %v391
      %v393 = vpop.f32.mrf.mxu0
      %v394 = vadd.f32 %v213, %v393
      %395 = vmatmul.bf16.gmra.mxu0 %v323
      %v396 = vpop.f32.mrf.mxu0
      %v397 = vadd.f32 %v213, %v396
      %v398 = vpop.f32.mrf.mxu0
      %v399 = vadd.f32 %v213, %v398
      %400 = vmatmul.bf16.gmra.mxu0 %v326
      %v401 = vpop.f32.mrf.mxu0
      %v402 = vadd.f32 %v213, %v401
      %v403 = vpop.f32.mrf.mxu0
      %v404 = vadd.f32 %v213, %v403
      %405 = vmatmul.bf16.gmra.mxu0 %v329
      %v406 = vpop.f32.mrf.mxu0
      %v407 = vadd.f32 %v213, %v406
      %v408 = vpop.f32.mrf.mxu0
      %v409 = vadd.f32 %v213, %v408
      %410 = vmatmul.bf16.gmra.mxu0 %v332
      %v411 = vpop.f32.mrf.mxu0
      %v412 = vadd.f32 %v213, %v411
      %v413 = vpop.f32.mrf.mxu0
      %v414 = vadd.f32 %v213, %v413
      %415 = vmatmul.bf16.gmra.mxu0 %v335
      %v416 = vpop.f32.mrf.mxu0
      %v417 = vadd.f32 %v213, %v416
      %v418 = vpop.f32.mrf.mxu0
      %v419 = vadd.f32 %v213, %v418
      %420 = vmatmul.bf16.gmra.mxu0 %v338
      %v421 = vpop.f32.mrf.mxu0
      %v422 = vadd.f32 %v213, %v421
      %v423 = vpop.f32.mrf.mxu0
      %v424 = vadd.f32 %v213, %v423
      %425 = vmatmul.bf16.gmra.mxu0 %v341
      %v426 = vpop.f32.mrf.mxu0
      %v427 = vadd.f32 %v213, %v426
      %v428 = vpop.f32.mrf.mxu0
      %v429 = vadd.f32 %v213, %v428
      %430 = vmatmul.bf16.gmra.mxu0 %v344
      %v431 = vpop.f32.mrf.mxu0
      %v432 = vadd.f32 %v213, %v431
      %v433 = vpop.f32.mrf.mxu0
      %v434 = vadd.f32 %v213, %v433
      %435 = vmatmul.bf16.gmra.mxu0 %v347
      %v436 = vpop.f32.mrf.mxu0
      %v437 = vadd.f32 %v213, %v436
      %v438 = vpop.f32.mrf.mxu0
      %v439 = vadd.f32 %v213, %v438
      %440 = vmatmul.bf16.gmra.mxu0 %v350
      %v441 = vpop.f32.mrf.mxu0
      %v442 = vadd.f32 %v213, %v441
      %v443 = vpop.f32.mrf.mxu0
      %v444 = vadd.f32 %v213, %v443
      %445 = vmatmul.bf16.gmra.mxu0 %v353
      %v446 = vpop.f32.mrf.mxu0
      %v447 = vadd.f32 %v213, %v446
      %v448 = vpop.f32.mrf.mxu0
      %v449 = vadd.f32 %v213, %v448
      %450 = vdwg.mxu0
      %v451 = vmax.f32 %v372, 0.0
      %v452 = vmax.f32 %v374, 0.0
      %v453 = vmax.f32 %v377, 0.0
      %v454 = vmax.f32 %v379, 0.0
      %v455 = vmax.f32 %v382, 0.0
      %v456 = vmax.f32 %v384, 0.0
      %v457 = vmax.f32 %v387, 0.0
      %v458 = vmax.f32 %v389, 0.0
      %v459 = vmax.f32 %v392, 0.0
      %v460 = vmax.f32 %v394, 0.0
      %v461 = vmax.f32 %v397, 0.0
      %v462 = vmax.f32 %v399, 0.0
      %v463 = vmax.f32 %v402, 0.0
      %v464 = vmax.f32 %v404, 0.0
      %v465 = vmax.f32 %v407, 0.0
      %v466 = vmax.f32 %v409, 0.0
      %v467 = vmax.f32 %v412, 0.0
      %v468 = vmax.f32 %v414, 0.0
      %v469 = vmax.f32 %v417, 0.0
      %v470 = vmax.f32 %v419, 0.0
      %v471 = vmax.f32 %v422, 0.0
      %v472 = vmax.f32 %v424, 0.0
      %v473 = vmax.f32 %v427, 0.0
      %v474 = vmax.f32 %v429, 0.0
      %v475 = vmax.f32 %v432, 0.0
      %v476 = vmax.f32 %v434, 0.0
      %v477 = vmax.f32 %v437, 0.0
      %v478 = vmax.f32 %v439, 0.0
      %v479 = vmax.f32 %v442, 0.0
      %v480 = vmax.f32 %v444, 0.0
      %v481 = vmax.f32 %v447, 0.0
      %v482 = vmax.f32 %v449, 0.0
      %v483 = vpack.c.bf16 %v451, %v451
      %v484 = vpack.c.bf16 %v452, %v452
      %v485 = vpack.c.bf16 %v453, %v453
      %v486 = vpack.c.bf16 %v454, %v454
      %v487 = vpack.c.bf16 %v455, %v455
      %v488 = vpack.c.bf16 %v456, %v456
      %v489 = vpack.c.bf16 %v457, %v457
      %v490 = vpack.c.bf16 %v458, %v458
      %v491 = vpack.c.bf16 %v459, %v459
      %v492 = vpack.c.bf16 %v460, %v460
      %v493 = vpack.c.bf16 %v461, %v461
      %v494 = vpack.c.bf16 %v462, %v462
      %v495 = vpack.c.bf16 %v463, %v463
      %v496 = vpack.c.bf16 %v464, %v464
      %v497 = vpack.c.bf16 %v465, %v465
      %v498 = vpack.c.bf16 %v466, %v466
      %v499 = vpack.c.bf16 %v467, %v467
      %v500 = vpack.c.bf16 %v468, %v468
      %v501 = vpack.c.bf16 %v469, %v469
      %v502 = vpack.c.bf16 %v470, %v470
      %v503 = vpack.c.bf16 %v471, %v471
      %v504 = vpack.c.bf16 %v472, %v472
      %v505 = vpack.c.bf16 %v473, %v473
      %v506 = vpack.c.bf16 %v474, %v474
      %v507 = vpack.c.bf16 %v475, %v475
      %v508 = vpack.c.bf16 %v476, %v476
      %v509 = vpack.c.bf16 %v477, %v477
      %v510 = vpack.c.bf16 %v478, %v478
      %v511 = vpack.c.bf16 %v479, %v479
      %v512 = vpack.c.bf16 %v480, %v480
      %v513 = vpack.c.bf16 %v481, %v481
      %v514 = vpack.c.bf16 %v482, %v482
      %vm515 = vcmask 158720
      %516 = vst.msk [vmem:[%s172] sm:$0xf] %vm515, %v483
      %517 = vst.msk [vmem:[%s172 + $0x4] sm:$0xf] %vm515, %v484
      %518 = vst.msk [vmem:[%s172 + $0x8] sm:$0xf] %vm515, %v485
      %519 = vst.msk [vmem:[%s172 + $0xc] sm:$0xf] %vm515, %v486
      %520 = vst.msk [vmem:[%s172 + $0x10] sm:$0xf] %vm515, %v487
      %521 = vst.msk [vmem:[%s172 + $0x14] sm:$0xf] %vm515, %v488
      %522 = vst.msk [vmem:[%s172 + $0x18] sm:$0xf] %vm515, %v489
      %523 = vst.msk [vmem:[%s172 + $0x1c] sm:$0xf] %vm515, %v490
      %524 = vst.msk [vmem:[%s172 + $0x20] sm:$0xf] %vm515, %v491
      %525 = vst.msk [vmem:[%s172 + $0x24] sm:$0xf] %vm515, %v492
      %526 = vst.msk [vmem:[%s172 + $0x28] sm:$0xf] %vm515, %v493
      %527 = vst.msk [vmem:[%s172 + $0x2c] sm:$0xf] %vm515, %v494
      %528 = vst.msk [vmem:[%s172 + $0x30] sm:$0xf] %vm515, %v495
      %529 = vst.msk [vmem:[%s172 + $0x34] sm:$0xf] %vm515, %v496
      %530 = vst.msk [vmem:[%s172 + $0x38] sm:$0xf] %vm515, %v497
      %531 = vst.msk [vmem:[%s172 + $0x3c] sm:$0xf] %vm515, %v498
      %532 = vst.msk [vmem:[%s172 + $0x40] sm:$0xf] %vm515, %v499
      %533 = vst.msk [vmem:[%s172 + $0x44] sm:$0xf] %vm515, %v500
      %534 = vst.msk [vmem:[%s172 + $0x48] sm:$0xf] %vm515, %v501
      %535 = vst.msk [vmem:[%s172 + $0x4c] sm:$0xf] %vm515, %v502
      %536 = vst.msk [vmem:[%s172 + $0x50] sm:$0xf] %vm515, %v503
      %537 = vst.msk [vmem:[%s172 + $0x54] sm:$0xf] %vm515, %v504
      %538 = vst.msk [vmem:[%s172 + $0x58] sm:$0xf] %vm515, %v505
      %539 = vst.msk [vmem:[%s172 + $0x5c] sm:$0xf] %vm515, %v506
      %540 = vst.msk [vmem:[%s172 + $0x60] sm:$0xf] %vm515, %v507
      %541 = vst.msk [vmem:[%s172 + $0x64] sm:$0xf] %vm515, %v508
      %542 = vst.msk [vmem:[%s172 + $0x68] sm:$0xf] %vm515, %v509
      %543 = vst.msk [vmem:[%s172 + $0x6c] sm:$0xf] %vm515, %v510
      %544 = vst.msk [vmem:[%s172 + $0x70] sm:$0xf] %vm515, %v511
      %545 = vst.msk [vmem:[%s172 + $0x74] sm:$0xf] %vm515, %v512
      %546 = vst.msk [vmem:[%s172 + $0x78] sm:$0xf] %vm515, %v513
      %547 = vst.msk [vmem:[%s172 + $0x7c] sm:$0xf] %vm515, %v514
      %s548 = smul.u32 32, %s14
      %p549 = scmp.lt.s32.totalorder %s548, 159
      %s550 = scalar_select %p549, %s548, 159
      %s551 = smul.addr %s550, 4
      %s552 = scalar_lea.vmem %s3, %s551
      // Predicated region
      $region33: #{mnist_cnn_forward.4} parent=31 // pred_check
        %p553 = pneg %p100
      $region34: #{mnist_cnn_forward.4} parent=31 // pred_check_branch
        %555 = sbr.rel (%p553) target = $region36
      $region35: #{mnist_cnn_forward.4} parent=31 // pred_region
        %s556 = smul.u32 32, %s14
      $region36: #{mnist_cnn_forward.4} parent=31 // pred_fallthru
        _
    $region32: #{mnist_cnn_forward.4} parent=5 // pred_fallthru
      _
    %p557 = scmp.le.s32.totalorder 2, %s9
    // Predicated region
    $region37: #{mnist_cnn_forward.4} parent=5 // pred_check
      %p558 = pneg %p557
    $region38: #{mnist_cnn_forward.4} parent=5 // pred_check_branch
      %560 = sbr.rel (%p558) target = $region40
    $region39: #{mnist_cnn_forward.4} parent=5 // pred_region
      %s561 = ssub.s32 %s9, 2
      // Predicated region
      $region41: #{mnist_cnn_forward.4} parent=39 // pred_check
        %p562 = pneg %p106
      $region42: #{mnist_cnn_forward.4} parent=39 // pred_check_branch
        %564 = sbr.rel (%p562) target = $region44
      $region43: #{mnist_cnn_forward.4} parent=39 // pred_region
        %s565 = smul.u32 32, %s15
        %p566 = scmp.lt.s32.totalorder %s565, 159
        %s567 = scalar_select %p566, %s565, 159
        %s568 = smul.addr %s567, 4
        %s569 = scalar_lea.vmem %s3, %s568
      $region44: #{mnist_cnn_forward.4} parent=39 // pred_fallthru
        _
    $region40: #{mnist_cnn_forward.4} parent=5 // pred_fallthru
      _
  $region6: #{mnist_cnn_forward.4} parent=0 // loop_footer
    %s13 = sadd.s32 1, %s9
  $region7: #{mnist_cnn_forward.4} parent=0 // loop_footer_branch
    %8 = sbr.rel target = $region3
  $region8: #{mnist_cnn_forward.4} parent=0 // loop_exit
    _

// kernel: mnist_cnn_forward.6
$region0: #{mnist_cnn_forward.6}
  #allocation0 [shape = 'u32[]', space=smem, size = 0x4, offset = 0x4, fixed_abs, tag = 'smem constant byte address 0x4 - core index']
  #allocation1 [shape = 'u32[72,128]{1,0:T(1,128)}', space=vmem, size = 0x9000, scoped, tag = 'internal scratch']
  #allocation2 [shape = 'f32[2,512]{1,0:T(2,128)}', space=vmem, size = 0x1000, scoped, tag = 'scratch operand']
  %s0 = inlined_call_operand.vmem [shape: bf16[2,3072], index: 0, kind: input, shape index: {}]
  %s1 = inlined_call_operand.vmem [shape: bf16[3072,512], index: 1, kind: input, shape index: {}]
  %s2 = inlined_call_operand.vmem [shape: f32[1,512], index: 2, kind: input, shape index: {}]
  %s3 = inlined_call_operand.vmem [shape: bf16[2,512], index: 3, kind: output, shape index: {}]
  %s4 = sld [smem:[#allocation0]]
  $region53: #{mnist_cnn_forward.6} parent=0
    _
  %s6 = ssub.s32 1, %s4
  %s7 = scalar_select 0, %s6, %s4
  loop: start=0, step=1, limit=5
  $region2: #{mnist_cnn_forward.6} parent=0 // loop_pre_header
    _
  $region3: #{mnist_cnn_forward.6} parent=0 // loop_header
    %s9 = sphi 0, %s13
    %p10 = scmp.ge.s32.totalorder %s9, 5
    %s16 = sphi 0, %s28
    %s17 = sphi 0, %s24
    %s18 = sphi 0, %s16
    %s19 = sphi 0, %s17
    %s20 = sphi 0, %s18
    %s21 = sphi 0, %s19
    %s33 = sphi 0, %s35
    %s36 = sphi 0, %s33
    %s37 = sphi 0, %s36
    %s53 = sphi 0, %s37
    %s59 = sphi 0, %s61
    %s62 = sphi 0, %s59
    %s63 = sphi 0, %s62
    %s79 = sphi 0, %s63
    %s83 = sphi 0, %s83
    %s85 = sphi 0, %s83
    %s86 = sphi 0, %s85
    %s100 = sphi 0, %s86
    %s106 = sphi 0, %s108
    %s109 = sphi 0, %s106
    %s110 = sphi 0, %s109
    %s126 = sphi 0, %s110
  $region4: #{mnist_cnn_forward.6} parent=0 // loop_header_branch
    %12 = sbr.rel (%p10) target = $region8
  $region5: #{mnist_cnn_forward.6} parent=0 // loop_body
    %s14 = ssub.s32 %s9, 1
    %s15 = ssub.s32 %s9, 2
    %s22 = sadd.s32 1, %s17
    %p23 = scmp.ge.s32.totalorder %s22, 3
    %s24 = scalar_select %p23, 0, %s22
    %s25 = sadd.s32 1, %s16
    %s26 = scalar_select %p23, %s25, %s16
    %p27 = scmp.ge.s32.totalorder %s26, 1
    %s28 = scalar_select %p27, 0, %s26
    %s29 = ssub.s32 %s16, %s28
    %s30 = ssub.s32 %s17, %s24
    %s31 = sor.u32 %s29, %s30
    %p32 = scmp.eq.s32.totalorder %s31, 0
    %s34 = sadd.s32 %s33, 1
    %s35 = scalar_select %p32, %s33, %s34
    %p38 = pneg %p32
    %p39 = scmp.eq.s32.totalorder %s9, 2
    %p40 = por %p38, %p39
    %p41 = scmp.ne.s32.totalorder %s33, %s36
    %p42 = scmp.eq.s32.totalorder %s9, 0
    %p43 = por %p41, %p42
    %p44 = scmp.ne.s32.totalorder %s33, %s36
    %p45 = scmp.eq.s32.totalorder %s14, 2
    %p46 = por %p44, %p45
    %p47 = scmp.ne.s32.totalorder %s36, %s37
    %p48 = scmp.eq.s32.totalorder %s14, 0
    %p49 = por %p47, %p48
    %p50 = scmp.ne.s32.totalorder %s36, %s37
    %p51 = scmp.eq.s32.totalorder %s15, 2
    %p52 = por %p50, %p51
    %p54 = scmp.ne.s32.totalorder %s37, %s53
    %p55 = scmp.eq.s32.totalorder %s15, 0
    %p56 = por %p54, %p55
    %s57 = ssub.s32 %s17, %s24
    %p58 = scmp.eq.s32.totalorder %s57, 0
    %s60 = sadd.s32 %s59, 1
    %s61 = scalar_select %p58, %s59, %s60
    %p64 = pneg %p58
    %p65 = scmp.eq.s32.totalorder %s9, 2
    %p66 = por %p64, %p65
    %p67 = scmp.ne.s32.totalorder %s59, %s62
    %p68 = scmp.eq.s32.totalorder %s9, 0
    %p69 = por %p67, %p68
    %p70 = scmp.ne.s32.totalorder %s59, %s62
    %p71 = scmp.eq.s32.totalorder %s14, 2
    %p72 = por %p70, %p71
    %p73 = scmp.ne.s32.totalorder %s62, %s63
    %p74 = scmp.eq.s32.totalorder %s14, 0
    %p75 = por %p73, %p74
    %p76 = scmp.ne.s32.totalorder %s62, %s63
    %p77 = scmp.eq.s32.totalorder %s15, 2
    %p78 = por %p76, %p77
    %p80 = scmp.ne.s32.totalorder %s63, %s79
    %p81 = scmp.eq.s32.totalorder %s15, 0
    %p82 = por %p80, %p81
    %s84 = sadd.s32 %s83, 1
    %p87 = scmp.eq.s32.totalorder %s9, 2
    %p88 = scmp.ne.s32.totalorder %s83, %s85
    %p89 = scmp.eq.s32.totalorder %s9, 0
    %p90 = por %p88, %p89
    %p91 = scmp.ne.s32.totalorder %s83, %s85
    %p92 = scmp.eq.s32.totalorder %s14, 2
    %p93 = por %p91, %p92
    %p94 = scmp.ne.s32.totalorder %s85, %s86
    %p95 = scmp.eq.s32.totalorder %s14, 0
    %p96 = por %p94, %p95
    %p97 = scmp.ne.s32.totalorder %s85, %s86
    %p98 = scmp.eq.s32.totalorder %s15, 2
    %p99 = por %p97, %p98
    %p101 = scmp.ne.s32.totalorder %s86, %s100
    %p102 = scmp.eq.s32.totalorder %s15, 0
    %p103 = por %p101, %p102
    %s104 = ssub.s32 %s16, %s28
    %p105 = scmp.eq.s32.totalorder %s104, 0
    %s107 = sadd.s32 %s106, 1
    %s108 = scalar_select %p105, %s106, %s107
    %p111 = pneg %p105
    %p112 = scmp.eq.s32.totalorder %s9, 2
    %p113 = por %p111, %p112
    %p114 = scmp.ne.s32.totalorder %s106, %s109
    %p115 = scmp.eq.s32.totalorder %s9, 0
    %p116 = por %p114, %p115
    %p117 = scmp.ne.s32.totalorder %s106, %s109
    %p118 = scmp.eq.s32.totalorder %s14, 2
    %p119 = por %p117, %p118
    %p120 = scmp.ne.s32.totalorder %s109, %s110
    %p121 = scmp.eq.s32.totalorder %s14, 0
    %p122 = por %p120, %p121
    %p123 = scmp.ne.s32.totalorder %s109, %s110
    %p124 = scmp.eq.s32.totalorder %s15, 2
    %p125 = por %p123, %p124
    %p127 = scmp.ne.s32.totalorder %s110, %s126
    %p128 = scmp.eq.s32.totalorder %s15, 0
    %p129 = por %p127, %p128
    %p130 = scmp.le.s32.totalorder 1, %s9
    %p131 = scmp.lt.s32.totalorder %s9, 4
    %p132 = pnand %p130, %p131
    %p133 = pneg %p132
    // Predicated region
    $region9: #{mnist_cnn_forward.6} parent=5 // pred_check
      _
    $region10: #{mnist_cnn_forward.6} parent=5 // pred_check_branch
      %135 = sbr.rel (%p132) target = $region12
    $region11: #{mnist_cnn_forward.6} parent=5 // pred_region
      %s136 = ssub.s32 %s9, 1
      // Predicated region
      $region13: #{mnist_cnn_forward.6} parent=11 // pred_check
        %p137 = pneg %p96
      $region14: #{mnist_cnn_forward.6} parent=11 // pred_check_branch
        %139 = sbr.rel (%p137) target = $region16
      $region15: #{mnist_cnn_forward.6} parent=11 // pred_region
        _
      $region16: #{mnist_cnn_forward.6} parent=11 // pred_fallthru
        _
    $region12: #{mnist_cnn_forward.6} parent=5 // pred_fallthru
      _
    %p140 = scmp.lt.s32.totalorder %s9, 3
    // Predicated region
    $region17: #{mnist_cnn_forward.6} parent=5 // pred_check
      %p141 = pneg %p140
    $region18: #{mnist_cnn_forward.6} parent=5 // pred_check_branch
      %143 = sbr.rel (%p141) target = $region20
    $region19: #{mnist_cnn_forward.6} parent=5 // pred_region
      // Predicated region
      $region21: #{mnist_cnn_forward.6} parent=19 // pred_check
        %p144 = pneg %p43
      $region22: #{mnist_cnn_forward.6} parent=19 // pred_check_branch
        %146 = sbr.rel (%p144) target = $region24
      $region23: #{mnist_cnn_forward.6} parent=19 // pred_region
        %s147 = smul.u32 8, %s17
        %p148 = scmp.lt.s32.totalorder %s16, 0
        %s149 = scalar_select %p148, %s16, 0
        %p150 = scmp.lt.s32.totalorder %s147, 23
        %s151 = scalar_select %p150, %s147, 23
        %s152 = smul.addr %s149, 24
        %s153 = sadd.s32 %s151, %s152
        %s154 = scalar_lea.vmem %s0, %s153
        %s155 = smul.u32 8, %s17
      $region24: #{mnist_cnn_forward.6} parent=19 // pred_fallthru
        _
      // Predicated region
      $region25: #{mnist_cnn_forward.6} parent=19 // pred_check
        %p156 = pneg %p69
      $region26: #{mnist_cnn_forward.6} parent=19 // pred_check_branch
        %158 = sbr.rel (%p156) target = $region28
      $region27: #{mnist_cnn_forward.6} parent=19 // pred_region
        %s159 = smul.u32 128, %s17
        %p160 = scmp.lt.s32.totalorder %s159, 383
        %s161 = scalar_select %p160, %s159, 383
        %s162 = smul.addr %s161, 4
        %s163 = smul.addr %s162, 4
        %s164 = scalar_lea.vmem %s1, %s163
        %s165 = smul.u32 128, %s17
      $region28: #{mnist_cnn_forward.6} parent=19 // pred_fallthru
        _
    $region20: #{mnist_cnn_forward.6} parent=5 // pred_fallthru
      _
    %p166 = scmp.le.s32.totalorder 1, %s9
    %p167 = scmp.lt.s32.totalorder %s9, 4
    %p168 = pnand %p166, %p167
    %p169 = pneg %p168
    // Predicated region
    $region29: #{mnist_cnn_forward.6} parent=5 // pred_check
      _
    $region30: #{mnist_cnn_forward.6} parent=5 // pred_check_branch
      %171 = sbr.rel (%p168) target = $region32
    $region31: #{mnist_cnn_forward.6} parent=5 // pred_region
      %s172 = ssub.s32 %s9, 1
      %s173 = smul.u32 8, %s19
      %p174 = scmp.lt.s32.totalorder %s18, 0
      %s175 = scalar_select %p174, %s18, 0
      %p176 = scmp.lt.s32.totalorder %s173, 23
      %s177 = scalar_select %p176, %s173, 23
      %s178 = smul.addr %s175, 24
      %s179 = sadd.s32 %s177, %s178
      %s180 = scalar_lea.vmem %s0, %s179
      %p181 = pneg %p49
      %p182 = pneg %p46
      %s183 = smul.u32 128, %s19
      %p184 = scmp.lt.s32.totalorder %s183, 383
      %s185 = scalar_select %p184, %s183, 383
      %s186 = smul.addr %s185, 4
      %s187 = smul.addr %s186, 4
      %s188 = scalar_lea.vmem %s1, %s187
      %p189 = pneg %p75
      %p190 = pneg %p72
      %p191 = pneg %p96
      %p192 = pneg %p93
      %p193 = pneg %p122
      %p194 = pneg %p119
      %p195 = scmp.lt.s32.totalorder %s18, 0
      %s196 = scalar_select %p195, %s18, 0
      %s197 = smul.addr %s196, 4
      %s198 = scalar_lea.vmem %s3, %s197
      %s199 = smul.u32 8, %s19
      %p200 = scmp.lt.s32.totalorder %s18, 0
      %s201 = scalar_select %p200, %s18, 0
      %p202 = scmp.lt.s32.totalorder %s199, 23
      %s203 = scalar_select %p202, %s199, 23
      %s204 = smul.addr %s201, 24
      %s205 = sadd.s32 %s203, %s204
      %s206 = scalar_lea.vmem %s0, %s205
      %s207 = smul.u32 8, %s19
      %s208 = smul.u32 128, %s19
      %p209 = scmp.lt.s32.totalorder %s208, 383
      %s210 = scalar_select %p209, %s208, 383
      %s211 = smul.addr %s210, 4
      %s212 = smul.addr %s211, 4
      %s213 = scalar_lea.vmem %s1, %s212
      %s214 = smul.u32 128, %s19
      %p215 = scmp.lt.s32.totalorder %s18, 0
      %s216 = scalar_select %p215, %s18, 0
      %s217 = smul.addr %s216, 4
      %s218 = scalar_lea.vmem %s3, %s217
      %p219 = scmp.eq.s32.totalorder %s19, 0
      // Predicated region
      $region33: #{mnist_cnn_forward.6} parent=31 // pred_check
        %p220 = pneg %p219
      $region34: #{mnist_cnn_forward.6} parent=31 // pred_check_branch
        %222 = sbr.rel (%p220) target = $region36
      $region35: #{mnist_cnn_forward.6} parent=31 // pred_region
        %223 = vst [vmem:[#allocation2] sm:$0xff] 0.0
      $region36: #{mnist_cnn_forward.6} parent=31 // pred_fallthru
        _
      %v224 = vld [vmem:[#allocation2] sm:$0xff]
      %v225 = vld [vmem:[%s206] sm:$0xff]
      %v226 = vld [vmem:[%s213] sm:$0xff]
      %v227 = vld [vmem:[%s213 + $0x8] sm:$0xff]
      %v228 = vld [vmem:[%s213 + $0x10] sm:$0xff]
      %v229 = vld [vmem:[%s213 + $0x18] sm:$0xff]
      %v230 = vld [vmem:[%s213 + $0x20] sm:$0xff]
      %v231 = vld [vmem:[%s213 + $0x28] sm:$0xff]
      %v232 = vld [vmem:[%s213 + $0x30] sm:$0xff]
      %v233 = vld [vmem:[%s213 + $0x38] sm:$0xff]
      %v234 = vld [vmem:[%s213 + $0x40] sm:$0xff]
      %v235 = vld [vmem:[%s213 + $0x48] sm:$0xff]
      %v236 = vld [vmem:[%s213 + $0x50] sm:$0xff]
      %v237 = vld [vmem:[%s213 + $0x58] sm:$0xff]
      %v238 = vld [vmem:[%s213 + $0x60] sm:$0xff]
      %v239 = vld [vmem:[%s213 + $0x68] sm:$0xff]
      %v240 = vld [vmem:[%s213 + $0x70] sm:$0xff]
      %v241 = vld [vmem:[%s213 + $0x78] sm:$0xff]
      %v242 = vld [vmem:[%s213 + $0x80] sm:$0xff]
      %v243 = vld [vmem:[%s213 + $0x88] sm:$0xff]
      %v244 = vld [vmem:[%s213 + $0x90] sm:$0xff]
      %v245 = vld [vmem:[%s213 + $0x98] sm:$0xff]
      %v246 = vld [vmem:[%s213 + $0xa0] sm:$0xff]
      %v247 = vld [vmem:[%s213 + $0xa8] sm:$0xff]
      %v248 = vld [vmem:[%s213 + $0xb0] sm:$0xff]
      %v249 = vld [vmem:[%s213 + $0xb8] sm:$0xff]
      %v250 = vld [vmem:[%s213 + $0xc0] sm:$0xff]
      %v251 = vld [vmem:[%s213 + $0xc8] sm:$0xff]
      %v252 = vld [vmem:[%s213 + $0xd0] sm:$0xff]
      %v253 = vld [vmem:[%s213 + $0xd8] sm:$0xff]
      %v254 = vld [vmem:[%s213 + $0xe0] sm:$0xff]
      %v255 = vld [vmem:[%s213 + $0xe8] sm:$0xff]
      %v256 = vld [vmem:[%s213 + $0xf0] sm:$0xff]
      %v257 = vld [vmem:[%s213 + $0xf8] sm:$0xff]
      %v258 = vld [vmem:[%s213 + $0x100] sm:$0xff]
      %v259 = vld [vmem:[%s213 + $0x108] sm:$0xff]
      %v260 = vld [vmem:[%s213 + $0x110] sm:$0xff]
      %v261 = vld [vmem:[%s213 + $0x118] sm:$0xff]
      %v262 = vld [vmem:[%s213 + $0x120] sm:$0xff]
      %v263 = vld [vmem:[%s213 + $0x128] sm:$0xff]
      %v264 = vld [vmem:[%s213 + $0x130] sm:$0xff]
      %v265 = vld [vmem:[%s213 + $0x138] sm:$0xff]
      %v266 = vld [vmem:[%s213 + $0x140] sm:$0xff]
      %v267 = vld [vmem:[%s213 + $0x148] sm:$0xff]
      %v268 = vld [vmem:[%s213 + $0x150] sm:$0xff]
      %v269 = vld [vmem:[%s213 + $0x158] sm:$0xff]
      %v270 = vld [vmem:[%s213 + $0x160] sm:$0xff]
      %v271 = vld [vmem:[%s213 + $0x168] sm:$0xff]
      %v272 = vld [vmem:[%s213 + $0x170] sm:$0xff]
      %v273 = vld [vmem:[%s213 + $0x178] sm:$0xff]
      %v274 = vld [vmem:[%s213 + $0x180] sm:$0xff]
      %v275 = vld [vmem:[%s213 + $0x188] sm:$0xff]
      %v276 = vld [vmem:[%s213 + $0x190] sm:$0xff]
      %v277 = vld [vmem:[%s213 + $0x198] sm:$0xff]
      %v278 = vld [vmem:[%s213 + $0x1a0] sm:$0xff]
      %v279 = vld [vmem:[%s213 + $0x1a8] sm:$0xff]
      %v280 = vld [vmem:[%s213 + $0x1b0] sm:$0xff]
      %v281 = vld [vmem:[%s213 + $0x1b8] sm:$0xff]
      %v282 = vld [vmem:[%s213 + $0x1c0] sm:$0xff]
      %v283 = vld [vmem:[%s213 + $0x1c8] sm:$0xff]
      %v284 = vld [vmem:[%s213 + $0x1d0] sm:$0xff]
      %v285 = vld [vmem:[%s213 + $0x1d8] sm:$0xff]
      %v286 = vld [vmem:[%s213 + $0x1e0] sm:$0xff]
      %v287 = vld [vmem:[%s213 + $0x1e8] sm:$0xff]
      %v288 = vld [vmem:[%s213 + $0x1f0] sm:$0xff]
      %v289 = vld [vmem:[%s213 + $0x1f8] sm:$0xff]
      %v290 = vld [vmem:[%s213 + $0x200] sm:$0xff]
      %v291 = vld [vmem:[%s213 + $0x208] sm:$0xff]
      %v292 = vld [vmem:[%s213 + $0x210] sm:$0xff]
      %v293 = vld [vmem:[%s213 + $0x218] sm:$0xff]
      %v294 = vld [vmem:[%s213 + $0x220] sm:$0xff]
      %v295 = vld [vmem:[%s213 + $0x228] sm:$0xff]
      %v296 = vld [vmem:[%s213 + $0x230] sm:$0xff]
      %v297 = vld [vmem:[%s213 + $0x238] sm:$0xff]
      %v298 = vld [vmem:[%s213 + $0x240] sm:$0xff]
      %v299 = vld [vmem:[%s213 + $0x248] sm:$0xff]
      %v300 = vld [vmem:[%s213 + $0x250] sm:$0xff]
      %v301 = vld [vmem:[%s213 + $0x258] sm:$0xff]
      %v302 = vld [vmem:[%s213 + $0x260] sm:$0xff]
      %v303 = vld [vmem:[%s213 + $0x268] sm:$0xff]
      %v304 = vld [vmem:[%s213 + $0x270] sm:$0xff]
      %v305 = vld [vmem:[%s213 + $0x278] sm:$0xff]
      %v306 = vld [vmem:[%s213 + $0x280] sm:$0xff]
      %v307 = vld [vmem:[%s213 + $0x288] sm:$0xff]
      %v308 = vld [vmem:[%s213 + $0x290] sm:$0xff]
      %v309 = vld [vmem:[%s213 + $0x298] sm:$0xff]
      %v310 = vld [vmem:[%s213 + $0x2a0] sm:$0xff]
      %v311 = vld [vmem:[%s213 + $0x2a8] sm:$0xff]
      %v312 = vld [vmem:[%s213 + $0x2b0] sm:$0xff]
      %v313 = vld [vmem:[%s213 + $0x2b8] sm:$0xff]
      %v314 = vld [vmem:[%s213 + $0x2c0] sm:$0xff]
      %v315 = vld [vmem:[%s213 + $0x2c8] sm:$0xff]
      %v316 = vld [vmem:[%s213 + $0x2d0] sm:$0xff]
      %v317 = vld [vmem:[%s213 + $0x2d8] sm:$0xff]
      %v318 = vld [vmem:[%s213 + $0x2e0] sm:$0xff]
      %v319 = vld [vmem:[%s213 + $0x2e8] sm:$0xff]
      %v320 = vld [vmem:[%s213 + $0x2f0] sm:$0xff]
      %v321 = vld [vmem:[%s213 + $0x2f8] sm:$0xff]
      %v322 = vld [vmem:[%s213 + $0x300] sm:$0xff]
      %v323 = vld [vmem:[%s213 + $0x308] sm:$0xff]
      %v324 = vld [vmem:[%s213 + $0x310] sm:$0xff]
      %v325 = vld [vmem:[%s213 + $0x318] sm:$0xff]
      %v326 = vld [vmem:[%s213 + $0x320] sm:$0xff]
      %v327 = vld [vmem:[%s213 + $0x328] sm:$0xff]
      %v328 = vld [vmem:[%s213 + $0x330] sm:$0xff]
      %v329 = vld [vmem:[%s213 + $0x338] sm:$0xff]
      %v330 = vld [vmem:[%s213 + $0x340] sm:$0xff]
      %v331 = vld [vmem:[%s213 + $0x348] sm:$0xff]
      %v332 = vld [vmem:[%s213 + $0x350] sm:$0xff]
      %v333 = vld [vmem:[%s213 + $0x358] sm:$0xff]
      %v334 = vld [vmem:[%s213 + $0x360] sm:$0xff]
      %v335 = vld [vmem:[%s213 + $0x368] sm:$0xff]
      %v336 = vld [vmem:[%s213 + $0x370] sm:$0xff]
      %v337 = vld [vmem:[%s213 + $0x378] sm:$0xff]
      %v338 = vld [vmem:[%s213 + $0x380] sm:$0xff]
      %v339 = vld [vmem:[%s213 + $0x388] sm:$0xff]
      %v340 = vld [vmem:[%s213 + $0x390] sm:$0xff]
      %v341 = vld [vmem:[%s213 + $0x398] sm:$0xff]
      %v342 = vld [vmem:[%s213 + $0x3a0] sm:$0xff]
      %v343 = vld [vmem:[%s213 + $0x3a8] sm:$0xff]
      %v344 = vld [vmem:[%s213 + $0x3b0] sm:$0xff]
      %v345 = vld [vmem:[%s213 + $0x3b8] sm:$0xff]
      %v346 = vld [vmem:[%s213 + $0x3c0] sm:$0xff]
      %v347 = vld [vmem:[%s213 + $0x3c8] sm:$0xff]
      %v348 = vld [vmem:[%s213 + $0x3d0] sm:$0xff]
      %v349 = vld [vmem:[%s213 + $0x3d8] sm:$0xff]
      %v350 = vld [vmem:[%s213 + $0x3e0] sm:$0xff]
      %v351 = vld [vmem:[%s213 + $0x3e8] sm:$0xff]
      %v352 = vld [vmem:[%s213 + $0x3f0] sm:$0xff]
      %v353 = vld [vmem:[%s213 + $0x3f8] sm:$0xff]
      %v354 = vld [vmem:[%s213 + $0x400] sm:$0xff]
      %v355 = vld [vmem:[%s213 + $0x408] sm:$0xff]
      %v356 = vld [vmem:[%s213 + $0x410] sm:$0xff]
      %v357 = vld [vmem:[%s213 + $0x418] sm:$0xff]
      %v358 = vld [vmem:[%s213 + $0x420] sm:$0xff]
      %v359 = vld [vmem:[%s213 + $0x428] sm:$0xff]
      %v360 = vld [vmem:[%s213 + $0x430] sm:$0xff]
      %v361 = vld [vmem:[%s213 + $0x438] sm:$0xff]
      %v362 = vld [vmem:[%s213 + $0x440] sm:$0xff]
      %v363 = vld [vmem:[%s213 + $0x448] sm:$0xff]
      %v364 = vld [vmem:[%s213 + $0x450] sm:$0xff]
      %v365 = vld [vmem:[%s213 + $0x458] sm:$0xff]
      %v366 = vld [vmem:[%s213 + $0x460] sm:$0xff]
      %v367 = vld [vmem:[%s213 + $0x468] sm:$0xff]
      %v368 = vld [vmem:[%s213 + $0x470] sm:$0xff]
      %v369 = vld [vmem:[%s213 + $0x478] sm:$0xff]
      %v370 = vld [vmem:[%s213 + $0x480] sm:$0xff]
      %v371 = vld [vmem:[%s213 + $0x488] sm:$0xff]
      %v372 = vld [vmem:[%s213 + $0x490] sm:$0xff]
      %v373 = vld [vmem:[%s213 + $0x498] sm:$0xff]
      %v374 = vld [vmem:[%s213 + $0x4a0] sm:$0xff]
      %v375 = vld [vmem:[%s213 + $0x4a8] sm:$0xff]
      %v376 = vld [vmem:[%s213 + $0x4b0] sm:$0xff]
      %v377 = vld [vmem:[%s213 + $0x4b8] sm:$0xff]
      %v378 = vld [vmem:[%s213 + $0x4c0] sm:$0xff]
      %v379 = vld [vmem:[%s213 + $0x4c8] sm:$0xff]
      %v380 = vld [vmem:[%s213 + $0x4d0] sm:$0xff]
      %v381 = vld [vmem:[%s213 + $0x4d8] sm:$0xff]
      %v382 = vld [vmem:[%s213 + $0x4e0] sm:$0xff]
      %v383 = vld [vmem:[%s213 + $0x4e8] sm:$0xff]
      %v384 = vld [vmem:[%s213 + $0x4f0] sm:$0xff]
      %v385 = vld [vmem:[%s213 + $0x4f8] sm:$0xff]
      %v386 = vld [vmem:[%s213 + $0x500] sm:$0xff]
      %v387 = vld [vmem:[%s213 + $0x508] sm:$0xff]
      %v388 = vld [vmem:[%s213 + $0x510] sm:$0xff]
      %v389 = vld [vmem:[%s213 + $0x518] sm:$0xff]
      %v390 = vld [vmem:[%s213 + $0x520] sm:$0xff]
      %v391 = vld [vmem:[%s213 + $0x528] sm:$0xff]
      %v392 = vld [vmem:[%s213 + $0x530] sm:$0xff]
      %v393 = vld [vmem:[%s213 + $0x538] sm:$0xff]
      %v394 = vld [vmem:[%s213 + $0x540] sm:$0xff]
      %v395 = vld [vmem:[%s213 + $0x548] sm:$0xff]
      %v396 = vld [vmem:[%s213 + $0x550] sm:$0xff]
      %v397 = vld [vmem:[%s213 + $0x558] sm:$0xff]
      %v398 = vld [vmem:[%s213 + $0x560] sm:$0xff]
      %v399 = vld [vmem:[%s213 + $0x568] sm:$0xff]
      %v400 = vld [vmem:[%s213 + $0x570] sm:$0xff]
      %v401 = vld [vmem:[%s213 + $0x578] sm:$0xff]
      %v402 = vld [vmem:[%s213 + $0x580] sm:$0xff]
      %v403 = vld [vmem:[%s213 + $0x588] sm:$0xff]
      %v404 = vld [vmem:[%s213 + $0x590] sm:$0xff]
      %v405 = vld [vmem:[%s213 + $0x598] sm:$0xff]
      %v406 = vld [vmem:[%s213 + $0x5a0] sm:$0xff]
      %v407 = vld [vmem:[%s213 + $0x5a8] sm:$0xff]
      %v408 = vld [vmem:[%s213 + $0x5b0] sm:$0xff]
      %v409 = vld [vmem:[%s213 + $0x5b8] sm:$0xff]
      %v410 = vld [vmem:[%s213 + $0x5c0] sm:$0xff]
      %v411 = vld [vmem:[%s213 + $0x5c8] sm:$0xff]
      %v412 = vld [vmem:[%s213 + $0x5d0] sm:$0xff]
      %v413 = vld [vmem:[%s213 + $0x5d8] sm:$0xff]
      %v414 = vld [vmem:[%s213 + $0x5e0] sm:$0xff]
      %v415 = vld [vmem:[%s213 + $0x5e8] sm:$0xff]
      %v416 = vld [vmem:[%s213 + $0x5f0] sm:$0xff]
      %v417 = vld [vmem:[%s213 + $0x5f8] sm:$0xff]
      %v418 = vld [vmem:[%s213 + $0x600] sm:$0xff]
      %v419 = vld [vmem:[%s213 + $0x608] sm:$0xff]
      %v420 = vld [vmem:[%s213 + $0x610] sm:$0xff]
      %v421 = vld [vmem:[%s213 + $0x618] sm:$0xff]
      %v422 = vld [vmem:[%s213 + $0x620] sm:$0xff]
      %v423 = vld [vmem:[%s213 + $0x628] sm:$0xff]
      %v424 = vld [vmem:[%s213 + $0x630] sm:$0xff]
      %v425 = vld [vmem:[%s213 + $0x638] sm:$0xff]
      %v426 = vld [vmem:[%s213 + $0x640] sm:$0xff]
      %v427 = vld [vmem:[%s213 + $0x648] sm:$0xff]
      %v428 = vld [vmem:[%s213 + $0x650] sm:$0xff]
      %v429 = vld [vmem:[%s213 + $0x658] sm:$0xff]
      %v430 = vld [vmem:[%s213 + $0x660] sm:$0xff]
      %v431 = vld [vmem:[%s213 + $0x668] sm:$0xff]
      %v432 = vld [vmem:[%s213 + $0x670] sm:$0xff]
      %v433 = vld [vmem:[%s213 + $0x678] sm:$0xff]
      %v434 = vld [vmem:[%s213 + $0x680] sm:$0xff]
      %v435 = vld [vmem:[%s213 + $0x688] sm:$0xff]
      %v436 = vld [vmem:[%s213 + $0x690] sm:$0xff]
      %v437 = vld [vmem:[%s213 + $0x698] sm:$0xff]
      %v438 = vld [vmem:[%s213 + $0x6a0] sm:$0xff]
      %v439 = vld [vmem:[%s213 + $0x6a8] sm:$0xff]
      %v440 = vld [vmem:[%s213 + $0x6b0] sm:$0xff]
      %v441 = vld [vmem:[%s213 + $0x6b8] sm:$0xff]
      %v442 = vld [vmem:[%s213 + $0x6c0] sm:$0xff]
      %v443 = vld [vmem:[%s213 + $0x6c8] sm:$0xff]
      %v444 = vld [vmem:[%s213 + $0x6d0] sm:$0xff]
      %v445 = vld [vmem:[%s213 + $0x6d8] sm:$0xff]
      %v446 = vld [vmem:[%s213 + $0x6e0] sm:$0xff]
      %v447 = vld [vmem:[%s213 + $0x6e8] sm:$0xff]
      %v448 = vld [vmem:[%s213 + $0x6f0] sm:$0xff]
      %v449 = vld [vmem:[%s213 + $0x6f8] sm:$0xff]
      %v450 = vld [vmem:[%s213 + $0x700] sm:$0xff]
      %v451 = vld [vmem:[%s213 + $0x708] sm:$0xff]
      %v452 = vld [vmem:[%s213 + $0x710] sm:$0xff]
      %v453 = vld [vmem:[%s213 + $0x718] sm:$0xff]
      %v454 = vld [vmem:[%s213 + $0x720] sm:$0xff]
      %v455 = vld [vmem:[%s213 + $0x728] sm:$0xff]
      %v456 = vld [vmem:[%s213 + $0x730] sm:$0xff]
      %v457 = vld [vmem:[%s213 + $0x738] sm:$0xff]
      %v458 = vld [vmem:[%s213 + $0x740] sm:$0xff]
      %v459 = vld [vmem:[%s213 + $0x748] sm:$0xff]
      %v460 = vld [vmem:[%s213 + $0x750] sm:$0xff]
      %v461 = vld [vmem:[%s213 + $0x758] sm:$0xff]
      %v462 = vld [vmem:[%s213 + $0x760] sm:$0xff]
      %v463 = vld [vmem:[%s213 + $0x768] sm:$0xff]
      %v464 = vld [vmem:[%s213 + $0x770] sm:$0xff]
      %v465 = vld [vmem:[%s213 + $0x778] sm:$0xff]
      %v466 = vld [vmem:[%s213 + $0x780] sm:$0xff]
      %v467 = vld [vmem:[%s213 + $0x788] sm:$0xff]
      %v468 = vld [vmem:[%s213 + $0x790] sm:$0xff]
      %v469 = vld [vmem:[%s213 + $0x798] sm:$0xff]
      %v470 = vld [vmem:[%s213 + $0x7a0] sm:$0xff]
      %v471 = vld [vmem:[%s213 + $0x7a8] sm:$0xff]
      %v472 = vld [vmem:[%s213 + $0x7b0] sm:$0xff]
      %v473 = vld [vmem:[%s213 + $0x7b8] sm:$0xff]
      %v474 = vld [vmem:[%s213 + $0x7c0] sm:$0xff]
      %v475 = vld [vmem:[%s213 + $0x7c8] sm:$0xff]
      %v476 = vld [vmem:[%s213 + $0x7d0] sm:$0xff]
      %v477 = vld [vmem:[%s213 + $0x7d8] sm:$0xff]
      %v478 = vld [vmem:[%s213 + $0x7e0] sm:$0xff]
      %v479 = vld [vmem:[%s213 + $0x7e8] sm:$0xff]
      %v480 = vld [vmem:[%s213 + $0x7f0] sm:$0xff]
      %v481 = vld [vmem:[%s213 + $0x7f8] sm:$0xff]
      %483 = vst [vmem:[#allocation1] ss:$9 sm:$0xff] %v225
      %v484 = vld [vmem:[#allocation1] sm:$0xff]
      %v485 = vld [vmem:[#allocation1 + $0x9] sm:$0xff]
      %v486 = vld [vmem:[#allocation1 + $0x12] sm:$0xff]
      %v487 = vld [vmem:[#allocation1 + $0x1b] sm:$0xff]
      %v488 = vld [vmem:[#allocation1 + $0x24] sm:$0xff]
      %v489 = vld [vmem:[#allocation1 + $0x2d] sm:$0xff]
      %v490 = vld [vmem:[#allocation1 + $0x36] sm:$0xff]
      %v491 = vld [vmem:[#allocation1 + $0x3f] sm:$0xff]
      %v756 = vunpack.c.l.b16 %v226
      %v757 = vunpack.c.h.b16 %v226
      %v758 = vunpack.c.l.b16 %v227
      %v759 = vunpack.c.h.b16 %v227
      %v760 = vunpack.c.l.b16 %v228
      %v761 = vunpack.c.h.b16 %v228
      %v762 = vunpack.c.l.b16 %v229
      %v763 = vunpack.c.h.b16 %v229
      %v764 = vunpack.c.l.b16 %v230
      %v765 = vunpack.c.h.b16 %v230
      %v766 = vunpack.c.l.b16 %v231
      %v767 = vunpack.c.h.b16 %v231
      %v768 = vunpack.c.l.b16 %v232
      %v769 = vunpack.c.h.b16 %v232
      %v770 = vunpack.c.l.b16 %v233
      %v771 = vunpack.c.h.b16 %v233
      %v772 = vunpack.c.l.b16 %v234
      %v773 = vunpack.c.h.b16 %v234
      %v774 = vunpack.c.l.b16 %v235
      %v775 = vunpack.c.h.b16 %v235
      %v776 = vunpack.c.l.b16 %v236
      %v777 = vunpack.c.h.b16 %v236
      %v778 = vunpack.c.l.b16 %v237
      %v779 = vunpack.c.h.b16 %v237
      %v780 = vunpack.c.l.b16 %v238
      %v781 = vunpack.c.h.b16 %v238
      %v782 = vunpack.c.l.b16 %v239
      %v783 = vunpack.c.h.b16 %v239
      %v784 = vunpack.c.l.b16 %v240
      %v785 = vunpack.c.h.b16 %v240
      %v786 = vunpack.c.l.b16 %v241
      %v787 = vunpack.c.h.b16 %v241
      %v788 = vunpack.c.l.b16 %v242
      %v789 = vunpack.c.h.b16 %v242
      %v790 = vunpack.c.l.b16 %v243
      %v791 = vunpack.c.h.b16 %v243
      %v792 = vunpack.c.l.b16 %v244
      %v793 = vunpack.c.h.b16 %v244
      %v794 = vunpack.c.l.b16 %v245
      %v795 = vunpack.c.h.b16 %v245
      %v796 = vunpack.c.l.b16 %v246
      %v797 = vunpack.c.h.b16 %v246
      %v798 = vunpack.c.l.b16 %v247
      %v799 = vunpack.c.h.b16 %v247
      %v800 = vunpack.c.l.b16 %v248
      %v801 = vunpack.c.h.b16 %v248
      %v802 = vunpack.c.l.b16 %v249
      %v803 = vunpack.c.h.b16 %v249
      %v804 = vunpack.c.l.b16 %v250
      %v805 = vunpack.c.h.b16 %v250
      %v806 = vunpack.c.l.b16 %v251
      %v807 = vunpack.c.h.b16 %v251
      %v808 = vunpack.c.l.b16 %v252
      %v809 = vunpack.c.h.b16 %v252
      %v810 = vunpack.c.l.b16 %v253
      %v811 = vunpack.c.h.b16 %v253
      %v812 = vunpack.c.l.b16 %v254
      %v813 = vunpack.c.h.b16 %v254
      %v814 = vunpack.c.l.b16 %v255
      %v815 = vunpack.c.h.b16 %v255
      %v816 = vunpack.c.l.b16 %v256
      %v817 = vunpack.c.h.b16 %v256
      %v818 = vunpack.c.l.b16 %v257
      %v819 = vunpack.c.h.b16 %v257
      %v820 = vunpack.c.l.b16 %v258
      %v821 = vunpack.c.h.b16 %v258
      %v822 = vunpack.c.l.b16 %v259
      %v823 = vunpack.c.h.b16 %v259
      %v824 = vunpack.c.l.b16 %v260
      %v825 = vunpack.c.h.b16 %v260
      %v826 = vunpack.c.l.b16 %v261
      %v827 = vunpack.c.h.b16 %v261
      %v828 = vunpack.c.l.b16 %v262
      %v829 = vunpack.c.h.b16 %v262
      %v830 = vunpack.c.l.b16 %v263
      %v831 = vunpack.c.h.b16 %v263
      %v832 = vunpack.c.l.b16 %v264
      %v833 = vunpack.c.h.b16 %v264
      %v834 = vunpack.c.l.b16 %v265
      %v835 = vunpack.c.h.b16 %v265
      %v836 = vunpack.c.l.b16 %v266
      %v837 = vunpack.c.h.b16 %v266
      %v838 = vunpack.c.l.b16 %v267
      %v839 = vunpack.c.h.b16 %v267
      %v840 = vunpack.c.l.b16 %v268
      %v841 = vunpack.c.h.b16 %v268
      %v842 = vunpack.c.l.b16 %v269
      %v843 = vunpack.c.h.b16 %v269
      %v844 = vunpack.c.l.b16 %v270
      %v845 = vunpack.c.h.b16 %v270
      %v846 = vunpack.c.l.b16 %v271
      %v847 = vunpack.c.h.b16 %v271
      %v848 = vunpack.c.l.b16 %v272
      %v849 = vunpack.c.h.b16 %v272
      %v850 = vunpack.c.l.b16 %v273
      %v851 = vunpack.c.h.b16 %v273
      %v852 = vunpack.c.l.b16 %v274
      %v853 = vunpack.c.h.b16 %v274
      %v854 = vunpack.c.l.b16 %v275
      %v855 = vunpack.c.h.b16 %v275
      %v856 = vunpack.c.l.b16 %v276
      %v857 = vunpack.c.h.b16 %v276
      %v858 = vunpack.c.l.b16 %v277
      %v859 = vunpack.c.h.b16 %v277
      %v860 = vunpack.c.l.b16 %v278
      %v861 = vunpack.c.h.b16 %v278
      %v862 = vunpack.c.l.b16 %v279
      %v863 = vunpack.c.h.b16 %v279
      %v864 = vunpack.c.l.b16 %v280
      %v865 = vunpack.c.h.b16 %v280
      %v866 = vunpack.c.l.b16 %v281
      %v867 = vunpack.c.h.b16 %v281
      %v868 = vunpack.c.l.b16 %v282
      %v869 = vunpack.c.h.b16 %v282
      %v870 = vunpack.c.l.b16 %v283
      %v871 = vunpack.c.h.b16 %v283
      %v872 = vunpack.c.l.b16 %v284
      %v873 = vunpack.c.h.b16 %v284
      %v874 = vunpack.c.l.b16 %v285
      %v875 = vunpack.c.h.b16 %v285
      %v876 = vunpack.c.l.b16 %v286
      %v877 = vunpack.c.h.b16 %v286
      %v878 = vunpack.c.l.b16 %v287
      %v879 = vunpack.c.h.b16 %v287
      %v880 = vunpack.c.l.b16 %v288
      %v881 = vunpack.c.h.b16 %v288
      %v882 = vunpack.c.l.b16 %v289
      %v883 = vunpack.c.h.b16 %v289
      %v884 = vunpack.c.l.b16 %v290
      %v885 = vunpack.c.h.b16 %v290
      %v886 = vunpack.c.l.b16 %v291
      %v887 = vunpack.c.h.b16 %v291
      %v888 = vunpack.c.l.b16 %v292
      %v889 = vunpack.c.h.b16 %v292
      %v890 = vunpack.c.l.b16 %v293
      %v891 = vunpack.c.h.b16 %v293
      %v892 = vunpack.c.l.b16 %v294
      %v893 = vunpack.c.h.b16 %v294
      %v894 = vunpack.c.l.b16 %v295
      %v895 = vunpack.c.h.b16 %v295
      %v896 = vunpack.c.l.b16 %v296
      %v897 = vunpack.c.h.b16 %v296
      %v898 = vunpack.c.l.b16 %v297
      %v899 = vunpack.c.h.b16 %v297
      %v900 = vunpack.c.l.b16 %v298
      %v901 = vunpack.c.h.b16 %v298
      %v902 = vunpack.c.l.b16 %v299
      %v903 = vunpack.c.h.b16 %v299
      %v904 = vunpack.c.l.b16 %v300
      %v905 = vunpack.c.h.b16 %v300
      %v906 = vunpack.c.l.b16 %v301
      %v907 = vunpack.c.h.b16 %v301
      %v908 = vunpack.c.l.b16 %v302
      %v909 = vunpack.c.h.b16 %v302
      %v910 = vunpack.c.l.b16 %v303
      %v911 = vunpack.c.h.b16 %v303
      %v912 = vunpack.c.l.b16 %v304
      %v913 = vunpack.c.h.b16 %v304
      %v914 = vunpack.c.l.b16 %v305
      %v915 = vunpack.c.h.b16 %v305
      %v916 = vunpack.c.l.b16 %v306
      %v917 = vunpack.c.h.b16 %v306
      %v918 = vunpack.c.l.b16 %v307
      %v919 = vunpack.c.h.b16 %v307
      %v920 = vunpack.c.l.b16 %v308
      %v921 = vunpack.c.h.b16 %v308
      %v922 = vunpack.c.l.b16 %v309
      %v923 = vunpack.c.h.b16 %v309
      %v924 = vunpack.c.l.b16 %v310
      %v925 = vunpack.c.h.b16 %v310
      %v926 = vunpack.c.l.b16 %v311
      %v927 = vunpack.c.h.b16 %v311
      %v928 = vunpack.c.l.b16 %v312
      %v929 = vunpack.c.h.b16 %v312
      %v930 = vunpack.c.l.b16 %v313
      %v931 = vunpack.c.h.b16 %v313
      %v932 = vunpack.c.l.b16 %v314
      %v933 = vunpack.c.h.b16 %v314
      %v934 = vunpack.c.l.b16 %v315
      %v935 = vunpack.c.h.b16 %v315
      %v936 = vunpack.c.l.b16 %v316
      %v937 = vunpack.c.h.b16 %v316
      %v938 = vunpack.c.l.b16 %v317
      %v939 = vunpack.c.h.b16 %v317
      %v940 = vunpack.c.l.b16 %v318
      %v941 = vunpack.c.h.b16 %v318
      %v942 = vunpack.c.l.b16 %v319
      %v943 = vunpack.c.h.b16 %v319
      %v944 = vunpack.c.l.b16 %v320
      %v945 = vunpack.c.h.b16 %v320
      %v946 = vunpack.c.l.b16 %v321
      %v947 = vunpack.c.h.b16 %v321
      %v948 = vunpack.c.l.b16 %v322
      %v949 = vunpack.c.h.b16 %v322
      %v950 = vunpack.c.l.b16 %v323
      %v951 = vunpack.c.h.b16 %v323
      %v952 = vunpack.c.l.b16 %v324
      %v953 = vunpack.c.h.b16 %v324
      %v954 = vunpack.c.l.b16 %v325
      %v955 = vunpack.c.h.b16 %v325
      %v956 = vunpack.c.l.b16 %v326
      %v957 = vunpack.c.h.b16 %v326
      %v958 = vunpack.c.l.b16 %v327
      %v959 = vunpack.c.h.b16 %v327
      %v960 = vunpack.c.l.b16 %v328
      %v961 = vunpack.c.h.b16 %v328
      %v962 = vunpack.c.l.b16 %v329
      %v963 = vunpack.c.h.b16 %v329
      %v964 = vunpack.c.l.b16 %v330
      %v965 = vunpack.c.h.b16 %v330
      %v966 = vunpack.c.l.b16 %v331
      %v967 = vunpack.c.h.b16 %v331
      %v968 = vunpack.c.l.b16 %v332
      %v969 = vunpack.c.h.b16 %v332
      %v970 = vunpack.c.l.b16 %v333
      %v971 = vunpack.c.h.b16 %v333
      %v972 = vunpack.c.l.b16 %v334
      %v973 = vunpack.c.h.b16 %v334
      %v974 = vunpack.c.l.b16 %v335
      %v975 = vunpack.c.h.b16 %v335
      %v976 = vunpack.c.l.b16 %v336
      %v977 = vunpack.c.h.b16 %v336
      %v978 = vunpack.c.l.b16 %v337
      %v979 = vunpack.c.h.b16 %v337
      %v980 = vunpack.c.l.b16 %v338
      %v981 = vunpack.c.h.b16 %v338
      %v982 = vunpack.c.l.b16 %v339
      %v983 = vunpack.c.h.b16 %v339
      %v984 = vunpack.c.l.b16 %v340
      %v985 = vunpack.c.h.b16 %v340
      %v986 = vunpack.c.l.b16 %v341
      %v987 = vunpack.c.h.b16 %v341
      %v988 = vunpack.c.l.b16 %v342
      %v989 = vunpack.c.h.b16 %v342
      %v990 = vunpack.c.l.b16 %v343
      %v991 = vunpack.c.h.b16 %v343
      %v992 = vunpack.c.l.b16 %v344
      %v993 = vunpack.c.h.b16 %v344
      %v994 = vunpack.c.l.b16 %v345
      %v995 = vunpack.c.h.b16 %v345
      %v996 = vunpack.c.l.b16 %v346
      %v997 = vunpack.c.h.b16 %v346
      %v998 = vunpack.c.l.b16 %v347
      %v999 = vunpack.c.h.b16 %v347
      %v1000 = vunpack.c.l.b16 %v348
      %v1001 = vunpack.c.h.b16 %v348
      %v1002 = vunpack.c.l.b16 %v349
      %v1003 = vunpack.c.h.b16 %v349
      %v1004 = vunpack.c.l.b16 %v350
      %v1005 = vunpack.c.h.b16 %v350
      %v1006 = vunpack.c.l.b16 %v351
      %v1007 = vunpack.c.h.b16 %v351
      %v1008 = vunpack.c.l.b16 %v352
      %v1009 = vunpack.c.h.b16 %v352
      %v1010 = vunpack.c.l.b16 %v353
      %v1011 = vunpack.c.h.b16 %v353
      %v1012 = vunpack.c.l.b16 %v354
      %v1013 = vunpack.c.h.b16 %v354
      %v1014 = vunpack.c.l.b16 %v355
      %v1015 = vunpack.c.h.b16 %v355
      %v1016 = vunpack.c.l.b16 %v356
      %v1017 = vunpack.c.h.b16 %v356
      %v1018 = vunpack.c.l.b16 %v357
      %v1019 = vunpack.c.h.b16 %v357
      %v1020 = vunpack.c.l.b16 %v358
      %v1021 = vunpack.c.h.b16 %v358
      %v1022 = vunpack.c.l.b16 %v359
      %v1023 = vunpack.c.h.b16 %v359
      %v1024 = vunpack.c.l.b16 %v360
      %v1025 = vunpack.c.h.b16 %v360
      %v1026 = vunpack.c.l.b16 %v361
      %v1027 = vunpack.c.h.b16 %v361
      %v1028 = vunpack.c.l.b16 %v362
      %v1029 = vunpack.c.h.b16 %v362
      %v1030 = vunpack.c.l.b16 %v363
      %v1031 = vunpack.c.h.b16 %v363
      %v1032 = vunpack.c.l.b16 %v364
      %v1033 = vunpack.c.h.b16 %v364
      %v1034 = vunpack.c.l.b16 %v365
      %v1035 = vunpack.c.h.b16 %v365
      %v1036 = vunpack.c.l.b16 %v366
      %v1037 = vunpack.c.h.b16 %v366
      %v1038 = vunpack.c.l.b16 %v367
      %v1039 = vunpack.c.h.b16 %v367
      %v1040 = vunpack.c.l.b16 %v368
      %v1041 = vunpack.c.h.b16 %v368
      %v1042 = vunpack.c.l.b16 %v369
      %v1043 = vunpack.c.h.b16 %v369
      %v1044 = vunpack.c.l.b16 %v370
      %v1045 = vunpack.c.h.b16 %v370
      %v1046 = vunpack.c.l.b16 %v371
      %v1047 = vunpack.c.h.b16 %v371
      %v1048 = vunpack.c.l.b16 %v372
      %v1049 = vunpack.c.h.b16 %v372
      %v1050 = vunpack.c.l.b16 %v373
      %v1051 = vunpack.c.h.b16 %v373
      %v1052 = vunpack.c.l.b16 %v374
      %v1053 = vunpack.c.h.b16 %v374
      %v1054 = vunpack.c.l.b16 %v375
      %v1055 = vunpack.c.h.b16 %v375
      %v1056 = vunpack.c.l.b16 %v376
      %v1057 = vunpack.c.h.b16 %v376
      %v1058 = vunpack.c.l.b16 %v377
      %v1059 = vunpack.c.h.b16 %v377
      %v1060 = vunpack.c.l.b16 %v378
      %v1061 = vunpack.c.h.b16 %v378
      %v1062 = vunpack.c.l.b16 %v379
      %v1063 = vunpack.c.h.b16 %v379
      %v1064 = vunpack.c.l.b16 %v380
      %v1065 = vunpack.c.h.b16 %v380
      %v1066 = vunpack.c.l.b16 %v381
      %v1067 = vunpack.c.h.b16 %v381
      %v1068 = vunpack.c.l.b16 %v382
      %v1069 = vunpack.c.h.b16 %v382
      %v1070 = vunpack.c.l.b16 %v383
      %v1071 = vunpack.c.h.b16 %v383
      %v1072 = vunpack.c.l.b16 %v384
      %v1073 = vunpack.c.h.b16 %v384
      %v1074 = vunpack.c.l.b16 %v385
      %v1075 = vunpack.c.h.b16 %v385
      %v1076 = vunpack.c.l.b16 %v386
      %v1077 = vunpack.c.h.b16 %v386
      %v1078 = vunpack.c.l.b16 %v387
      %v1079 = vunpack.c.h.b16 %v387
      %v1080 = vunpack.c.l.b16 %v388
      %v1081 = vunpack.c.h.b16 %v388
      %v1082 = vunpack.c.l.b16 %v389
      %v1083 = vunpack.c.h.b16 %v389
      %v1084 = vunpack.c.l.b16 %v390
      %v1085 = vunpack.c.h.b16 %v390
      %v1086 = vunpack.c.l.b16 %v391
      %v1087 = vunpack.c.h.b16 %v391
      %v1088 = vunpack.c.l.b16 %v392
      %v1089 = vunpack.c.h.b16 %v392
      %v1090 = vunpack.c.l.b16 %v393
      %v1091 = vunpack.c.h.b16 %v393
      %v1092 = vunpack.c.l.b16 %v394
      %v1093 = vunpack.c.h.b16 %v394
      %v1094 = vunpack.c.l.b16 %v395
      %v1095 = vunpack.c.h.b16 %v395
      %v1096 = vunpack.c.l.b16 %v396
      %v1097 = vunpack.c.h.b16 %v396
      %v1098 = vunpack.c.l.b16 %v397
      %v1099 = vunpack.c.h.b16 %v397
      %v1100 = vunpack.c.l.b16 %v398
      %v1101 = vunpack.c.h.b16 %v398
      %v1102 = vunpack.c.l.b16 %v399
      %v1103 = vunpack.c.h.b16 %v399
      %v1104 = vunpack.c.l.b16 %v400
      %v1105 = vunpack.c.h.b16 %v400
      %v1106 = vunpack.c.l.b16 %v401
      %v1107 = vunpack.c.h.b16 %v401
      %v1108 = vunpack.c.l.b16 %v402
      %v1109 = vunpack.c.h.b16 %v402
      %v1110 = vunpack.c.l.b16 %v403
      %v1111 = vunpack.c.h.b16 %v403
      %v1112 = vunpack.c.l.b16 %v404
      %v1113 = vunpack.c.h.b16 %v404
      %v1114 = vunpack.c.l.b16 %v405
      %v1115 = vunpack.c.h.b16 %v405
      %v1116 = vunpack.c.l.b16 %v406
      %v1117 = vunpack.c.h.b16 %v406
      %v1118 = vunpack.c.l.b16 %v407
      %v1119 = vunpack.c.h.b16 %v407
      %v1120 = vunpack.c.l.b16 %v408
      %v1121 = vunpack.c.h.b16 %v408
      %v1122 = vunpack.c.l.b16 %v409
      %v1123 = vunpack.c.h.b16 %v409
      %v1124 = vunpack.c.l.b16 %v410
      %v1125 = vunpack.c.h.b16 %v410
      %v1126 = vunpack.c.l.b16 %v411
      %v1127 = vunpack.c.h.b16 %v411
      %v1128 = vunpack.c.l.b16 %v412
      %v1129 = vunpack.c.h.b16 %v412
      %v1130 = vunpack.c.l.b16 %v413
      %v1131 = vunpack.c.h.b16 %v413
      %v1132 = vunpack.c.l.b16 %v414
      %v1133 = vunpack.c.h.b16 %v414
      %v1134 = vunpack.c.l.b16 %v415
      %v1135 = vunpack.c.h.b16 %v415
      %v1136 = vunpack.c.l.b16 %v416
      %v1137 = vunpack.c.h.b16 %v416
      %v1138 = vunpack.c.l.b16 %v417
      %v1139 = vunpack.c.h.b16 %v417
      %v1140 = vunpack.c.l.b16 %v418
      %v1141 = vunpack.c.h.b16 %v418
      %v1142 = vunpack.c.l.b16 %v419
      %v1143 = vunpack.c.h.b16 %v419
      %v1144 = vunpack.c.l.b16 %v420
      %v1145 = vunpack.c.h.b16 %v420
      %v1146 = vunpack.c.l.b16 %v421
      %v1147 = vunpack.c.h.b16 %v421
      %v1148 = vunpack.c.l.b16 %v422
      %v1149 = vunpack.c.h.b16 %v422
      %v1150 = vunpack.c.l.b16 %v423
      %v1151 = vunpack.c.h.b16 %v423
      %v1152 = vunpack.c.l.b16 %v424
      %v1153 = vunpack.c.h.b16 %v424
      %v1154 = vunpack.c.l.b16 %v425
      %v1155 = vunpack.c.h.b16 %v425
      %v1156 = vunpack.c.l.b16 %v426
      %v1157 = vunpack.c.h.b16 %v426
      %v1158 = vunpack.c.l.b16 %v427
      %v1159 = vunpack.c.h.b16 %v427
      %v1160 = vunpack.c.l.b16 %v428
      %v1161 = vunpack.c.h.b16 %v428
      %v1162 = vunpack.c.l.b16 %v429
      %v1163 = vunpack.c.h.b16 %v429
      %v1164 = vunpack.c.l.b16 %v430
      %v1165 = vunpack.c.h.b16 %v430
      %v1166 = vunpack.c.l.b16 %v431
      %v1167 = vunpack.c.h.b16 %v431
      %v1168 = vunpack.c.l.b16 %v432
      %v1169 = vunpack.c.h.b16 %v432
      %v1170 = vunpack.c.l.b16 %v433
      %v1171 = vunpack.c.h.b16 %v433
      %v1172 = vunpack.c.l.b16 %v434
      %v1173 = vunpack.c.h.b16 %v434
      %v1174 = vunpack.c.l.b16 %v435
      %v1175 = vunpack.c.h.b16 %v435
      %v1176 = vunpack.c.l.b16 %v436
      %v1177 = vunpack.c.h.b16 %v436
      %v1178 = vunpack.c.l.b16 %v437
      %v1179 = vunpack.c.h.b16 %v437
      %v1180 = vunpack.c.l.b16 %v438
      %v1181 = vunpack.c.h.b16 %v438
      %v1182 = vunpack.c.l.b16 %v439
      %v1183 = vunpack.c.h.b16 %v439
      %v1184 = vunpack.c.l.b16 %v440
      %v1185 = vunpack.c.h.b16 %v440
      %v1186 = vunpack.c.l.b16 %v441
      %v1187 = vunpack.c.h.b16 %v441
      %v1188 = vunpack.c.l.b16 %v442
      %v1189 = vunpack.c.h.b16 %v442
      %v1190 = vunpack.c.l.b16 %v443
      %v1191 = vunpack.c.h.b16 %v443
      %v1192 = vunpack.c.l.b16 %v444
      %v1193 = vunpack.c.h.b16 %v444
      %v1194 = vunpack.c.l.b16 %v445
      %v1195 = vunpack.c.h.b16 %v445
      %v1196 = vunpack.c.l.b16 %v446
      %v1197 = vunpack.c.h.b16 %v446
      %v1198 = vunpack.c.l.b16 %v447
      %v1199 = vunpack.c.h.b16 %v447
      %v1200 = vunpack.c.l.b16 %v448
      %v1201 = vunpack.c.h.b16 %v448
      %v1202 = vunpack.c.l.b16 %v449
      %v1203 = vunpack.c.h.b16 %v449
      %v1204 = vunpack.c.l.b16 %v450
      %v1205 = vunpack.c.h.b16 %v450
      %v1206 = vunpack.c.l.b16 %v451
      %v1207 = vunpack.c.h.b16 %v451
      %v1208 = vunpack.c.l.b16 %v452
      %v1209 = vunpack.c.h.b16 %v452
      %v1210 = vunpack.c.l.b16 %v453
      %v1211 = vunpack.c.h.b16 %v453
      %v1212 = vunpack.c.l.b16 %v454
      %v1213 = vunpack.c.h.b16 %v454
      %v1214 = vunpack.c.l.b16 %v455
      %v1215 = vunpack.c.h.b16 %v455
      %v1216 = vunpack.c.l.b16 %v456
      %v1217 = vunpack.c.h.b16 %v456
      %v1218 = vunpack.c.l.b16 %v457
      %v1219 = vunpack.c.h.b16 %v457
      %v1220 = vunpack.c.l.b16 %v458
      %v1221 = vunpack.c.h.b16 %v458
      %v1222 = vunpack.c.l.b16 %v459
      %v1223 = vunpack.c.h.b16 %v459
      %v1224 = vunpack.c.l.b16 %v460
      %v1225 = vunpack.c.h.b16 %v460
      %v1226 = vunpack.c.l.b16 %v461
      %v1227 = vunpack.c.h.b16 %v461
      %v1228 = vunpack.c.l.b16 %v462
      %v1229 = vunpack.c.h.b16 %v462
      %v1230 = vunpack.c.l.b16 %v463
      %v1231 = vunpack.c.h.b16 %v463
      %v1232 = vunpack.c.l.b16 %v464
      %v1233 = vunpack.c.h.b16 %v464
      %v1234 = vunpack.c.l.b16 %v465
      %v1235 = vunpack.c.h.b16 %v465
      %v1236 = vunpack.c.l.b16 %v466
      %v1237 = vunpack.c.h.b16 %v466
      %v1238 = vunpack.c.l.b16 %v467
      %v1239 = vunpack.c.h.b16 %v467
      %v1240 = vunpack.c.l.b16 %v468
      %v1241 = vunpack.c.h.b16 %v468
      %v1242 = vunpack.c.l.b16 %v469
      %v1243 = vunpack.c.h.b16 %v469
      %v1244 = vunpack.c.l.b16 %v470
      %v1245 = vunpack.c.h.b16 %v470
      %v1246 = vunpack.c.l.b16 %v471
      %v1247 = vunpack.c.h.b16 %v471
      %v1248 = vunpack.c.l.b16 %v472
      %v1249 = vunpack.c.h.b16 %v472
      %v1250 = vunpack.c.l.b16 %v473
      %v1251 = vunpack.c.h.b16 %v473
      %v1252 = vunpack.c.l.b16 %v474
      %v1253 = vunpack.c.h.b16 %v474
      %v1254 = vunpack.c.l.b16 %v475
      %v1255 = vunpack.c.h.b16 %v475
      %v1256 = vunpack.c.l.b16 %v476
      %v1257 = vunpack.c.h.b16 %v476
      %v1258 = vunpack.c.l.b16 %v477
      %v1259 = vunpack.c.h.b16 %v477
      %v1260 = vunpack.c.l.b16 %v478
      %v1261 = vunpack.c.h.b16 %v478
      %v1262 = vunpack.c.l.b16 %v479
      %v1263 = vunpack.c.h.b16 %v479
      %v1264 = vunpack.c.l.b16 %v480
      %v1265 = vunpack.c.h.b16 %v480
      %v1266 = vunpack.c.l.b16 %v481
      %v1267 = vunpack.c.h.b16 %v481
      %v1268 = vpack.c.b16 %v760, %v756
      %v1269 = vpack.c.b16 %v761, %v757
      %v1270 = vpack.c.b16 %v762, %v758
      %v1271 = vpack.c.b16 %v763, %v759
      %v1272 = vpack.c.b16 %v768, %v764
      %v1273 = vpack.c.b16 %v769, %v765
      %v1274 = vpack.c.b16 %v770, %v766
      %v1275 = vpack.c.b16 %v771, %v767
      %v1276 = vpack.c.b16 %v776, %v772
      %v1277 = vpack.c.b16 %v777, %v773
      %v1278 = vpack.c.b16 %v778, %v774
      %v1279 = vpack.c.b16 %v779, %v775
      %v1280 = vpack.c.b16 %v784, %v780
      %v1281 = vpack.c.b16 %v785, %v781
      %v1282 = vpack.c.b16 %v786, %v782
      %v1283 = vpack.c.b16 %v787, %v783
      %v1284 = vpack.c.b16 %v792, %v788
      %v1285 = vpack.c.b16 %v793, %v789
      %v1286 = vpack.c.b16 %v794, %v790
      %v1287 = vpack.c.b16 %v795, %v791
      %v1288 = vpack.c.b16 %v800, %v796
      %v1289 = vpack.c.b16 %v801, %v797
      %v1290 = vpack.c.b16 %v802, %v798
      %v1291 = vpack.c.b16 %v803, %v799
      %v1292 = vpack.c.b16 %v808, %v804
      %v1293 = vpack.c.b16 %v809, %v805
      %v1294 = vpack.c.b16 %v810, %v806
      %v1295 = vpack.c.b16 %v811, %v807
      %v1296 = vpack.c.b16 %v816, %v812
      %v1297 = vpack.c.b16 %v817, %v813
      %v1298 = vpack.c.b16 %v818, %v814
      %v1299 = vpack.c.b16 %v819, %v815
      %v1300 = vpack.c.b16 %v824, %v820
      %v1301 = vpack.c.b16 %v825, %v821
      %v1302 = vpack.c.b16 %v826, %v822
      %v1303 = vpack.c.b16 %v827, %v823
      %v1304 = vpack.c.b16 %v832, %v828
      %v1305 = vpack.c.b16 %v833, %v829
      %v1306 = vpack.c.b16 %v834, %v830
      %v1307 = vpack.c.b16 %v835, %v831
      %v1308 = vpack.c.b16 %v840, %v836
      %v1309 = vpack.c.b16 %v841, %v837
      %v1310 = vpack.c.b16 %v842, %v838
      %v1311 = vpack.c.b16 %v843, %v839
      %v1312 = vpack.c.b16 %v848, %v844
      %v1313 = vpack.c.b16 %v849, %v845
      %v1314 = vpack.c.b16 %v850, %v846
      %v1315 = vpack.c.b16 %v851, %v847
      %v1316 = vpack.c.b16 %v856, %v852
      %v1317 = vpack.c.b16 %v857, %v853
      %v1318 = vpack.c.b16 %v858, %v854
      %v1319 = vpack.c.b16 %v859, %v855
      %v1320 = vpack.c.b16 %v864, %v860
      %v1321 = vpack.c.b16 %v865, %v861
      %v1322 = vpack.c.b16 %v866, %v862
      %v1323 = vpack.c.b16 %v867, %v863
      %v1324 = vpack.c.b16 %v872, %v868
      %v1325 = vpack.c.b16 %v873, %v869
      %v1326 = vpack.c.b16 %v874, %v870
      %v1327 = vpack.c.b16 %v875, %v871
      %v1328 = vpack.c.b16 %v880, %v876
      %v1329 = vpack.c.b16 %v881, %v877
      %v1330 = vpack.c.b16 %v882, %v878
      %v1331 = vpack.c.b16 %v883, %v879
      %v1332 = vpack.c.b16 %v888, %v884
      %v1333 = vpack.c.b16 %v889, %v885
      %v1334 = vpack.c.b16 %v890, %v886
      %v1335 = vpack.c.b16 %v891, %v887
      %v1336 = vpack.c.b16 %v896, %v892
      %v1337 = vpack.c.b16 %v897, %v893
      %v1338 = vpack.c.b16 %v898, %v894
      %v1339 = vpack.c.b16 %v899, %v895
      %v1340 = vpack.c.b16 %v904, %v900
      %v1341 = vpack.c.b16 %v905, %v901
      %v1342 = vpack.c.b16 %v906, %v902
      %v1343 = vpack.c.b16 %v907, %v903
      %v1344 = vpack.c.b16 %v912, %v908
      %v1345 = vpack.c.b16 %v913, %v909
      %v1346 = vpack.c.b16 %v914, %v910
      %v1347 = vpack.c.b16 %v915, %v911
      %v1348 = vpack.c.b16 %v920, %v916
      %v1349 = vpack.c.b16 %v921, %v917
      %v1350 = vpack.c.b16 %v922, %v918
      %v1351 = vpack.c.b16 %v923, %v919
      %v1352 = vpack.c.b16 %v928, %v924
      %v1353 = vpack.c.b16 %v929, %v925
      %v1354 = vpack.c.b16 %v930, %v926
      %v1355 = vpack.c.b16 %v931, %v927
      %v1356 = vpack.c.b16 %v936, %v932
      %v1357 = vpack.c.b16 %v937, %v933
      %v1358 = vpack.c.b16 %v938, %v934
      %v1359 = vpack.c.b16 %v939, %v935
      %v1360 = vpack.c.b16 %v944, %v940
      %v1361 = vpack.c.b16 %v945, %v941
      %v1362 = vpack.c.b16 %v946, %v942
      %v1363 = vpack.c.b16 %v947, %v943
      %v1364 = vpack.c.b16 %v952, %v948
      %v1365 = vpack.c.b16 %v953, %v949
      %v1366 = vpack.c.b16 %v954, %v950
      %v1367 = vpack.c.b16 %v955, %v951
      %v1368 = vpack.c.b16 %v960, %v956
      %v1369 = vpack.c.b16 %v961, %v957
      %v1370 = vpack.c.b16 %v962, %v958
      %v1371 = vpack.c.b16 %v963, %v959
      %v1372 = vpack.c.b16 %v968, %v964
      %v1373 = vpack.c.b16 %v969, %v965
      %v1374 = vpack.c.b16 %v970, %v966
      %v1375 = vpack.c.b16 %v971, %v967
      %v1376 = vpack.c.b16 %v976, %v972
      %v1377 = vpack.c.b16 %v977, %v973
      %v1378 = vpack.c.b16 %v978, %v974
      %v1379 = vpack.c.b16 %v979, %v975
      %v1380 = vpack.c.b16 %v984, %v980
      %v1381 = vpack.c.b16 %v985, %v981
      %v1382 = vpack.c.b16 %v986, %v982
      %v1383 = vpack.c.b16 %v987, %v983
      %v1384 = vpack.c.b16 %v992, %v988
      %v1385 = vpack.c.b16 %v993, %v989
      %v1386 = vpack.c.b16 %v994, %v990
      %v1387 = vpack.c.b16 %v995, %v991
      %v1388 = vpack.c.b16 %v1000, %v996
      %v1389 = vpack.c.b16 %v1001, %v997
      %v1390 = vpack.c.b16 %v1002, %v998
      %v1391 = vpack.c.b16 %v1003, %v999
      %v1392 = vpack.c.b16 %v1008, %v1004
      %v1393 = vpack.c.b16 %v1009, %v1005
      %v1394 = vpack.c.b16 %v1010, %v1006
      %v1395 = vpack.c.b16 %v1011, %v1007
      %v1396 = vpack.c.b16 %v1016, %v1012
      %v1397 = vpack.c.b16 %v1017, %v1013
      %v1398 = vpack.c.b16 %v1018, %v1014
      %v1399 = vpack.c.b16 %v1019, %v1015
      %v1400 = vpack.c.b16 %v1024, %v1020
      %v1401 = vpack.c.b16 %v1025, %v1021
      %v1402 = vpack.c.b16 %v1026, %v1022
      %v1403 = vpack.c.b16 %v1027, %v1023
      %v1404 = vpack.c.b16 %v1032, %v1028
      %v1405 = vpack.c.b16 %v1033, %v1029
      %v1406 = vpack.c.b16 %v1034, %v1030
      %v1407 = vpack.c.b16 %v1035, %v1031
      %v1408 = vpack.c.b16 %v1040, %v1036
      %v1409 = vpack.c.b16 %v1041, %v1037
      %v1410 = vpack.c.b16 %v1042, %v1038
      %v1411 = vpack.c.b16 %v1043, %v1039
      %v1412 = vpack.c.b16 %v1048, %v1044
      %v1413 = vpack.c.b16 %v1049, %v1045
      %v1414 = vpack.c.b16 %v1050, %v1046
      %v1415 = vpack.c.b16 %v1051, %v1047
      %v1416 = vpack.c.b16 %v1056, %v1052
      %v1417 = vpack.c.b16 %v1057, %v1053
      %v1418 = vpack.c.b16 %v1058, %v1054
      %v1419 = vpack.c.b16 %v1059, %v1055
      %v1420 = vpack.c.b16 %v1064, %v1060
      %v1421 = vpack.c.b16 %v1065, %v1061
      %v1422 = vpack.c.b16 %v1066, %v1062
      %v1423 = vpack.c.b16 %v1067, %v1063
      %v1424 = vpack.c.b16 %v1072, %v1068
      %v1425 = vpack.c.b16 %v1073, %v1069
      %v1426 = vpack.c.b16 %v1074, %v1070
      %v1427 = vpack.c.b16 %v1075, %v1071
      %v1428 = vpack.c.b16 %v1080, %v1076
      %v1429 = vpack.c.b16 %v1081, %v1077
      %v1430 = vpack.c.b16 %v1082, %v1078
      %v1431 = vpack.c.b16 %v1083, %v1079
      %v1432 = vpack.c.b16 %v1088, %v1084
      %v1433 = vpack.c.b16 %v1089, %v1085
      %v1434 = vpack.c.b16 %v1090, %v1086
      %v1435 = vpack.c.b16 %v1091, %v1087
      %v1436 = vpack.c.b16 %v1096, %v1092
      %v1437 = vpack.c.b16 %v1097, %v1093
      %v1438 = vpack.c.b16 %v1098, %v1094
      %v1439 = vpack.c.b16 %v1099, %v1095
      %v1440 = vpack.c.b16 %v1104, %v1100
      %v1441 = vpack.c.b16 %v1105, %v1101
      %v1442 = vpack.c.b16 %v1106, %v1102
      %v1443 = vpack.c.b16 %v1107, %v1103
      %v1444 = vpack.c.b16 %v1112, %v1108
      %v1445 = vpack.c.b16 %v1113, %v1109
      %v1446 = vpack.c.b16 %v1114, %v1110
      %v1447 = vpack.c.b16 %v1115, %v1111
      %v1448 = vpack.c.b16 %v1120, %v1116
      %v1449 = vpack.c.b16 %v1121, %v1117
      %v1450 = vpack.c.b16 %v1122, %v1118
      %v1451 = vpack.c.b16 %v1123, %v1119
      %v1452 = vpack.c.b16 %v1128, %v1124
      %v1453 = vpack.c.b16 %v1129, %v1125
      %v1454 = vpack.c.b16 %v1130, %v1126
      %v1455 = vpack.c.b16 %v1131, %v1127
      %v1456 = vpack.c.b16 %v1136, %v1132
      %v1457 = vpack.c.b16 %v1137, %v1133
      %v1458 = vpack.c.b16 %v1138, %v1134
      %v1459 = vpack.c.b16 %v1139, %v1135
      %v1460 = vpack.c.b16 %v1144, %v1140
      %v1461 = vpack.c.b16 %v1145, %v1141
      %v1462 = vpack.c.b16 %v1146, %v1142
      %v1463 = vpack.c.b16 %v1147, %v1143
      %v1464 = vpack.c.b16 %v1152, %v1148
      %v1465 = vpack.c.b16 %v1153, %v1149
      %v1466 = vpack.c.b16 %v1154, %v1150
      %v1467 = vpack.c.b16 %v1155, %v1151
      %v1468 = vpack.c.b16 %v1160, %v1156
      %v1469 = vpack.c.b16 %v1161, %v1157
      %v1470 = vpack.c.b16 %v1162, %v1158
      %v1471 = vpack.c.b16 %v1163, %v1159
      %v1472 = vpack.c.b16 %v1168, %v1164
      %v1473 = vpack.c.b16 %v1169, %v1165
      %v1474 = vpack.c.b16 %v1170, %v1166
      %v1475 = vpack.c.b16 %v1171, %v1167
      %v1476 = vpack.c.b16 %v1176, %v1172
      %v1477 = vpack.c.b16 %v1177, %v1173
      %v1478 = vpack.c.b16 %v1178, %v1174
      %v1479 = vpack.c.b16 %v1179, %v1175
      %v1480 = vpack.c.b16 %v1184, %v1180
      %v1481 = vpack.c.b16 %v1185, %v1181
      %v1482 = vpack.c.b16 %v1186, %v1182
      %v1483 = vpack.c.b16 %v1187, %v1183
      %v1484 = vpack.c.b16 %v1192, %v1188
      %v1485 = vpack.c.b16 %v1193, %v1189
      %v1486 = vpack.c.b16 %v1194, %v1190
      %v1487 = vpack.c.b16 %v1195, %v1191
      %v1488 = vpack.c.b16 %v1200, %v1196
      %v1489 = vpack.c.b16 %v1201, %v1197
      %v1490 = vpack.c.b16 %v1202, %v1198
      %v1491 = vpack.c.b16 %v1203, %v1199
      %v1492 = vpack.c.b16 %v1208, %v1204
      %v1493 = vpack.c.b16 %v1209, %v1205
      %v1494 = vpack.c.b16 %v1210, %v1206
      %v1495 = vpack.c.b16 %v1211, %v1207
      %v1496 = vpack.c.b16 %v1216, %v1212
      %v1497 = vpack.c.b16 %v1217, %v1213
      %v1498 = vpack.c.b16 %v1218, %v1214
      %v1499 = vpack.c.b16 %v1219, %v1215
      %v1500 = vpack.c.b16 %v1224, %v1220
      %v1501 = vpack.c.b16 %v1225, %v1221
      %v1502 = vpack.c.b16 %v1226, %v1222
      %v1503 = vpack.c.b16 %v1227, %v1223
      %v1504 = vpack.c.b16 %v1232, %v1228
      %v1505 = vpack.c.b16 %v1233, %v1229
      %v1506 = vpack.c.b16 %v1234, %v1230
      %v1507 = vpack.c.b16 %v1235, %v1231
      %v1508 = vpack.c.b16 %v1240, %v1236
      %v1509 = vpack.c.b16 %v1241, %v1237
      %v1510 = vpack.c.b16 %v1242, %v1238
      %v1511 = vpack.c.b16 %v1243, %v1239
      %v1512 = vpack.c.b16 %v1248, %v1244
      %v1513 = vpack.c.b16 %v1249, %v1245
      %v1514 = vpack.c.b16 %v1250, %v1246
      %v1515 = vpack.c.b16 %v1251, %v1247
      %v1516 = vpack.c.b16 %v1256, %v1252
      %v1517 = vpack.c.b16 %v1257, %v1253
      %v1518 = vpack.c.b16 %v1258, %v1254
      %v1519 = vpack.c.b16 %v1259, %v1255
      %v1520 = vpack.c.b16 %v1264, %v1260
      %v1521 = vpack.c.b16 %v1265, %v1261
      %v1522 = vpack.c.b16 %v1266, %v1262
      %v1523 = vpack.c.b16 %v1267, %v1263
      %1780 = vmatpush.bf16.msra.mxu0 %v1296
      %1781 = vmatpush.bf16.msra.mxu0 %v1292
      %1782 = vmatpush.bf16.msra.mxu0 %v1288
      %1783 = vmatpush.bf16.msra.mxu0 %v1284
      %1784 = vmatpush.bf16.msra.mxu0 %v1280
      %1785 = vmatpush.bf16.msra.mxu0 %v1276
      %1786 = vmatpush.bf16.msra.mxu0 %v1272
      %1787 = vmatpush.bf16.msra.mxu0 %v1268
      %1788 = vmatmul.bf16.gmra.mxu0 %v484
      %v1789 = vpop.f32.mrf.mxu0
      %v1790 = vadd.f32 0.0, %v1789
      %v1791 = vpop.f32.mrf.mxu0
      %1792 = vdwg.mxu0
      %1793 = vmatpush.bf16.msra.mxu0 %v1328
      %1794 = vmatpush.bf16.msra.mxu0 %v1324
      %1795 = vmatpush.bf16.msra.mxu0 %v1320
      %1796 = vmatpush.bf16.msra.mxu0 %v1316
      %1797 = vmatpush.bf16.msra.mxu0 %v1312
      %1798 = vmatpush.bf16.msra.mxu0 %v1308
      %1799 = vmatpush.bf16.msra.mxu0 %v1304
      %1800 = vmatpush.bf16.msra.mxu0 %v1300
      %1801 = vmatmul.bf16.gmra.mxu0 %v485
      %v1802 = vpop.f32.mrf.mxu0
      %v1803 = vadd.f32 %v1790, %v1802
      %v1804 = vpop.f32.mrf.mxu0
      %1805 = vdwg.mxu0
      %1806 = vmatpush.bf16.msra.mxu0 %v1360
      %1807 = vmatpush.bf16.msra.mxu0 %v1356
      %1808 = vmatpush.bf16.msra.mxu0 %v1352
      %1809 = vmatpush.bf16.msra.mxu0 %v1348
      %1810 = vmatpush.bf16.msra.mxu0 %v1344
      %1811 = vmatpush.bf16.msra.mxu0 %v1340
      %1812 = vmatpush.bf16.msra.mxu0 %v1336
      %1813 = vmatpush.bf16.msra.mxu0 %v1332
      %1814 = vmatmul.bf16.gmra.mxu0 %v486
      %v1815 = vpop.f32.mrf.mxu0
      %v1816 = vadd.f32 %v1803, %v1815
      %v1817 = vpop.f32.mrf.mxu0
      %1818 = vdwg.mxu0
      %1819 = vmatpush.bf16.msra.mxu0 %v1392
      %1820 = vmatpush.bf16.msra.mxu0 %v1388
      %1821 = vmatpush.bf16.msra.mxu0 %v1384
      %1822 = vmatpush.bf16.msra.mxu0 %v1380
      %1823 = vmatpush.bf16.msra.mxu0 %v1376
      %1824 = vmatpush.bf16.msra.mxu0 %v1372
      %1825 = vmatpush.bf16.msra.mxu0 %v1368
      %1826 = vmatpush.bf16.msra.mxu0 %v1364
      %1827 = vmatmul.bf16.gmra.mxu0 %v487
      %v1828 = vpop.f32.mrf.mxu0
      %v1829 = vadd.f32 %v1816, %v1828
      %v1830 = vpop.f32.mrf.mxu0
      %1831 = vdwg.mxu0
      %1832 = vmatpush.bf16.msra.mxu0 %v1424
      %1833 = vmatpush.bf16.msra.mxu0 %v1420
      %1834 = vmatpush.bf16.msra.mxu0 %v1416
      %1835 = vmatpush.bf16.msra.mxu0 %v1412
      %1836 = vmatpush.bf16.msra.mxu0 %v1408
      %1837 = vmatpush.bf16.msra.mxu0 %v1404
      %1838 = vmatpush.bf16.msra.mxu0 %v1400
      %1839 = vmatpush.bf16.msra.mxu0 %v1396
      %1840 = vmatmul.bf16.gmra.mxu0 %v488
      %v1841 = vpop.f32.mrf.mxu0
      %v1842 = vadd.f32 %v1829, %v1841
      %v1843 = vpop.f32.mrf.mxu0
      %1844 = vdwg.mxu0
      %1845 = vmatpush.bf16.msra.mxu0 %v1456
      %1846 = vmatpush.bf16.msra.mxu0 %v1452
      %1847 = vmatpush.bf16.msra.mxu0 %v1448
      %1848 = vmatpush.bf16.msra.mxu0 %v1444
      %1849 = vmatpush.bf16.msra.mxu0 %v1440
      %1850 = vmatpush.bf16.msra.mxu0 %v1436
      %1851 = vmatpush.bf16.msra.mxu0 %v1432
      %1852 = vmatpush.bf16.msra.mxu0 %v1428
      %1853 = vmatmul.bf16.gmra.mxu0 %v489
      %v1854 = vpop.f32.mrf.mxu0
      %v1855 = vadd.f32 %v1842, %v1854
      %v1856 = vpop.f32.mrf.mxu0
      %1857 = vdwg.mxu0
      %1858 = vmatpush.bf16.msra.mxu0 %v1488
      %1859 = vmatpush.bf16.msra.mxu0 %v1484
      %1860 = vmatpush.bf16.msra.mxu0 %v1480
      %1861 = vmatpush.bf16.msra.mxu0 %v1476
      %1862 = vmatpush.bf16.msra.mxu0 %v1472
      %1863 = vmatpush.bf16.msra.mxu0 %v1468
      %1864 = vmatpush.bf16.msra.mxu0 %v1464
      %1865 = vmatpush.bf16.msra.mxu0 %v1460
      %1866 = vmatmul.bf16.gmra.mxu0 %v490
      %v1867 = vpop.f32.mrf.mxu0
      %v1868 = vadd.f32 %v1855, %v1867
      %v1869 = vpop.f32.mrf.mxu0
      %1870 = vdwg.mxu0
      %1871 = vmatpush.bf16.msra.mxu0 %v1520
      %1872 = vmatpush.bf16.msra.mxu0 %v1516
      %1873 = vmatpush.bf16.msra.mxu0 %v1512
      %1874 = vmatpush.bf16.msra.mxu0 %v1508
      %1875 = vmatpush.bf16.msra.mxu0 %v1504
      %1876 = vmatpush.bf16.msra.mxu0 %v1500
      %1877 = vmatpush.bf16.msra.mxu0 %v1496
      %1878 = vmatpush.bf16.msra.mxu0 %v1492
      %1879 = vmatmul.bf16.gmra.mxu0 %v491
      %v1880 = vpop.f32.mrf.mxu0
      %v1881 = vadd.f32 %v1868, %v1880
      %v1882 = vpop.f32.mrf.mxu0
      %1883 = vdwg.mxu0
      %1884 = vmatpush.bf16.msra.mxu0 %v1297
      %1885 = vmatpush.bf16.msra.mxu0 %v1293
      %1886 = vmatpush.bf16.msra.mxu0 %v1289
      %1887 = vmatpush.bf16.msra.mxu0 %v1285
      %1888 = vmatpush.bf16.msra.mxu0 %v1281
      %1889 = vmatpush.bf16.msra.mxu0 %v1277
      %1890 = vmatpush.bf16.msra.mxu0 %v1273
      %1891 = vmatpush.bf16.msra.mxu0 %v1269
      %1892 = vmatmul.bf16.gmra.mxu0 %v484
      %v1893 = vpop.f32.mrf.mxu0
      %v1894 = vadd.f32 0.0, %v1893
      %v1895 = vpop.f32.mrf.mxu0
      %1896 = vdwg.mxu0
      %1897 = vmatpush.bf16.msra.mxu0 %v1329
      %1898 = vmatpush.bf16.msra.mxu0 %v1325
      %1899 = vmatpush.bf16.msra.mxu0 %v1321
      %1900 = vmatpush.bf16.msra.mxu0 %v1317
      %1901 = vmatpush.bf16.msra.mxu0 %v1313
      %1902 = vmatpush.bf16.msra.mxu0 %v1309
      %1903 = vmatpush.bf16.msra.mxu0 %v1305
      %1904 = vmatpush.bf16.msra.mxu0 %v1301
      %1905 = vmatmul.bf16.gmra.mxu0 %v485
      %v1906 = vpop.f32.mrf.mxu0
      %v1907 = vadd.f32 %v1894, %v1906
      %v1908 = vpop.f32.mrf.mxu0
      %1909 = vdwg.mxu0
      %1910 = vmatpush.bf16.msra.mxu0 %v1361
      %1911 = vmatpush.bf16.msra.mxu0 %v1357
      %1912 = vmatpush.bf16.msra.mxu0 %v1353
      %1913 = vmatpush.bf16.msra.mxu0 %v1349
      %1914 = vmatpush.bf16.msra.mxu0 %v1345
      %1915 = vmatpush.bf16.msra.mxu0 %v1341
      %1916 = vmatpush.bf16.msra.mxu0 %v1337
      %1917 = vmatpush.bf16.msra.mxu0 %v1333
      %1918 = vmatmul.bf16.gmra.mxu0 %v486
      %v1919 = vpop.f32.mrf.mxu0
      %v1920 = vadd.f32 %v1907, %v1919
      %v1921 = vpop.f32.mrf.mxu0
      %1922 = vdwg.mxu0
      %1923 = vmatpush.bf16.msra.mxu0 %v1393
      %1924 = vmatpush.bf16.msra.mxu0 %v1389
      %1925 = vmatpush.bf16.msra.mxu0 %v1385
      %1926 = vmatpush.bf16.msra.mxu0 %v1381
      %1927 = vmatpush.bf16.msra.mxu0 %v1377
      %1928 = vmatpush.bf16.msra.mxu0 %v1373
      %1929 = vmatpush.bf16.msra.mxu0 %v1369
      %1930 = vmatpush.bf16.msra.mxu0 %v1365
      %1931 = vmatmul.bf16.gmra.mxu0 %v487
      %v1932 = vpop.f32.mrf.mxu0
      %v1933 = vadd.f32 %v1920, %v1932
      %v1934 = vpop.f32.mrf.mxu0
      %1935 = vdwg.mxu0
      %1936 = vmatpush.bf16.msra.mxu0 %v1425
      %1937 = vmatpush.bf16.msra.mxu0 %v1421
      %1938 = vmatpush.bf16.msra.mxu0 %v1417
      %1939 = vmatpush.bf16.msra.mxu0 %v1413
      %1940 = vmatpush.bf16.msra.mxu0 %v1409
      %1941 = vmatpush.bf16.msra.mxu0 %v1405
      %1942 = vmatpush.bf16.msra.mxu0 %v1401
      %1943 = vmatpush.bf16.msra.mxu0 %v1397
      %1944 = vmatmul.bf16.gmra.mxu0 %v488
      %v1945 = vpop.f32.mrf.mxu0
      %v1946 = vadd.f32 %v1933, %v1945
      %v1947 = vpop.f32.mrf.mxu0
      %1948 = vdwg.mxu0
      %1949 = vmatpush.bf16.msra.mxu0 %v1457
      %1950 = vmatpush.bf16.msra.mxu0 %v1453
      %1951 = vmatpush.bf16.msra.mxu0 %v1449
      %1952 = vmatpush.bf16.msra.mxu0 %v1445
      %1953 = vmatpush.bf16.msra.mxu0 %v1441
      %1954 = vmatpush.bf16.msra.mxu0 %v1437
      %1955 = vmatpush.bf16.msra.mxu0 %v1433
      %1956 = vmatpush.bf16.msra.mxu0 %v1429
      %1957 = vmatmul.bf16.gmra.mxu0 %v489
      %v1958 = vpop.f32.mrf.mxu0
      %v1959 = vadd.f32 %v1946, %v1958
      %v1960 = vpop.f32.mrf.mxu0
      %1961 = vdwg.mxu0
      %1962 = vmatpush.bf16.msra.mxu0 %v1489
      %1963 = vmatpush.bf16.msra.mxu0 %v1485
      %1964 = vmatpush.bf16.msra.mxu0 %v1481
      %1965 = vmatpush.bf16.msra.mxu0 %v1477
      %1966 = vmatpush.bf16.msra.mxu0 %v1473
      %1967 = vmatpush.bf16.msra.mxu0 %v1469
      %1968 = vmatpush.bf16.msra.mxu0 %v1465
      %1969 = vmatpush.bf16.msra.mxu0 %v1461
      %1970 = vmatmul.bf16.gmra.mxu0 %v490
      %v1971 = vpop.f32.mrf.mxu0
      %v1972 = vadd.f32 %v1959, %v1971
      %v1973 = vpop.f32.mrf.mxu0
      %1974 = vdwg.mxu0
      %1975 = vmatpush.bf16.msra.mxu0 %v1521
      %1976 = vmatpush.bf16.msra.mxu0 %v1517
      %1977 = vmatpush.bf16.msra.mxu0 %v1513
      %1978 = vmatpush.bf16.msra.mxu0 %v1509
      %1979 = vmatpush.bf16.msra.mxu0 %v1505
      %1980 = vmatpush.bf16.msra.mxu0 %v1501
      %1981 = vmatpush.bf16.msra.mxu0 %v1497
      %1982 = vmatpush.bf16.msra.mxu0 %v1493
      %1983 = vmatmul.bf16.gmra.mxu0 %v491
      %v1984 = vpop.f32.mrf.mxu0
      %v1985 = vadd.f32 %v1972, %v1984
      %v1986 = vpop.f32.mrf.mxu0
      %1987 = vdwg.mxu0
      %1988 = vmatpush.bf16.msra.mxu0 %v1298
      %1989 = vmatpush.bf16.msra.mxu0 %v1294
      %1990 = vmatpush.bf16.msra.mxu0 %v1290
      %1991 = vmatpush.bf16.msra.mxu0 %v1286
      %1992 = vmatpush.bf16.msra.mxu0 %v1282
      %1993 = vmatpush.bf16.msra.mxu0 %v1278
      %1994 = vmatpush.bf16.msra.mxu0 %v1274
      %1995 = vmatpush.bf16.msra.mxu0 %v1270
      %1996 = vmatmul.bf16.gmra.mxu0 %v484
      %v1997 = vpop.f32.mrf.mxu0
      %v1998 = vadd.f32 0.0, %v1997
      %v1999 = vpop.f32.mrf.mxu0
      %2000 = vdwg.mxu0
      %2001 = vmatpush.bf16.msra.mxu0 %v1330
      %2002 = vmatpush.bf16.msra.mxu0 %v1326
      %2003 = vmatpush.bf16.msra.mxu0 %v1322
      %2004 = vmatpush.bf16.msra.mxu0 %v1318
      %2005 = vmatpush.bf16.msra.mxu0 %v1314
      %2006 = vmatpush.bf16.msra.mxu0 %v1310
      %2007 = vmatpush.bf16.msra.mxu0 %v1306
      %2008 = vmatpush.bf16.msra.mxu0 %v1302
      %2009 = vmatmul.bf16.gmra.mxu0 %v485
      %v2010 = vpop.f32.mrf.mxu0
      %v2011 = vadd.f32 %v1998, %v2010
      %v2012 = vpop.f32.mrf.mxu0
      %2013 = vdwg.mxu0
      %2014 = vmatpush.bf16.msra.mxu0 %v1362
      %2015 = vmatpush.bf16.msra.mxu0 %v1358
      %2016 = vmatpush.bf16.msra.mxu0 %v1354
      %2017 = vmatpush.bf16.msra.mxu0 %v1350
      %2018 = vmatpush.bf16.msra.mxu0 %v1346
      %2019 = vmatpush.bf16.msra.mxu0 %v1342
      %2020 = vmatpush.bf16.msra.mxu0 %v1338
      %2021 = vmatpush.bf16.msra.mxu0 %v1334
      %2022 = vmatmul.bf16.gmra.mxu0 %v486
      %v2023 = vpop.f32.mrf.mxu0
      %v2024 = vadd.f32 %v2011, %v2023
      %v2025 = vpop.f32.mrf.mxu0
      %2026 = vdwg.mxu0
      %2027 = vmatpush.bf16.msra.mxu0 %v1394
      %2028 = vmatpush.bf16.msra.mxu0 %v1390
      %2029 = vmatpush.bf16.msra.mxu0 %v1386
      %2030 = vmatpush.bf16.msra.mxu0 %v1382
      %2031 = vmatpush.bf16.msra.mxu0 %v1378
      %2032 = vmatpush.bf16.msra.mxu0 %v1374
      %2033 = vmatpush.bf16.msra.mxu0 %v1370
      %2034 = vmatpush.bf16.msra.mxu0 %v1366
      %2035 = vmatmul.bf16.gmra.mxu0 %v487
      %v2036 = vpop.f32.mrf.mxu0
      %v2037 = vadd.f32 %v2024, %v2036
      %v2038 = vpop.f32.mrf.mxu0
      %2039 = vdwg.mxu0
      %2040 = vmatpush.bf16.msra.mxu0 %v1426
      %2041 = vmatpush.bf16.msra.mxu0 %v1422
      %2042 = vmatpush.bf16.msra.mxu0 %v1418
      %2043 = vmatpush.bf16.msra.mxu0 %v1414
      %2044 = vmatpush.bf16.msra.mxu0 %v1410
      %2045 = vmatpush.bf16.msra.mxu0 %v1406
      %2046 = vmatpush.bf16.msra.mxu0 %v1402
      %2047 = vmatpush.bf16.msra.mxu0 %v1398
      %2048 = vmatmul.bf16.gmra.mxu0 %v488
      %v2049 = vpop.f32.mrf.mxu0
      %v2050 = vadd.f32 %v2037, %v2049
      %v2051 = vpop.f32.mrf.mxu0
      %2052 = vdwg.mxu0
      %2053 = vmatpush.bf16.msra.mxu0 %v1458
      %2054 = vmatpush.bf16.msra.mxu0 %v1454
      %2055 = vmatpush.bf16.msra.mxu0 %v1450
      %2056 = vmatpush.bf16.msra.mxu0 %v1446
      %2057 = vmatpush.bf16.msra.mxu0 %v1442
      %2058 = vmatpush.bf16.msra.mxu0 %v1438
      %2059 = vmatpush.bf16.msra.mxu0 %v1434
      %2060 = vmatpush.bf16.msra.mxu0 %v1430
      %2061 = vmatmul.bf16.gmra.mxu0 %v489
      %v2062 = vpop.f32.mrf.mxu0
      %v2063 = vadd.f32 %v2050, %v2062
      %v2064 = vpop.f32.mrf.mxu0
      %2065 = vdwg.mxu0
      %2066 = vmatpush.bf16.msra.mxu0 %v1490
      %2067 = vmatpush.bf16.msra.mxu0 %v1486
      %2068 = vmatpush.bf16.msra.mxu0 %v1482
      %2069 = vmatpush.bf16.msra.mxu0 %v1478
      %2070 = vmatpush.bf16.msra.mxu0 %v1474
      %2071 = vmatpush.bf16.msra.mxu0 %v1470
      %2072 = vmatpush.bf16.msra.mxu0 %v1466
      %2073 = vmatpush.bf16.msra.mxu0 %v1462
      %2074 = vmatmul.bf16.gmra.mxu0 %v490
      %v2075 = vpop.f32.mrf.mxu0
      %v2076 = vadd.f32 %v2063, %v2075
      %v2077 = vpop.f32.mrf.mxu0
      %2078 = vdwg.mxu0
      %2079 = vmatpush.bf16.msra.mxu0 %v1522
      %2080 = vmatpush.bf16.msra.mxu0 %v1518
      %2081 = vmatpush.bf16.msra.mxu0 %v1514
      %2082 = vmatpush.bf16.msra.mxu0 %v1510
      %2083 = vmatpush.bf16.msra.mxu0 %v1506
      %2084 = vmatpush.bf16.msra.mxu0 %v1502
      %2085 = vmatpush.bf16.msra.mxu0 %v1498
      %2086 = vmatpush.bf16.msra.mxu0 %v1494
      %2087 = vmatmul.bf16.gmra.mxu0 %v491
      %v2088 = vpop.f32.mrf.mxu0
      %v2089 = vadd.f32 %v2076, %v2088
      %v2090 = vpop.f32.mrf.mxu0
      %2091 = vdwg.mxu0
      %2092 = vmatpush.bf16.msra.mxu0 %v1299
      %2093 = vmatpush.bf16.msra.mxu0 %v1295
      %2094 = vmatpush.bf16.msra.mxu0 %v1291
      %2095 = vmatpush.bf16.msra.mxu0 %v1287
      %2096 = vmatpush.bf16.msra.mxu0 %v1283
      %2097 = vmatpush.bf16.msra.mxu0 %v1279
      %2098 = vmatpush.bf16.msra.mxu0 %v1275
      %2099 = vmatpush.bf16.msra.mxu0 %v1271
      %2100 = vmatmul.bf16.gmra.mxu0 %v484
      %v2101 = vpop.f32.mrf.mxu0
      %v2102 = vadd.f32 0.0, %v2101
      %v2103 = vpop.f32.mrf.mxu0
      %2104 = vdwg.mxu0
      %2105 = vmatpush.bf16.msra.mxu0 %v1331
      %2106 = vmatpush.bf16.msra.mxu0 %v1327
      %2107 = vmatpush.bf16.msra.mxu0 %v1323
      %2108 = vmatpush.bf16.msra.mxu0 %v1319
      %2109 = vmatpush.bf16.msra.mxu0 %v1315
      %2110 = vmatpush.bf16.msra.mxu0 %v1311
      %2111 = vmatpush.bf16.msra.mxu0 %v1307
      %2112 = vmatpush.bf16.msra.mxu0 %v1303
      %2113 = vmatmul.bf16.gmra.mxu0 %v485
      %v2114 = vpop.f32.mrf.mxu0
      %v2115 = vadd.f32 %v2102, %v2114
      %v2116 = vpop.f32.mrf.mxu0
      %2117 = vdwg.mxu0
      %2118 = vmatpush.bf16.msra.mxu0 %v1363
      %2119 = vmatpush.bf16.msra.mxu0 %v1359
      %2120 = vmatpush.bf16.msra.mxu0 %v1355
      %2121 = vmatpush.bf16.msra.mxu0 %v1351
      %2122 = vmatpush.bf16.msra.mxu0 %v1347
      %2123 = vmatpush.bf16.msra.mxu0 %v1343
      %2124 = vmatpush.bf16.msra.mxu0 %v1339
      %2125 = vmatpush.bf16.msra.mxu0 %v1335
      %2126 = vmatmul.bf16.gmra.mxu0 %v486
      %v2127 = vpop.f32.mrf.mxu0
      %v2128 = vadd.f32 %v2115, %v2127
      %v2129 = vpop.f32.mrf.mxu0
      %2130 = vdwg.mxu0
      %2131 = vmatpush.bf16.msra.mxu0 %v1395
      %2132 = vmatpush.bf16.msra.mxu0 %v1391
      %2133 = vmatpush.bf16.msra.mxu0 %v1387
      %2134 = vmatpush.bf16.msra.mxu0 %v1383
      %2135 = vmatpush.bf16.msra.mxu0 %v1379
      %2136 = vmatpush.bf16.msra.mxu0 %v1375
      %2137 = vmatpush.bf16.msra.mxu0 %v1371
      %2138 = vmatpush.bf16.msra.mxu0 %v1367
      %2139 = vmatmul.bf16.gmra.mxu0 %v487
      %v2140 = vpop.f32.mrf.mxu0
      %v2141 = vadd.f32 %v2128, %v2140
      %v2142 = vpop.f32.mrf.mxu0
      %2143 = vdwg.mxu0
      %2144 = vmatpush.bf16.msra.mxu0 %v1427
      %2145 = vmatpush.bf16.msra.mxu0 %v1423
      %2146 = vmatpush.bf16.msra.mxu0 %v1419
      %2147 = vmatpush.bf16.msra.mxu0 %v1415
      %2148 = vmatpush.bf16.msra.mxu0 %v1411
      %2149 = vmatpush.bf16.msra.mxu0 %v1407
      %2150 = vmatpush.bf16.msra.mxu0 %v1403
      %2151 = vmatpush.bf16.msra.mxu0 %v1399
      %2152 = vmatmul.bf16.gmra.mxu0 %v488
      %v2153 = vpop.f32.mrf.mxu0
      %v2154 = vadd.f32 %v2141, %v2153
      %v2155 = vpop.f32.mrf.mxu0
      %2156 = vdwg.mxu0
      %2157 = vmatpush.bf16.msra.mxu0 %v1459
      %2158 = vmatpush.bf16.msra.mxu0 %v1455
      %2159 = vmatpush.bf16.msra.mxu0 %v1451
      %2160 = vmatpush.bf16.msra.mxu0 %v1447
      %2161 = vmatpush.bf16.msra.mxu0 %v1443
      %2162 = vmatpush.bf16.msra.mxu0 %v1439
      %2163 = vmatpush.bf16.msra.mxu0 %v1435
      %2164 = vmatpush.bf16.msra.mxu0 %v1431
      %2165 = vmatmul.bf16.gmra.mxu0 %v489
      %v2166 = vpop.f32.mrf.mxu0
      %v2167 = vadd.f32 %v2154, %v2166
      %v2168 = vpop.f32.mrf.mxu0
      %2169 = vdwg.mxu0
      %2170 = vmatpush.bf16.msra.mxu0 %v1491
      %2171 = vmatpush.bf16.msra.mxu0 %v1487
      %2172 = vmatpush.bf16.msra.mxu0 %v1483
      %2173 = vmatpush.bf16.msra.mxu0 %v1479
      %2174 = vmatpush.bf16.msra.mxu0 %v1475
      %2175 = vmatpush.bf16.msra.mxu0 %v1471
      %2176 = vmatpush.bf16.msra.mxu0 %v1467
      %2177 = vmatpush.bf16.msra.mxu0 %v1463
      %2178 = vmatmul.bf16.gmra.mxu0 %v490
      %v2179 = vpop.f32.mrf.mxu0
      %v2180 = vadd.f32 %v2167, %v2179
      %v2181 = vpop.f32.mrf.mxu0
      %2182 = vdwg.mxu0
      %2183 = vmatpush.bf16.msra.mxu0 %v1523
      %2184 = vmatpush.bf16.msra.mxu0 %v1519
      %2185 = vmatpush.bf16.msra.mxu0 %v1515
      %2186 = vmatpush.bf16.msra.mxu0 %v1511
      %2187 = vmatpush.bf16.msra.mxu0 %v1507
      %2188 = vmatpush.bf16.msra.mxu0 %v1503
      %2189 = vmatpush.bf16.msra.mxu0 %v1499
      %2190 = vmatpush.bf16.msra.mxu0 %v1495
      %2191 = vmatmul.bf16.gmra.mxu0 %v491
      %v2192 = vpop.f32.mrf.mxu0
      %v2193 = vadd.f32 %v2180, %v2192
      %v2194 = vpop.f32.mrf.mxu0
      %2195 = vdwg.mxu0
      %v2200 = vrot.slane %v1985, 6
      %v2201 = vrot.slane %v2089, 4
      %v2202 = vrot.slane %v2193, 2
      %vm2203 = vcmask 1041408
      %v2204 = vsel %vm2203, %v1881, %v2200
      %vm2205 = vcmask 1045508
      %v2206 = vsel %vm2205, %v2201, %v2202
      %vm2207 = vcmask 1043456
      %v2208 = vsel %vm2207, %v2204, %v2206
      %v2210 = vadd.f32 %v224, %v2208
      %2211 = vst [vmem:[#allocation2] sm:$0xff] %v2210
      %p2212 = scmp.eq.s32.totalorder %s19, 2
      // Predicated region
      $region37: #{mnist_cnn_forward.6} parent=31 // pred_check
        %p2213 = pneg %p2212
      $region38: #{mnist_cnn_forward.6} parent=31 // pred_check_branch
        %2215 = sbr.rel (%p2213) target = $region40
      $region39: #{mnist_cnn_forward.6} parent=31 // pred_region
        %v2216 = vld [vmem:[#allocation2] sm:$0xff]
        %v2217 = vld [vmem:[%s2] sm:$0xf]
        %v2219 = vperm.slane %v2217, 0
        %v2220 = vperm.slane %v2217, 1
        %v2221 = vperm.slane %v2217, 2
        %v2222 = vperm.slane %v2217, 3
        %v2223 = vrot.slane %v2220, 6
        %v2224 = vrot.slane %v2221, 4
        %v2225 = vrot.slane %v2222, 2
        %v2226 = vsel %vm2203, %v2219, %v2223
        %v2227 = vsel %vm2205, %v2224, %v2225
        %v2228 = vsel %vm2207, %v2226, %v2227
        %v2230 = vadd.f32 %v2216, %v2228
        %v2231 = vmax.f32 %v2230, 0.0
        %2233 = vst [vmem:[#allocation1] ss:$4 sm:$0xff] %v2231
        %v2234 = vld.sshfl [vmem:[#allocation1] sm:$0xff pattern:$0x73625140]
        %v2235 = vld.sshfl [vmem:[#allocation1 + $0x8] sm:$0xff pattern:$0x73625140]
        %v2236 = vld.sshfl [vmem:[#allocation1 + $0x10] sm:$0xff pattern:$0x73625140]
        %v2237 = vld.sshfl [vmem:[#allocation1 + $0x18] sm:$0xff pattern:$0x73625140]
        %v2242 = vpack.c.bf16 %v2235, %v2234
        %v2243 = vpack.c.bf16 %v2237, %v2236
        %v2246 = vrot.slane %v2242, 3
        %v2247 = vrot.slane %v2243, 6
        %v2248 = vrot.slane %v2243, 1
        %vm2249 = vcmask 1040384
        %v2252 = vsel %vm2249, %v2242, %v2246
        %vm2253 = vcmask 1042434
        %v2256 = vsel %vm2253, %v2247, %v2248
        %v2257 = vsel %vm2203, %v2252, %v2256
        %2259 = vst [vmem:[%s218] sm:$0xf] %v2257
      $region40: #{mnist_cnn_forward.6} parent=31 // pred_fallthru
        _
      %p2260 = scmp.lt.s32.totalorder %s18, 0
      %s2261 = scalar_select %p2260, %s18, 0
      %s2262 = smul.addr %s2261, 4
      %s2263 = scalar_lea.vmem %s3, %s2262
      // Predicated region
      $region41: #{mnist_cnn_forward.6} parent=31 // pred_check
        %p2264 = pneg %p119
      $region42: #{mnist_cnn_forward.6} parent=31 // pred_check_branch
        %2266 = sbr.rel (%p2264) target = $region44
      $region43: #{mnist_cnn_forward.6} parent=31 // pred_region
        _
      $region44: #{mnist_cnn_forward.6} parent=31 // pred_fallthru
        _
      // Predicated region
      $region45: #{mnist_cnn_forward.6} parent=31 // pred_check
        %p2267 = pneg %p119
      $region46: #{mnist_cnn_forward.6} parent=31 // pred_check_branch
        %2269 = sbr.rel (%p2267) target = $region48
      $region47: #{mnist_cnn_forward.6} parent=31 // pred_region
        %p2270 = scmp.lt.s32.totalorder %s18, 0
        %s2271 = scalar_select %p2270, %s18, 0
        %s2272 = smul.addr %s2271, 4
        %s2273 = scalar_lea.vmem %s3, %s2272
      $region48: #{mnist_cnn_forward.6} parent=31 // pred_fallthru
        _
    $region32: #{mnist_cnn_forward.6} parent=5 // pred_fallthru
      _
    %p2274 = scmp.le.s32.totalorder 2, %s9
    // Predicated region
    $region49: #{mnist_cnn_forward.6} parent=5 // pred_check
      %p2275 = pneg %p2274
    $region50: #{mnist_cnn_forward.6} parent=5 // pred_check_branch
      %2277 = sbr.rel (%p2275) target = $region52
    $region51: #{mnist_cnn_forward.6} parent=5 // pred_region
      %s2278 = ssub.s32 %s9, 2
    $region52: #{mnist_cnn_forward.6} parent=5 // pred_fallthru
      _
  $region6: #{mnist_cnn_forward.6} parent=0 // loop_footer
    %s13 = sadd.s32 1, %s9
  $region7: #{mnist_cnn_forward.6} parent=0 // loop_footer_branch
    %8 = sbr.rel target = $region3
  $region8: #{mnist_cnn_forward.6} parent=0 // loop_exit
    _

// kernel: mnist_cnn_forward.5
$region0: #{mnist_cnn_forward.5}
  #allocation0 [shape = 'u32[]', space=smem, size = 0x4, offset = 0x4, fixed_abs, tag = 'smem constant byte address 0x4 - core index']
  #allocation1 [shape = 'u32[72,128]{1,0:T(1,128)}', space=vmem, size = 0x9000, scoped, tag = 'internal scratch']
  %s0 = inlined_call_operand.vmem [shape: bf16[200,500], index: 0, kind: input, shape index: {}]
  %s1 = inlined_call_operand.vmem [shape: bf16[200,500], index: 1, kind: input, shape index: {}]
  %s2 = inlined_call_operand.vmem [shape: bf16[200,500], index: 2, kind: input, shape index: {}]
  %s3 = inlined_call_operand.vmem [shape: bf16[200,500], index: 3, kind: input, shape index: {}]
  %s4 = inlined_call_operand.vmem [shape: bf16[500,30], index: 4, kind: input, shape index: {}]
  %s5 = inlined_call_operand.vmem [shape: f32[1,30], index: 5, kind: input, shape index: {}]
  %s6 = inlined_call_operand.vmem [shape: bf16[200,30], index: 6, kind: output, shape index: {}]
  %s7 = sld [smem:[#allocation0]]
  $region34: #{mnist_cnn_forward.5} parent=0
    _
  %s9 = ssub.s32 1, %s7
  %s10 = scalar_select 0, %s9, %s7
  // Predicated region
  $region2: #{mnist_cnn_forward.5} parent=0 // pred_check
    _
  $region3: #{mnist_cnn_forward.5} parent=0 // pred_check_branch
    %12 = sbr.rel (0) target = $region5
  $region4: #{mnist_cnn_forward.5} parent=0 // pred_region
    _
  $region5: #{mnist_cnn_forward.5} parent=0 // pred_fallthru
    _
  // Predicated region
  $region6: #{mnist_cnn_forward.5} parent=0 // pred_check
    _
  $region7: #{mnist_cnn_forward.5} parent=0 // pred_check_branch
    %14 = sbr.rel (0) target = $region9
  $region8: #{mnist_cnn_forward.5} parent=0 // pred_region
    _
  $region9: #{mnist_cnn_forward.5} parent=0 // pred_fallthru
    _
  // Predicated region
  $region10: #{mnist_cnn_forward.5} parent=0 // pred_check
    _
  $region11: #{mnist_cnn_forward.5} parent=0 // pred_check_branch
    %16 = sbr.rel (0) target = $region13
  $region12: #{mnist_cnn_forward.5} parent=0 // pred_region
    _
  $region13: #{mnist_cnn_forward.5} parent=0 // pred_fallthru
    _
  // Predicated region
  $region14: #{mnist_cnn_forward.5} parent=0 // pred_check
    _
  $region15: #{mnist_cnn_forward.5} parent=0 // pred_check_branch
    %18 = sbr.rel (0) target = $region17
  $region16: #{mnist_cnn_forward.5} parent=0 // pred_region
    _
  $region17: #{mnist_cnn_forward.5} parent=0 // pred_fallthru
    _
  // Predicated region
  $region18: #{mnist_cnn_forward.5} parent=0 // pred_check
    _
  $region19: #{mnist_cnn_forward.5} parent=0 // pred_check_branch
    %20 = sbr.rel (0) target = $region21
  $region20: #{mnist_cnn_forward.5} parent=0 // pred_region
    _
  $region21: #{mnist_cnn_forward.5} parent=0 // pred_fallthru
    _
  // Predicated region
  $region22: #{mnist_cnn_forward.5} parent=0 // pred_check
    _
  $region23: #{mnist_cnn_forward.5} parent=0 // pred_check_branch
    %22 = sbr.rel (0) target = $region25
  $region24: #{mnist_cnn_forward.5} parent=0 // pred_region
    _
  $region25: #{mnist_cnn_forward.5} parent=0 // pred_fallthru
    _
  %v23 = vld [vmem:[%s4] sm:$0xf]
  %v24 = vld [vmem:[%s4 + $0x4] sm:$0xf]
  %v25 = vld [vmem:[%s4 + $0x8] sm:$0xf]
  %v26 = vld [vmem:[%s4 + $0xc] sm:$0xf]
  %v27 = vld [vmem:[%s4 + $0x10] sm:$0xf]
  %v28 = vld [vmem:[%s4 + $0x14] sm:$0xf]
  %v29 = vld [vmem:[%s4 + $0x18] sm:$0xf]
  %v30 = vld [vmem:[%s4 + $0x1c] sm:$0xf]
  %v31 = vld [vmem:[%s4 + $0x20] sm:$0xf]
  %v32 = vld [vmem:[%s4 + $0x24] sm:$0xf]
  %v33 = vld [vmem:[%s4 + $0x28] sm:$0xf]
  %v34 = vld [vmem:[%s4 + $0x2c] sm:$0xf]
  %v35 = vld [vmem:[%s4 + $0x30] sm:$0xf]
  %v36 = vld [vmem:[%s4 + $0x34] sm:$0xf]
  %v37 = vld [vmem:[%s4 + $0x38] sm:$0xf]
  %v38 = vld [vmem:[%s4 + $0x3c] sm:$0xf]
  %v39 = vld [vmem:[%s4 + $0x40] sm:$0xf]
  %v40 = vld [vmem:[%s4 + $0x44] sm:$0xf]
  %v41 = vld [vmem:[%s4 + $0x48] sm:$0xf]
  %v42 = vld [vmem:[%s4 + $0x4c] sm:$0xf]
  %v43 = vld [vmem:[%s4 + $0x50] sm:$0xf]
  %v44 = vld [vmem:[%s4 + $0x54] sm:$0xf]
  %v45 = vld [vmem:[%s4 + $0x58] sm:$0xf]
  %v46 = vld [vmem:[%s4 + $0x5c] sm:$0xf]
  %v47 = vld [vmem:[%s4 + $0x60] sm:$0xf]
  %v48 = vld [vmem:[%s4 + $0x64] sm:$0xf]
  %v49 = vld [vmem:[%s4 + $0x68] sm:$0xf]
  %v50 = vld [vmem:[%s4 + $0x6c] sm:$0xf]
  %v51 = vld [vmem:[%s4 + $0x70] sm:$0xf]
  %v52 = vld [vmem:[%s4 + $0x74] sm:$0xf]
  %v53 = vld [vmem:[%s4 + $0x78] sm:$0xf]
  %v54 = vld [vmem:[%s4 + $0x7c] sm:$0xf]
  %v55 = vld [vmem:[%s4 + $0x80] sm:$0xf]
  %v56 = vld [vmem:[%s4 + $0x84] sm:$0xf]
  %v57 = vld [vmem:[%s4 + $0x88] sm:$0xf]
  %v58 = vld [vmem:[%s4 + $0x8c] sm:$0xf]
  %v59 = vld [vmem:[%s4 + $0x90] sm:$0xf]
  %v60 = vld [vmem:[%s4 + $0x94] sm:$0xf]
  %v61 = vld [vmem:[%s4 + $0x98] sm:$0xf]
  %v62 = vld [vmem:[%s4 + $0x9c] sm:$0xf]
  %v63 = vld [vmem:[%s4 + $0xa0] sm:$0xf]
  %v64 = vld [vmem:[%s4 + $0xa4] sm:$0xf]
  %v65 = vld [vmem:[%s4 + $0xa8] sm:$0xf]
  %v66 = vld [vmem:[%s4 + $0xac] sm:$0xf]
  %v67 = vld [vmem:[%s4 + $0xb0] sm:$0xf]
  %v68 = vld [vmem:[%s4 + $0xb4] sm:$0xf]
  %v69 = vld [vmem:[%s4 + $0xb8] sm:$0xf]
  %v70 = vld [vmem:[%s4 + $0xbc] sm:$0xf]
  %v71 = vld [vmem:[%s4 + $0xc0] sm:$0xf]
  %v72 = vld [vmem:[%s4 + $0xc4] sm:$0xf]
  %v73 = vld [vmem:[%s4 + $0xc8] sm:$0xf]
  %v74 = vld [vmem:[%s4 + $0xcc] sm:$0xf]
  %v75 = vld [vmem:[%s4 + $0xd0] sm:$0xf]
  %v76 = vld [vmem:[%s4 + $0xd4] sm:$0xf]
  %v77 = vld [vmem:[%s4 + $0xd8] sm:$0xf]
  %v78 = vld [vmem:[%s4 + $0xdc] sm:$0xf]
  %v79 = vld [vmem:[%s4 + $0xe0] sm:$0xf]
  %v80 = vld [vmem:[%s4 + $0xe4] sm:$0xf]
  %v81 = vld [vmem:[%s4 + $0xe8] sm:$0xf]
  %v82 = vld [vmem:[%s4 + $0xec] sm:$0xf]
  %v83 = vld [vmem:[%s4 + $0xf0] sm:$0xf]
  %v84 = vld [vmem:[%s4 + $0xf4] sm:$0xf]
  %v85 = vld [vmem:[%s4 + $0xf8] sm:$0x3]
  %v86 = vld [vmem:[%s0] sm:$0xff]
  %v87 = vld [vmem:[%s0 + $0x8] sm:$0xff]
  %v88 = vld [vmem:[%s0 + $0x10] sm:$0xff]
  %v89 = vld [vmem:[%s0 + $0x18] sm:$0xff]
  %v90 = vld [vmem:[%s0 + $0x20] sm:$0xff]
  %v91 = vld [vmem:[%s0 + $0x28] sm:$0xff]
  %v92 = vld [vmem:[%s0 + $0x30] sm:$0xff]
  %v93 = vld [vmem:[%s0 + $0x38] sm:$0xff]
  %v94 = vld [vmem:[%s0 + $0x40] sm:$0xff]
  %v95 = vld [vmem:[%s0 + $0x48] sm:$0xff]
  %v96 = vld [vmem:[%s0 + $0x50] sm:$0xff]
  %v97 = vld [vmem:[%s0 + $0x58] sm:$0xff]
  %v98 = vld [vmem:[%s0 + $0x60] sm:$0xff]
  %v99 = vld [vmem:[%s0 + $0x68] sm:$0xff]
  %v100 = vld [vmem:[%s0 + $0x70] sm:$0xff]
  %v101 = vld [vmem:[%s0 + $0x78] sm:$0xff]
  %v102 = vld [vmem:[%s0 + $0x80] sm:$0xff]
  %v103 = vld [vmem:[%s0 + $0x88] sm:$0xff]
  %v104 = vld [vmem:[%s0 + $0x90] sm:$0xff]
  %v105 = vld [vmem:[%s0 + $0x98] sm:$0xff]
  %v106 = vld [vmem:[%s0 + $0xa0] sm:$0xff]
  %v107 = vld [vmem:[%s0 + $0xa8] sm:$0xff]
  %v108 = vld [vmem:[%s0 + $0xb0] sm:$0xff]
  %v109 = vld [vmem:[%s0 + $0xb8] sm:$0xff]
  %v110 = vld [vmem:[%s0 + $0xc0] sm:$0xff]
  %v111 = vld [vmem:[%s0 + $0xc8] sm:$0xff]
  %v112 = vld [vmem:[%s0 + $0xd0] sm:$0xff]
  %v113 = vld [vmem:[%s0 + $0xd8] sm:$0xff]
  %v114 = vld [vmem:[%s0 + $0xe0] sm:$0xff]
  %v115 = vld [vmem:[%s0 + $0xe8] sm:$0xff]
  %v116 = vld [vmem:[%s0 + $0xf0] sm:$0xff]
  %v117 = vld [vmem:[%s0 + $0xf8] sm:$0xff]
  %v118 = vld [vmem:[%s0 + $0x100] sm:$0xff]
  %v119 = vld [vmem:[%s0 + $0x108] sm:$0xff]
  %v120 = vld [vmem:[%s0 + $0x110] sm:$0xff]
  %v121 = vld [vmem:[%s0 + $0x118] sm:$0xff]
  %v122 = vld [vmem:[%s0 + $0x120] sm:$0xff]
  %v123 = vld [vmem:[%s0 + $0x128] sm:$0xff]
  %v124 = vld [vmem:[%s0 + $0x130] sm:$0xff]
  %v125 = vld [vmem:[%s0 + $0x138] sm:$0xff]
  %v126 = vld [vmem:[%s0 + $0x140] sm:$0xff]
  %v127 = vld [vmem:[%s0 + $0x148] sm:$0xff]
  %v128 = vld [vmem:[%s0 + $0x150] sm:$0xff]
  %v129 = vld [vmem:[%s0 + $0x158] sm:$0xff]
  %v130 = vld [vmem:[%s0 + $0x160] sm:$0xff]
  %v131 = vld [vmem:[%s0 + $0x168] sm:$0xff]
  %v132 = vld [vmem:[%s0 + $0x170] sm:$0xff]
  %v133 = vld [vmem:[%s0 + $0x178] sm:$0xff]
  %v134 = vld [vmem:[%s0 + $0x180] sm:$0xff]
  %v135 = vld [vmem:[%s0 + $0x188] sm:$0xff]
  %v186 = vunpack.c.l.b16 %v86
  %v187 = vunpack.c.h.b16 %v86
  %v188 = vunpack.c.l.b16 %v87
  %v189 = vunpack.c.h.b16 %v87
  %v190 = vunpack.c.l.b16 %v88
  %v191 = vunpack.c.h.b16 %v88
  %v192 = vunpack.c.l.b16 %v89
  %v193 = vunpack.c.h.b16 %v89
  %v194 = vunpack.c.l.b16 %v90
  %v195 = vunpack.c.h.b16 %v90
  %v196 = vunpack.c.l.b16 %v91
  %v197 = vunpack.c.h.b16 %v91
  %v198 = vunpack.c.l.b16 %v92
  %v199 = vunpack.c.h.b16 %v92
  %v200 = vunpack.c.l.b16 %v93
  %v201 = vunpack.c.h.b16 %v93
  %v202 = vunpack.c.l.b16 %v94
  %v203 = vunpack.c.h.b16 %v94
  %v204 = vunpack.c.l.b16 %v95
  %v205 = vunpack.c.h.b16 %v95
  %v206 = vunpack.c.l.b16 %v96
  %v207 = vunpack.c.h.b16 %v96
  %v208 = vunpack.c.l.b16 %v97
  %v209 = vunpack.c.h.b16 %v97
  %v210 = vunpack.c.l.b16 %v98
  %v211 = vunpack.c.h.b16 %v98
  %v212 = vunpack.c.l.b16 %v99
  %v213 = vunpack.c.h.b16 %v99
  %v214 = vunpack.c.l.b16 %v100
  %v215 = vunpack.c.h.b16 %v100
  %v216 = vunpack.c.l.b16 %v101
  %v217 = vunpack.c.h.b16 %v101
  %v218 = vunpack.c.l.b16 %v102
  %v219 = vunpack.c.h.b16 %v102
  %v220 = vunpack.c.l.b16 %v103
  %v221 = vunpack.c.h.b16 %v103
  %v222 = vunpack.c.l.b16 %v104
  %v223 = vunpack.c.h.b16 %v104
  %v224 = vunpack.c.l.b16 %v105
  %v225 = vunpack.c.h.b16 %v105
  %v226 = vunpack.c.l.b16 %v106
  %v227 = vunpack.c.h.b16 %v106
  %v228 = vunpack.c.l.b16 %v107
  %v229 = vunpack.c.h.b16 %v107
  %v230 = vunpack.c.l.b16 %v108
  %v231 = vunpack.c.h.b16 %v108
  %v232 = vunpack.c.l.b16 %v109
  %v233 = vunpack.c.h.b16 %v109
  %v234 = vunpack.c.l.b16 %v110
  %v235 = vunpack.c.h.b16 %v110
  %v236 = vunpack.c.l.b16 %v111
  %v237 = vunpack.c.h.b16 %v111
  %v238 = vunpack.c.l.b16 %v112
  %v239 = vunpack.c.h.b16 %v112
  %v240 = vunpack.c.l.b16 %v113
  %v241 = vunpack.c.h.b16 %v113
  %v242 = vunpack.c.l.b16 %v114
  %v243 = vunpack.c.h.b16 %v114
  %v244 = vunpack.c.l.b16 %v115
  %v245 = vunpack.c.h.b16 %v115
  %v246 = vunpack.c.l.b16 %v116
  %v247 = vunpack.c.h.b16 %v116
  %v248 = vunpack.c.l.b16 %v117
  %v249 = vunpack.c.h.b16 %v117
  %v250 = vunpack.c.l.b16 %v118
  %v251 = vunpack.c.h.b16 %v118
  %v252 = vunpack.c.l.b16 %v119
  %v253 = vunpack.c.h.b16 %v119
  %v254 = vunpack.c.l.b16 %v120
  %v255 = vunpack.c.h.b16 %v120
  %v256 = vunpack.c.l.b16 %v121
  %v257 = vunpack.c.h.b16 %v121
  %v258 = vunpack.c.l.b16 %v122
  %v259 = vunpack.c.h.b16 %v122
  %v260 = vunpack.c.l.b16 %v123
  %v261 = vunpack.c.h.b16 %v123
  %v262 = vunpack.c.l.b16 %v124
  %v263 = vunpack.c.h.b16 %v124
  %v264 = vunpack.c.l.b16 %v125
  %v265 = vunpack.c.h.b16 %v125
  %v266 = vunpack.c.l.b16 %v126
  %v267 = vunpack.c.h.b16 %v126
  %v268 = vunpack.c.l.b16 %v127
  %v269 = vunpack.c.h.b16 %v127
  %v270 = vunpack.c.l.b16 %v128
  %v271 = vunpack.c.h.b16 %v128
  %v272 = vunpack.c.l.b16 %v129
  %v273 = vunpack.c.h.b16 %v129
  %v274 = vunpack.c.l.b16 %v130
  %v275 = vunpack.c.h.b16 %v130
  %v276 = vunpack.c.l.b16 %v131
  %v277 = vunpack.c.h.b16 %v131
  %v278 = vunpack.c.l.b16 %v132
  %v279 = vunpack.c.h.b16 %v132
  %v280 = vunpack.c.l.b16 %v133
  %v281 = vunpack.c.h.b16 %v133
  %v282 = vunpack.c.l.b16 %v134
  %v283 = vunpack.c.h.b16 %v134
  %v284 = vunpack.c.l.b16 %v135
  %v285 = vunpack.c.h.b16 %v135
  %v286 = vpack.c.b16 %v190, %v186
  %v287 = vpack.c.b16 %v191, %v187
  %v288 = vpack.c.b16 %v192, %v188
  %v289 = vpack.c.b16 %v193, %v189
  %v290 = vpack.c.b16 %v198, %v194
  %v291 = vpack.c.b16 %v199, %v195
  %v292 = vpack.c.b16 %v200, %v196
  %v293 = vpack.c.b16 %v201, %v197
  %v294 = vpack.c.b16 %v206, %v202
  %v295 = vpack.c.b16 %v207, %v203
  %v296 = vpack.c.b16 %v208, %v204
  %v297 = vpack.c.b16 %v209, %v205
  %v298 = vpack.c.b16 %v214, %v210
  %v299 = vpack.c.b16 %v215, %v211
  %v300 = vpack.c.b16 %v216, %v212
  %v301 = vpack.c.b16 %v217, %v213
  %v302 = vpack.c.b16 %v222, %v218
  %v303 = vpack.c.b16 %v223, %v219
  %v304 = vpack.c.b16 %v224, %v220
  %v305 = vpack.c.b16 %v225, %v221
  %v306 = vpack.c.b16 %v230, %v226
  %v307 = vpack.c.b16 %v231, %v227
  %v308 = vpack.c.b16 %v232, %v228
  %v309 = vpack.c.b16 %v233, %v229
  %v310 = vpack.c.b16 %v238, %v234
  %v311 = vpack.c.b16 %v239, %v235
  %v312 = vpack.c.b16 %v240, %v236
  %v313 = vpack.c.b16 %v241, %v237
  %v314 = vpack.c.b16 %v246, %v242
  %v315 = vpack.c.b16 %v247, %v243
  %v316 = vpack.c.b16 %v248, %v244
  %v317 = vpack.c.b16 %v249, %v245
  %v318 = vpack.c.b16 %v254, %v250
  %v319 = vpack.c.b16 %v255, %v251
  %v320 = vpack.c.b16 %v256, %v252
  %v321 = vpack.c.b16 %v257, %v253
  %v322 = vpack.c.b16 %v262, %v258
  %v323 = vpack.c.b16 %v263, %v259
  %v324 = vpack.c.b16 %v264, %v260
  %v325 = vpack.c.b16 %v265, %v261
  %v326 = vpack.c.b16 %v270, %v266
  %v327 = vpack.c.b16 %v271, %v267
  %v328 = vpack.c.b16 %v272, %v268
  %v329 = vpack.c.b16 %v273, %v269
  %v330 = vpack.c.b16 %v278, %v274
  %v331 = vpack.c.b16 %v279, %v275
  %v332 = vpack.c.b16 %v280, %v276
  %v333 = vpack.c.b16 %v281, %v277
  %v334 = vpack.c.b16 %v282, %v282
  %v335 = vpack.c.b16 %v283, %v283
  %v336 = vpack.c.b16 %v284, %v284
  %v337 = vpack.c.b16 %v285, %v285
  %v440 = vunpack.c.l.b16 %v23
  %v441 = vunpack.c.l.b16 %v24
  %v442 = vunpack.c.l.b16 %v25
  %v443 = vunpack.c.l.b16 %v26
  %v444 = vunpack.c.l.b16 %v27
  %v445 = vunpack.c.l.b16 %v28
  %v446 = vunpack.c.l.b16 %v29
  %v447 = vunpack.c.l.b16 %v30
  %v448 = vunpack.c.l.b16 %v31
  %v449 = vunpack.c.l.b16 %v32
  %v450 = vunpack.c.l.b16 %v33
  %v451 = vunpack.c.l.b16 %v34
  %v452 = vunpack.c.l.b16 %v35
  %v453 = vunpack.c.l.b16 %v36
  %v454 = vunpack.c.l.b16 %v37
  %v455 = vunpack.c.l.b16 %v38
  %v456 = vunpack.c.l.b16 %v39
  %v457 = vunpack.c.l.b16 %v40
  %v458 = vunpack.c.l.b16 %v41
  %v459 = vunpack.c.l.b16 %v42
  %v460 = vunpack.c.l.b16 %v43
  %v461 = vunpack.c.l.b16 %v44
  %v462 = vunpack.c.l.b16 %v45
  %v463 = vunpack.c.l.b16 %v46
  %v464 = vunpack.c.l.b16 %v47
  %v465 = vunpack.c.l.b16 %v48
  %v466 = vunpack.c.l.b16 %v49
  %v467 = vunpack.c.l.b16 %v50
  %v468 = vunpack.c.l.b16 %v51
  %v469 = vunpack.c.l.b16 %v52
  %v470 = vunpack.c.l.b16 %v53
  %v471 = vunpack.c.l.b16 %v54
  %v472 = vunpack.c.l.b16 %v55
  %v473 = vunpack.c.l.b16 %v56
  %v474 = vunpack.c.l.b16 %v57
  %v475 = vunpack.c.l.b16 %v58
  %v476 = vunpack.c.l.b16 %v59
  %v477 = vunpack.c.l.b16 %v60
  %v478 = vunpack.c.l.b16 %v61
  %v479 = vunpack.c.l.b16 %v62
  %v480 = vunpack.c.l.b16 %v63
  %v481 = vunpack.c.l.b16 %v64
  %v482 = vunpack.c.l.b16 %v65
  %v483 = vunpack.c.l.b16 %v66
  %v484 = vunpack.c.l.b16 %v67
  %v485 = vunpack.c.l.b16 %v68
  %v486 = vunpack.c.l.b16 %v69
  %v487 = vunpack.c.l.b16 %v70
  %v488 = vunpack.c.l.b16 %v71
  %v489 = vunpack.c.l.b16 %v72
  %v490 = vunpack.c.l.b16 %v73
  %v491 = vunpack.c.l.b16 %v74
  %v492 = vunpack.c.l.b16 %v75
  %v493 = vunpack.c.l.b16 %v76
  %v494 = vunpack.c.l.b16 %v77
  %v495 = vunpack.c.l.b16 %v78
  %v496 = vunpack.c.l.b16 %v79
  %v497 = vunpack.c.l.b16 %v80
  %v498 = vunpack.c.l.b16 %v81
  %v499 = vunpack.c.l.b16 %v82
  %v500 = vunpack.c.l.b16 %v83
  %v501 = vunpack.c.l.b16 %v84
  %v502 = vunpack.c.l.b16 %v85
  %v503 = vpack.c.b16 %v441, %v440
  %v504 = vpack.c.b16 %v443, %v442
  %v505 = vpack.c.b16 %v445, %v444
  %v506 = vpack.c.b16 %v447, %v446
  %v507 = vpack.c.b16 %v449, %v448
  %v508 = vpack.c.b16 %v451, %v450
  %v509 = vpack.c.b16 %v453, %v452
  %v510 = vpack.c.b16 %v455, %v454
  %v511 = vpack.c.b16 %v457, %v456
  %v512 = vpack.c.b16 %v459, %v458
  %v513 = vpack.c.b16 %v461, %v460
  %v514 = vpack.c.b16 %v463, %v462
  %v515 = vpack.c.b16 %v465, %v464
  %v516 = vpack.c.b16 %v467, %v466
  %v517 = vpack.c.b16 %v469, %v468
  %v518 = vpack.c.b16 %v471, %v470
  %v519 = vpack.c.b16 %v473, %v472
  %v520 = vpack.c.b16 %v475, %v474
  %v521 = vpack.c.b16 %v477, %v476
  %v522 = vpack.c.b16 %v479, %v478
  %v523 = vpack.c.b16 %v481, %v480
  %v524 = vpack.c.b16 %v483, %v482
  %v525 = vpack.c.b16 %v485, %v484
  %v526 = vpack.c.b16 %v487, %v486
  %v527 = vpack.c.b16 %v489, %v488
  %v528 = vpack.c.b16 %v491, %v490
  %v529 = vpack.c.b16 %v493, %v492
  %v530 = vpack.c.b16 %v495, %v494
  %v531 = vpack.c.b16 %v497, %v496
  %v532 = vpack.c.b16 %v499, %v498
  %v533 = vpack.c.b16 %v501, %v500
  %v534 = vpack.c.b16 %v502, %v502
  %vm566 = vcmask 949248
  %v568 = vsel %vm566, %v289, 0
  %v571 = vsel %vm566, %v293, 0
  %v574 = vsel %vm566, %v297, 0
  %v577 = vsel %vm566, %v301, 0
  %v580 = vsel %vm566, %v305, 0
  %v583 = vsel %vm566, %v309, 0
  %v586 = vsel %vm566, %v313, 0
  %v589 = vsel %vm566, %v317, 0
  %v592 = vsel %vm566, %v321, 0
  %v595 = vsel %vm566, %v325, 0
  %v598 = vsel %vm566, %v329, 0
  %v601 = vsel %vm566, %v333, 0
  %v604 = vsel %vm566, %v337, 0
  %vm606 = vcmask 1041408
  %v608 = vsel %vm606, %v534, 0
  %610 = vmatpush.bf16.msra.mxu0 %v510
  %611 = vmatpush.bf16.msra.mxu0 %v509
  %612 = vmatpush.bf16.msra.mxu0 %v508
  %613 = vmatpush.bf16.msra.mxu0 %v507
  %614 = vmatpush.bf16.msra.mxu0 %v506
  %615 = vmatpush.bf16.msra.mxu0 %v505
  %616 = vmatpush.bf16.msra.mxu0 %v504
  %617 = vmatpush.bf16.msra.mxu0 %v503
  %618 = vmatmul.bf16.gmra.mxu0 %v286
  %v619 = vpop.f32.mrf.mxu0
  %v620 = vadd.f32 0.0, %v619
  %v621 = vpop.f32.mrf.mxu0
  %v622 = vadd.f32 0.0, %v621
  %623 = vmatmul.bf16.gmra.mxu0 %v290
  %v624 = vpop.f32.mrf.mxu0
  %v625 = vadd.f32 0.0, %v624
  %v626 = vpop.f32.mrf.mxu0
  %v627 = vadd.f32 0.0, %v626
  %628 = vmatmul.bf16.gmra.mxu0 %v294
  %v629 = vpop.f32.mrf.mxu0
  %v630 = vadd.f32 0.0, %v629
  %v631 = vpop.f32.mrf.mxu0
  %v632 = vadd.f32 0.0, %v631
  %633 = vmatmul.bf16.gmra.mxu0 %v298
  %v634 = vpop.f32.mrf.mxu0
  %v635 = vadd.f32 0.0, %v634
  %v636 = vpop.f32.mrf.mxu0
  %v637 = vadd.f32 0.0, %v636
  %638 = vmatmul.bf16.gmra.mxu0 %v302
  %v639 = vpop.f32.mrf.mxu0
  %v640 = vadd.f32 0.0, %v639
  %v641 = vpop.f32.mrf.mxu0
  %v642 = vadd.f32 0.0, %v641
  %643 = vmatmul.bf16.gmra.mxu0 %v306
  %v644 = vpop.f32.mrf.mxu0
  %v645 = vadd.f32 0.0, %v644
  %v646 = vpop.f32.mrf.mxu0
  %v647 = vadd.f32 0.0, %v646
  %648 = vmatmul.bf16.gmra.mxu0 %v310
  %v649 = vpop.f32.mrf.mxu0
  %v650 = vadd.f32 0.0, %v649
  %v651 = vpop.f32.mrf.mxu0
  %v652 = vadd.f32 0.0, %v651
  %653 = vmatmul.bf16.gmra.mxu0 %v314
  %v654 = vpop.f32.mrf.mxu0
  %v655 = vadd.f32 0.0, %v654
  %v656 = vpop.f32.mrf.mxu0
  %v657 = vadd.f32 0.0, %v656
  %658 = vmatmul.bf16.gmra.mxu0 %v318
  %v659 = vpop.f32.mrf.mxu0
  %v660 = vadd.f32 0.0, %v659
  %v661 = vpop.f32.mrf.mxu0
  %v662 = vadd.f32 0.0, %v661
  %663 = vmatmul.bf16.gmra.mxu0 %v322
  %v664 = vpop.f32.mrf.mxu0
  %v665 = vadd.f32 0.0, %v664
  %v666 = vpop.f32.mrf.mxu0
  %v667 = vadd.f32 0.0, %v666
  %668 = vmatmul.bf16.gmra.mxu0 %v326
  %v669 = vpop.f32.mrf.mxu0
  %v670 = vadd.f32 0.0, %v669
  %v671 = vpop.f32.mrf.mxu0
  %v672 = vadd.f32 0.0, %v671
  %673 = vmatmul.bf16.gmra.mxu0 %v330
  %v674 = vpop.f32.mrf.mxu0
  %v675 = vadd.f32 0.0, %v674
  %v676 = vpop.f32.mrf.mxu0
  %v677 = vadd.f32 0.0, %v676
  %678 = vmatmul.bf16.gmra.mxu0 %v334
  %v679 = vpop.f32.mrf.mxu0
  %v680 = vadd.f32 0.0, %v679
  %v681 = vpop.f32.mrf.mxu0
  %682 = vdwg.mxu0
  %683 = vmatpush.bf16.msra.mxu0 %v518
  %684 = vmatpush.bf16.msra.mxu0 %v517
  %685 = vmatpush.bf16.msra.mxu0 %v516
  %686 = vmatpush.bf16.msra.mxu0 %v515
  %687 = vmatpush.bf16.msra.mxu0 %v514
  %688 = vmatpush.bf16.msra.mxu0 %v513
  %689 = vmatpush.bf16.msra.mxu0 %v512
  %690 = vmatpush.bf16.msra.mxu0 %v511
  %691 = vmatmul.bf16.gmra.mxu0 %v287
  %v692 = vpop.f32.mrf.mxu0
  %v693 = vadd.f32 %v620, %v692
  %v694 = vpop.f32.mrf.mxu0
  %v695 = vadd.f32 %v622, %v694
  %696 = vmatmul.bf16.gmra.mxu0 %v291
  %v697 = vpop.f32.mrf.mxu0
  %v698 = vadd.f32 %v625, %v697
  %v699 = vpop.f32.mrf.mxu0
  %v700 = vadd.f32 %v627, %v699
  %701 = vmatmul.bf16.gmra.mxu0 %v295
  %v702 = vpop.f32.mrf.mxu0
  %v703 = vadd.f32 %v630, %v702
  %v704 = vpop.f32.mrf.mxu0
  %v705 = vadd.f32 %v632, %v704
  %706 = vmatmul.bf16.gmra.mxu0 %v299
  %v707 = vpop.f32.mrf.mxu0
  %v708 = vadd.f32 %v635, %v707
  %v709 = vpop.f32.mrf.mxu0
  %v710 = vadd.f32 %v637, %v709
  %711 = vmatmul.bf16.gmra.mxu0 %v303
  %v712 = vpop.f32.mrf.mxu0
  %v713 = vadd.f32 %v640, %v712
  %v714 = vpop.f32.mrf.mxu0
  %v715 = vadd.f32 %v642, %v714
  %716 = vmatmul.bf16.gmra.mxu0 %v307
  %v717 = vpop.f32.mrf.mxu0
  %v718 = vadd.f32 %v645, %v717
  %v719 = vpop.f32.mrf.mxu0
  %v720 = vadd.f32 %v647, %v719
  %721 = vmatmul.bf16.gmra.mxu0 %v311
  %v722 = vpop.f32.mrf.mxu0
  %v723 = vadd.f32 %v650, %v722
  %v724 = vpop.f32.mrf.mxu0
  %v725 = vadd.f32 %v652, %v724
  %726 = vmatmul.bf16.gmra.mxu0 %v315
  %v727 = vpop.f32.mrf.mxu0
  %v728 = vadd.f32 %v655, %v727
  %v729 = vpop.f32.mrf.mxu0
  %v730 = vadd.f32 %v657, %v729
  %731 = vmatmul.bf16.gmra.mxu0 %v319
  %v732 = vpop.f32.mrf.mxu0
  %v733 = vadd.f32 %v660, %v732
  %v734 = vpop.f32.mrf.mxu0
  %v735 = vadd.f32 %v662, %v734
  %736 = vmatmul.bf16.gmra.mxu0 %v323
  %v737 = vpop.f32.mrf.mxu0
  %v738 = vadd.f32 %v665, %v737
  %v739 = vpop.f32.mrf.mxu0
  %v740 = vadd.f32 %v667, %v739
  %741 = vmatmul.bf16.gmra.mxu0 %v327
  %v742 = vpop.f32.mrf.mxu0
  %v743 = vadd.f32 %v670, %v742
  %v744 = vpop.f32.mrf.mxu0
  %v745 = vadd.f32 %v672, %v744
  %746 = vmatmul.bf16.gmra.mxu0 %v331
  %v747 = vpop.f32.mrf.mxu0
  %v748 = vadd.f32 %v675, %v747
  %v749 = vpop.f32.mrf.mxu0
  %v750 = vadd.f32 %v677, %v749
  %751 = vmatmul.bf16.gmra.mxu0 %v335
  %v752 = vpop.f32.mrf.mxu0
  %v753 = vadd.f32 %v680, %v752
  %v754 = vpop.f32.mrf.mxu0
  %755 = vdwg.mxu0
  %756 = vmatpush.bf16.msra.mxu0 %v526
  %757 = vmatpush.bf16.msra.mxu0 %v525
  %758 = vmatpush.bf16.msra.mxu0 %v524
  %759 = vmatpush.bf16.msra.mxu0 %v523
  %760 = vmatpush.bf16.msra.mxu0 %v522
  %761 = vmatpush.bf16.msra.mxu0 %v521
  %762 = vmatpush.bf16.msra.mxu0 %v520
  %763 = vmatpush.bf16.msra.mxu0 %v519
  %764 = vmatmul.bf16.gmra.mxu0 %v288
  %v765 = vpop.f32.mrf.mxu0
  %v766 = vadd.f32 %v693, %v765
  %v767 = vpop.f32.mrf.mxu0
  %v768 = vadd.f32 %v695, %v767
  %769 = vmatmul.bf16.gmra.mxu0 %v292
  %v770 = vpop.f32.mrf.mxu0
  %v771 = vadd.f32 %v698, %v770
  %v772 = vpop.f32.mrf.mxu0
  %v773 = vadd.f32 %v700, %v772
  %774 = vmatmul.bf16.gmra.mxu0 %v296
  %v775 = vpop.f32.mrf.mxu0
  %v776 = vadd.f32 %v703, %v775
  %v777 = vpop.f32.mrf.mxu0
  %v778 = vadd.f32 %v705, %v777
  %779 = vmatmul.bf16.gmra.mxu0 %v300
  %v780 = vpop.f32.mrf.mxu0
  %v781 = vadd.f32 %v708, %v780
  %v782 = vpop.f32.mrf.mxu0
  %v783 = vadd.f32 %v710, %v782
  %784 = vmatmul.bf16.gmra.mxu0 %v304
  %v785 = vpop.f32.mrf.mxu0
  %v786 = vadd.f32 %v713, %v785
  %v787 = vpop.f32.mrf.mxu0
  %v788 = vadd.f32 %v715, %v787
  %789 = vmatmul.bf16.gmra.mxu0 %v308
  %v790 = vpop.f32.mrf.mxu0
  %v791 = vadd.f32 %v718, %v790
  %v792 = vpop.f32.mrf.mxu0
  %v793 = vadd.f32 %v720, %v792
  %794 = vmatmul.bf16.gmra.mxu0 %v312
  %v795 = vpop.f32.mrf.mxu0
  %v796 = vadd.f32 %v723, %v795
  %v797 = vpop.f32.mrf.mxu0
  %v798 = vadd.f32 %v725, %v797
  %799 = vmatmul.bf16.gmra.mxu0 %v316
  %v800 = vpop.f32.mrf.mxu0
  %v801 = vadd.f32 %v728, %v800
  %v802 = vpop.f32.mrf.mxu0
  %v803 = vadd.f32 %v730, %v802
  %804 = vmatmul.bf16.gmra.mxu0 %v320
  %v805 = vpop.f32.mrf.mxu0
  %v806 = vadd.f32 %v733, %v805
  %v807 = vpop.f32.mrf.mxu0
  %v808 = vadd.f32 %v735, %v807
  %809 = vmatmul.bf16.gmra.mxu0 %v324
  %v810 = vpop.f32.mrf.mxu0
  %v811 = vadd.f32 %v738, %v810
  %v812 = vpop.f32.mrf.mxu0
  %v813 = vadd.f32 %v740, %v812
  %814 = vmatmul.bf16.gmra.mxu0 %v328
  %v815 = vpop.f32.mrf.mxu0
  %v816 = vadd.f32 %v743, %v815
  %v817 = vpop.f32.mrf.mxu0
  %v818 = vadd.f32 %v745, %v817
  %819 = vmatmul.bf16.gmra.mxu0 %v332
  %v820 = vpop.f32.mrf.mxu0
  %v821 = vadd.f32 %v748, %v820
  %v822 = vpop.f32.mrf.mxu0
  %v823 = vadd.f32 %v750, %v822
  %824 = vmatmul.bf16.gmra.mxu0 %v336
  %v825 = vpop.f32.mrf.mxu0
  %v826 = vadd.f32 %v753, %v825
  %v827 = vpop.f32.mrf.mxu0
  %828 = vdwg.mxu0
  %829 = vmatpush.bf16.msra.mxu0 %v608
  %830 = vmatpush.bf16.msra.mxu0 %v533
  %831 = vmatpush.bf16.msra.mxu0 %v532
  %832 = vmatpush.bf16.msra.mxu0 %v531
  %833 = vmatpush.bf16.msra.mxu0 %v530
  %834 = vmatpush.bf16.msra.mxu0 %v529
  %835 = vmatpush.bf16.msra.mxu0 %v528
  %836 = vmatpush.bf16.msra.mxu0 %v527
  %837 = vmatmul.bf16.gmra.mxu0 %v568
  %v838 = vpop.f32.mrf.mxu0
  %v839 = vadd.f32 %v766, %v838
  %v840 = vpop.f32.mrf.mxu0
  %v841 = vadd.f32 %v768, %v840
  %842 = vmatmul.bf16.gmra.mxu0 %v571
  %v843 = vpop.f32.mrf.mxu0
  %v844 = vadd.f32 %v771, %v843
  %v845 = vpop.f32.mrf.mxu0
  %v846 = vadd.f32 %v773, %v845
  %847 = vmatmul.bf16.gmra.mxu0 %v574
  %v848 = vpop.f32.mrf.mxu0
  %v849 = vadd.f32 %v776, %v848
  %v850 = vpop.f32.mrf.mxu0
  %v851 = vadd.f32 %v778, %v850
  %852 = vmatmul.bf16.gmra.mxu0 %v577
  %v853 = vpop.f32.mrf.mxu0
  %v854 = vadd.f32 %v781, %v853
  %v855 = vpop.f32.mrf.mxu0
  %v856 = vadd.f32 %v783, %v855
  %857 = vmatmul.bf16.gmra.mxu0 %v580
  %v858 = vpop.f32.mrf.mxu0
  %v859 = vadd.f32 %v786, %v858
  %v860 = vpop.f32.mrf.mxu0
  %v861 = vadd.f32 %v788, %v860
  %862 = vmatmul.bf16.gmra.mxu0 %v583
  %v863 = vpop.f32.mrf.mxu0
  %v864 = vadd.f32 %v791, %v863
  %v865 = vpop.f32.mrf.mxu0
  %v866 = vadd.f32 %v793, %v865
  %867 = vmatmul.bf16.gmra.mxu0 %v586
  %v868 = vpop.f32.mrf.mxu0
  %v869 = vadd.f32 %v796, %v868
  %v870 = vpop.f32.mrf.mxu0
  %v871 = vadd.f32 %v798, %v870
  %872 = vmatmul.bf16.gmra.mxu0 %v589
  %v873 = vpop.f32.mrf.mxu0
  %v874 = vadd.f32 %v801, %v873
  %v875 = vpop.f32.mrf.mxu0
  %v876 = vadd.f32 %v803, %v875
  %877 = vmatmul.bf16.gmra.mxu0 %v592
  %v878 = vpop.f32.mrf.mxu0
  %v879 = vadd.f32 %v806, %v878
  %v880 = vpop.f32.mrf.mxu0
  %v881 = vadd.f32 %v808, %v880
  %882 = vmatmul.bf16.gmra.mxu0 %v595
  %v883 = vpop.f32.mrf.mxu0
  %v884 = vadd.f32 %v811, %v883
  %v885 = vpop.f32.mrf.mxu0
  %v886 = vadd.f32 %v813, %v885
  %887 = vmatmul.bf16.gmra.mxu0 %v598
  %v888 = vpop.f32.mrf.mxu0
  %v889 = vadd.f32 %v816, %v888
  %v890 = vpop.f32.mrf.mxu0
  %v891 = vadd.f32 %v818, %v890
  %892 = vmatmul.bf16.gmra.mxu0 %v601
  %v893 = vpop.f32.mrf.mxu0
  %v894 = vadd.f32 %v821, %v893
  %v895 = vpop.f32.mrf.mxu0
  %v896 = vadd.f32 %v823, %v895
  %897 = vmatmul.bf16.gmra.mxu0 %v604
  %v898 = vpop.f32.mrf.mxu0
  %v899 = vadd.f32 %v826, %v898
  %v900 = vpop.f32.mrf.mxu0
  %901 = vdwg.mxu0
  %v902 = vld [vmem:[%s1] sm:$0xff]
  %v903 = vld [vmem:[%s1 + $0x8] sm:$0xff]
  %v904 = vld [vmem:[%s1 + $0x10] sm:$0xff]
  %v905 = vld [vmem:[%s1 + $0x18] sm:$0xff]
  %v906 = vld [vmem:[%s1 + $0x20] sm:$0xff]
  %v907 = vld [vmem:[%s1 + $0x28] sm:$0xff]
  %v908 = vld [vmem:[%s1 + $0x30] sm:$0xff]
  %v909 = vld [vmem:[%s1 + $0x38] sm:$0xff]
  %v910 = vld [vmem:[%s1 + $0x40] sm:$0xff]
  %v911 = vld [vmem:[%s1 + $0x48] sm:$0xff]
  %v912 = vld [vmem:[%s1 + $0x50] sm:$0xff]
  %v913 = vld [vmem:[%s1 + $0x58] sm:$0xff]
  %v914 = vld [vmem:[%s1 + $0x60] sm:$0xff]
  %v915 = vld [vmem:[%s1 + $0x68] sm:$0xff]
  %v916 = vld [vmem:[%s1 + $0x70] sm:$0xff]
  %v917 = vld [vmem:[%s1 + $0x78] sm:$0xff]
  %v918 = vld [vmem:[%s1 + $0x80] sm:$0xff]
  %v919 = vld [vmem:[%s1 + $0x88] sm:$0xff]
  %v920 = vld [vmem:[%s1 + $0x90] sm:$0xff]
  %v921 = vld [vmem:[%s1 + $0x98] sm:$0xff]
  %v922 = vld [vmem:[%s1 + $0xa0] sm:$0xff]
  %v923 = vld [vmem:[%s1 + $0xa8] sm:$0xff]
  %v924 = vld [vmem:[%s1 + $0xb0] sm:$0xff]
  %v925 = vld [vmem:[%s1 + $0xb8] sm:$0xff]
  %v926 = vld [vmem:[%s1 + $0xc0] sm:$0xff]
  %v927 = vld [vmem:[%s1 + $0xc8] sm:$0xff]
  %v928 = vld [vmem:[%s1 + $0xd0] sm:$0xff]
  %v929 = vld [vmem:[%s1 + $0xd8] sm:$0xff]
  %v930 = vld [vmem:[%s1 + $0xe0] sm:$0xff]
  %v931 = vld [vmem:[%s1 + $0xe8] sm:$0xff]
  %v932 = vld [vmem:[%s1 + $0xf0] sm:$0xff]
  %v933 = vld [vmem:[%s1 + $0xf8] sm:$0xff]
  %v934 = vld [vmem:[%s1 + $0x100] sm:$0xff]
  %v935 = vld [vmem:[%s1 + $0x108] sm:$0xff]
  %v936 = vld [vmem:[%s1 + $0x110] sm:$0xff]
  %v937 = vld [vmem:[%s1 + $0x118] sm:$0xff]
  %v938 = vld [vmem:[%s1 + $0x120] sm:$0xff]
  %v939 = vld [vmem:[%s1 + $0x128] sm:$0xff]
  %v940 = vld [vmem:[%s1 + $0x130] sm:$0xff]
  %v941 = vld [vmem:[%s1 + $0x138] sm:$0xff]
  %v942 = vld [vmem:[%s1 + $0x140] sm:$0xff]
  %v943 = vld [vmem:[%s1 + $0x148] sm:$0xff]
  %v944 = vld [vmem:[%s1 + $0x150] sm:$0xff]
  %v945 = vld [vmem:[%s1 + $0x158] sm:$0xff]
  %v946 = vld [vmem:[%s1 + $0x160] sm:$0xff]
  %v947 = vld [vmem:[%s1 + $0x168] sm:$0xff]
  %v948 = vld [vmem:[%s1 + $0x170] sm:$0xff]
  %v949 = vld [vmem:[%s1 + $0x178] sm:$0xff]
  %v950 = vld [vmem:[%s1 + $0x180] sm:$0xff]
  %v951 = vld [vmem:[%s1 + $0x188] sm:$0xff]
  %v1002 = vunpack.c.l.b16 %v902
  %v1003 = vunpack.c.h.b16 %v902
  %v1004 = vunpack.c.l.b16 %v903
  %v1005 = vunpack.c.h.b16 %v903
  %v1006 = vunpack.c.l.b16 %v904
  %v1007 = vunpack.c.h.b16 %v904
  %v1008 = vunpack.c.l.b16 %v905
  %v1009 = vunpack.c.h.b16 %v905
  %v1010 = vunpack.c.l.b16 %v906
  %v1011 = vunpack.c.h.b16 %v906
  %v1012 = vunpack.c.l.b16 %v907
  %v1013 = vunpack.c.h.b16 %v907
  %v1014 = vunpack.c.l.b16 %v908
  %v1015 = vunpack.c.h.b16 %v908
  %v1016 = vunpack.c.l.b16 %v909
  %v1017 = vunpack.c.h.b16 %v909
  %v1018 = vunpack.c.l.b16 %v910
  %v1019 = vunpack.c.h.b16 %v910
  %v1020 = vunpack.c.l.b16 %v911
  %v1021 = vunpack.c.h.b16 %v911
  %v1022 = vunpack.c.l.b16 %v912
  %v1023 = vunpack.c.h.b16 %v912
  %v1024 = vunpack.c.l.b16 %v913
  %v1025 = vunpack.c.h.b16 %v913
  %v1026 = vunpack.c.l.b16 %v914
  %v1027 = vunpack.c.h.b16 %v914
  %v1028 = vunpack.c.l.b16 %v915
  %v1029 = vunpack.c.h.b16 %v915
  %v1030 = vunpack.c.l.b16 %v916
  %v1031 = vunpack.c.h.b16 %v916
  %v1032 = vunpack.c.l.b16 %v917
  %v1033 = vunpack.c.h.b16 %v917
  %v1034 = vunpack.c.l.b16 %v918
  %v1035 = vunpack.c.h.b16 %v918
  %v1036 = vunpack.c.l.b16 %v919
  %v1037 = vunpack.c.h.b16 %v919
  %v1038 = vunpack.c.l.b16 %v920
  %v1039 = vunpack.c.h.b16 %v920
  %v1040 = vunpack.c.l.b16 %v921
  %v1041 = vunpack.c.h.b16 %v921
  %v1042 = vunpack.c.l.b16 %v922
  %v1043 = vunpack.c.h.b16 %v922
  %v1044 = vunpack.c.l.b16 %v923
  %v1045 = vunpack.c.h.b16 %v923
  %v1046 = vunpack.c.l.b16 %v924
  %v1047 = vunpack.c.h.b16 %v924
  %v1048 = vunpack.c.l.b16 %v925
  %v1049 = vunpack.c.h.b16 %v925
  %v1050 = vunpack.c.l.b16 %v926
  %v1051 = vunpack.c.h.b16 %v926
  %v1052 = vunpack.c.l.b16 %v927
  %v1053 = vunpack.c.h.b16 %v927
  %v1054 = vunpack.c.l.b16 %v928
  %v1055 = vunpack.c.h.b16 %v928
  %v1056 = vunpack.c.l.b16 %v929
  %v1057 = vunpack.c.h.b16 %v929
  %v1058 = vunpack.c.l.b16 %v930
  %v1059 = vunpack.c.h.b16 %v930
  %v1060 = vunpack.c.l.b16 %v931
  %v1061 = vunpack.c.h.b16 %v931
  %v1062 = vunpack.c.l.b16 %v932
  %v1063 = vunpack.c.h.b16 %v932
  %v1064 = vunpack.c.l.b16 %v933
  %v1065 = vunpack.c.h.b16 %v933
  %v1066 = vunpack.c.l.b16 %v934
  %v1067 = vunpack.c.h.b16 %v934
  %v1068 = vunpack.c.l.b16 %v935
  %v1069 = vunpack.c.h.b16 %v935
  %v1070 = vunpack.c.l.b16 %v936
  %v1071 = vunpack.c.h.b16 %v936
  %v1072 = vunpack.c.l.b16 %v937
  %v1073 = vunpack.c.h.b16 %v937
  %v1074 = vunpack.c.l.b16 %v938
  %v1075 = vunpack.c.h.b16 %v938
  %v1076 = vunpack.c.l.b16 %v939
  %v1077 = vunpack.c.h.b16 %v939
  %v1078 = vunpack.c.l.b16 %v940
  %v1079 = vunpack.c.h.b16 %v940
  %v1080 = vunpack.c.l.b16 %v941
  %v1081 = vunpack.c.h.b16 %v941
  %v1082 = vunpack.c.l.b16 %v942
  %v1083 = vunpack.c.h.b16 %v942
  %v1084 = vunpack.c.l.b16 %v943
  %v1085 = vunpack.c.h.b16 %v943
  %v1086 = vunpack.c.l.b16 %v944
  %v1087 = vunpack.c.h.b16 %v944
  %v1088 = vunpack.c.l.b16 %v945
  %v1089 = vunpack.c.h.b16 %v945
  %v1090 = vunpack.c.l.b16 %v946
  %v1091 = vunpack.c.h.b16 %v946
  %v1092 = vunpack.c.l.b16 %v947
  %v1093 = vunpack.c.h.b16 %v947
  %v1094 = vunpack.c.l.b16 %v948
  %v1095 = vunpack.c.h.b16 %v948
  %v1096 = vunpack.c.l.b16 %v949
  %v1097 = vunpack.c.h.b16 %v949
  %v1098 = vunpack.c.l.b16 %v950
  %v1099 = vunpack.c.h.b16 %v950
  %v1100 = vunpack.c.l.b16 %v951
  %v1101 = vunpack.c.h.b16 %v951
  %v1102 = vpack.c.b16 %v1006, %v1002
  %v1103 = vpack.c.b16 %v1007, %v1003
  %v1104 = vpack.c.b16 %v1008, %v1004
  %v1105 = vpack.c.b16 %v1009, %v1005
  %v1106 = vpack.c.b16 %v1014, %v1010
  %v1107 = vpack.c.b16 %v1015, %v1011
  %v1108 = vpack.c.b16 %v1016, %v1012
  %v1109 = vpack.c.b16 %v1017, %v1013
  %v1110 = vpack.c.b16 %v1022, %v1018
  %v1111 = vpack.c.b16 %v1023, %v1019
  %v1112 = vpack.c.b16 %v1024, %v1020
  %v1113 = vpack.c.b16 %v1025, %v1021
  %v1114 = vpack.c.b16 %v1030, %v1026
  %v1115 = vpack.c.b16 %v1031, %v1027
  %v1116 = vpack.c.b16 %v1032, %v1028
  %v1117 = vpack.c.b16 %v1033, %v1029
  %v1118 = vpack.c.b16 %v1038, %v1034
  %v1119 = vpack.c.b16 %v1039, %v1035
  %v1120 = vpack.c.b16 %v1040, %v1036
  %v1121 = vpack.c.b16 %v1041, %v1037
  %v1122 = vpack.c.b16 %v1046, %v1042
  %v1123 = vpack.c.b16 %v1047, %v1043
  %v1124 = vpack.c.b16 %v1048, %v1044
  %v1125 = vpack.c.b16 %v1049, %v1045
  %v1126 = vpack.c.b16 %v1054, %v1050
  %v1127 = vpack.c.b16 %v1055, %v1051
  %v1128 = vpack.c.b16 %v1056, %v1052
  %v1129 = vpack.c.b16 %v1057, %v1053
  %v1130 = vpack.c.b16 %v1062, %v1058
  %v1131 = vpack.c.b16 %v1063, %v1059
  %v1132 = vpack.c.b16 %v1064, %v1060
  %v1133 = vpack.c.b16 %v1065, %v1061
  %v1134 = vpack.c.b16 %v1070, %v1066
  %v1135 = vpack.c.b16 %v1071, %v1067
  %v1136 = vpack.c.b16 %v1072, %v1068
  %v1137 = vpack.c.b16 %v1073, %v1069
  %v1138 = vpack.c.b16 %v1078, %v1074
  %v1139 = vpack.c.b16 %v1079, %v1075
  %v1140 = vpack.c.b16 %v1080, %v1076
  %v1141 = vpack.c.b16 %v1081, %v1077
  %v1142 = vpack.c.b16 %v1086, %v1082
  %v1143 = vpack.c.b16 %v1087, %v1083
  %v1144 = vpack.c.b16 %v1088, %v1084
  %v1145 = vpack.c.b16 %v1089, %v1085
  %v1146 = vpack.c.b16 %v1094, %v1090
  %v1147 = vpack.c.b16 %v1095, %v1091
  %v1148 = vpack.c.b16 %v1096, %v1092
  %v1149 = vpack.c.b16 %v1097, %v1093
  %v1150 = vpack.c.b16 %v1098, %v1098
  %v1151 = vpack.c.b16 %v1099, %v1099
  %v1152 = vpack.c.b16 %v1100, %v1100
  %v1153 = vpack.c.b16 %v1101, %v1101
  %v1194 = vsel %vm566, %v1105, 0
  %v1197 = vsel %vm566, %v1109, 0
  %v1200 = vsel %vm566, %v1113, 0
  %v1203 = vsel %vm566, %v1117, 0
  %v1206 = vsel %vm566, %v1121, 0
  %v1209 = vsel %vm566, %v1125, 0
  %v1212 = vsel %vm566, %v1129, 0
  %v1215 = vsel %vm566, %v1133, 0
  %v1218 = vsel %vm566, %v1137, 0
  %v1221 = vsel %vm566, %v1141, 0
  %v1224 = vsel %vm566, %v1145, 0
  %v1227 = vsel %vm566, %v1149, 0
  %v1230 = vsel %vm566, %v1153, 0
  %1232 = vmatpush.bf16.msra.mxu0 %v510
  %1233 = vmatpush.bf16.msra.mxu0 %v509
  %1234 = vmatpush.bf16.msra.mxu0 %v508
  %1235 = vmatpush.bf16.msra.mxu0 %v507
  %1236 = vmatpush.bf16.msra.mxu0 %v506
  %1237 = vmatpush.bf16.msra.mxu0 %v505
  %1238 = vmatpush.bf16.msra.mxu0 %v504
  %1239 = vmatpush.bf16.msra.mxu0 %v503
  %1240 = vmatmul.bf16.gmra.mxu0 %v1102
  %v1241 = vpop.f32.mrf.mxu0
  %v1242 = vadd.f32 0.0, %v1241
  %v1243 = vpop.f32.mrf.mxu0
  %v1244 = vadd.f32 0.0, %v1243
  %1245 = vmatmul.bf16.gmra.mxu0 %v1106
  %v1246 = vpop.f32.mrf.mxu0
  %v1247 = vadd.f32 0.0, %v1246
  %v1248 = vpop.f32.mrf.mxu0
  %v1249 = vadd.f32 0.0, %v1248
  %1250 = vmatmul.bf16.gmra.mxu0 %v1110
  %v1251 = vpop.f32.mrf.mxu0
  %v1252 = vadd.f32 0.0, %v1251
  %v1253 = vpop.f32.mrf.mxu0
  %v1254 = vadd.f32 0.0, %v1253
  %1255 = vmatmul.bf16.gmra.mxu0 %v1114
  %v1256 = vpop.f32.mrf.mxu0
  %v1257 = vadd.f32 0.0, %v1256
  %v1258 = vpop.f32.mrf.mxu0
  %v1259 = vadd.f32 0.0, %v1258
  %1260 = vmatmul.bf16.gmra.mxu0 %v1118
  %v1261 = vpop.f32.mrf.mxu0
  %v1262 = vadd.f32 0.0, %v1261
  %v1263 = vpop.f32.mrf.mxu0
  %v1264 = vadd.f32 0.0, %v1263
  %1265 = vmatmul.bf16.gmra.mxu0 %v1122
  %v1266 = vpop.f32.mrf.mxu0
  %v1267 = vadd.f32 0.0, %v1266
  %v1268 = vpop.f32.mrf.mxu0
  %v1269 = vadd.f32 0.0, %v1268
  %1270 = vmatmul.bf16.gmra.mxu0 %v1126
  %v1271 = vpop.f32.mrf.mxu0
  %v1272 = vadd.f32 0.0, %v1271
  %v1273 = vpop.f32.mrf.mxu0
  %v1274 = vadd.f32 0.0, %v1273
  %1275 = vmatmul.bf16.gmra.mxu0 %v1130
  %v1276 = vpop.f32.mrf.mxu0
  %v1277 = vadd.f32 0.0, %v1276
  %v1278 = vpop.f32.mrf.mxu0
  %v1279 = vadd.f32 0.0, %v1278
  %1280 = vmatmul.bf16.gmra.mxu0 %v1134
  %v1281 = vpop.f32.mrf.mxu0
  %v1282 = vadd.f32 0.0, %v1281
  %v1283 = vpop.f32.mrf.mxu0
  %v1284 = vadd.f32 0.0, %v1283
  %1285 = vmatmul.bf16.gmra.mxu0 %v1138
  %v1286 = vpop.f32.mrf.mxu0
  %v1287 = vadd.f32 0.0, %v1286
  %v1288 = vpop.f32.mrf.mxu0
  %v1289 = vadd.f32 0.0, %v1288
  %1290 = vmatmul.bf16.gmra.mxu0 %v1142
  %v1291 = vpop.f32.mrf.mxu0
  %v1292 = vadd.f32 0.0, %v1291
  %v1293 = vpop.f32.mrf.mxu0
  %v1294 = vadd.f32 0.0, %v1293
  %1295 = vmatmul.bf16.gmra.mxu0 %v1146
  %v1296 = vpop.f32.mrf.mxu0
  %v1297 = vadd.f32 0.0, %v1296
  %v1298 = vpop.f32.mrf.mxu0
  %v1299 = vadd.f32 0.0, %v1298
  %1300 = vmatmul.bf16.gmra.mxu0 %v1150
  %v1301 = vpop.f32.mrf.mxu0
  %v1302 = vadd.f32 0.0, %v1301
  %v1303 = vpop.f32.mrf.mxu0
  %1304 = vdwg.mxu0
  %1305 = vmatpush.bf16.msra.mxu0 %v518
  %1306 = vmatpush.bf16.msra.mxu0 %v517
  %1307 = vmatpush.bf16.msra.mxu0 %v516
  %1308 = vmatpush.bf16.msra.mxu0 %v515
  %1309 = vmatpush.bf16.msra.mxu0 %v514
  %1310 = vmatpush.bf16.msra.mxu0 %v513
  %1311 = vmatpush.bf16.msra.mxu0 %v512
  %1312 = vmatpush.bf16.msra.mxu0 %v511
  %1313 = vmatmul.bf16.gmra.mxu0 %v1103
  %v1314 = vpop.f32.mrf.mxu0
  %v1315 = vadd.f32 %v1242, %v1314
  %v1316 = vpop.f32.mrf.mxu0
  %v1317 = vadd.f32 %v1244, %v1316
  %1318 = vmatmul.bf16.gmra.mxu0 %v1107
  %v1319 = vpop.f32.mrf.mxu0
  %v1320 = vadd.f32 %v1247, %v1319
  %v1321 = vpop.f32.mrf.mxu0
  %v1322 = vadd.f32 %v1249, %v1321
  %1323 = vmatmul.bf16.gmra.mxu0 %v1111
  %v1324 = vpop.f32.mrf.mxu0
  %v1325 = vadd.f32 %v1252, %v1324
  %v1326 = vpop.f32.mrf.mxu0
  %v1327 = vadd.f32 %v1254, %v1326
  %1328 = vmatmul.bf16.gmra.mxu0 %v1115
  %v1329 = vpop.f32.mrf.mxu0
  %v1330 = vadd.f32 %v1257, %v1329
  %v1331 = vpop.f32.mrf.mxu0
  %v1332 = vadd.f32 %v1259, %v1331
  %1333 = vmatmul.bf16.gmra.mxu0 %v1119
  %v1334 = vpop.f32.mrf.mxu0
  %v1335 = vadd.f32 %v1262, %v1334
  %v1336 = vpop.f32.mrf.mxu0
  %v1337 = vadd.f32 %v1264, %v1336
  %1338 = vmatmul.bf16.gmra.mxu0 %v1123
  %v1339 = vpop.f32.mrf.mxu0
  %v1340 = vadd.f32 %v1267, %v1339
  %v1341 = vpop.f32.mrf.mxu0
  %v1342 = vadd.f32 %v1269, %v1341
  %1343 = vmatmul.bf16.gmra.mxu0 %v1127
  %v1344 = vpop.f32.mrf.mxu0
  %v1345 = vadd.f32 %v1272, %v1344
  %v1346 = vpop.f32.mrf.mxu0
  %v1347 = vadd.f32 %v1274, %v1346
  %1348 = vmatmul.bf16.gmra.mxu0 %v1131
  %v1349 = vpop.f32.mrf.mxu0
  %v1350 = vadd.f32 %v1277, %v1349
  %v1351 = vpop.f32.mrf.mxu0
  %v1352 = vadd.f32 %v1279, %v1351
  %1353 = vmatmul.bf16.gmra.mxu0 %v1135
  %v1354 = vpop.f32.mrf.mxu0
  %v1355 = vadd.f32 %v1282, %v1354
  %v1356 = vpop.f32.mrf.mxu0
  %v1357 = vadd.f32 %v1284, %v1356
  %1358 = vmatmul.bf16.gmra.mxu0 %v1139
  %v1359 = vpop.f32.mrf.mxu0
  %v1360 = vadd.f32 %v1287, %v1359
  %v1361 = vpop.f32.mrf.mxu0
  %v1362 = vadd.f32 %v1289, %v1361
  %1363 = vmatmul.bf16.gmra.mxu0 %v1143
  %v1364 = vpop.f32.mrf.mxu0
  %v1365 = vadd.f32 %v1292, %v1364
  %v1366 = vpop.f32.mrf.mxu0
  %v1367 = vadd.f32 %v1294, %v1366
  %1368 = vmatmul.bf16.gmra.mxu0 %v1147
  %v1369 = vpop.f32.mrf.mxu0
  %v1370 = vadd.f32 %v1297, %v1369
  %v1371 = vpop.f32.mrf.mxu0
  %v1372 = vadd.f32 %v1299, %v1371
  %1373 = vmatmul.bf16.gmra.mxu0 %v1151
  %v1374 = vpop.f32.mrf.mxu0
  %v1375 = vadd.f32 %v1302, %v1374
  %v1376 = vpop.f32.mrf.mxu0
  %1377 = vdwg.mxu0
  %1378 = vmatpush.bf16.msra.mxu0 %v526
  %1379 = vmatpush.bf16.msra.mxu0 %v525
  %1380 = vmatpush.bf16.msra.mxu0 %v524
  %1381 = vmatpush.bf16.msra.mxu0 %v523
  %1382 = vmatpush.bf16.msra.mxu0 %v522
  %1383 = vmatpush.bf16.msra.mxu0 %v521
  %1384 = vmatpush.bf16.msra.mxu0 %v520
  %1385 = vmatpush.bf16.msra.mxu0 %v519
  %1386 = vmatmul.bf16.gmra.mxu0 %v1104
  %v1387 = vpop.f32.mrf.mxu0
  %v1388 = vadd.f32 %v1315, %v1387
  %v1389 = vpop.f32.mrf.mxu0
  %v1390 = vadd.f32 %v1317, %v1389
  %1391 = vmatmul.bf16.gmra.mxu0 %v1108
  %v1392 = vpop.f32.mrf.mxu0
  %v1393 = vadd.f32 %v1320, %v1392
  %v1394 = vpop.f32.mrf.mxu0
  %v1395 = vadd.f32 %v1322, %v1394
  %1396 = vmatmul.bf16.gmra.mxu0 %v1112
  %v1397 = vpop.f32.mrf.mxu0
  %v1398 = vadd.f32 %v1325, %v1397
  %v1399 = vpop.f32.mrf.mxu0
  %v1400 = vadd.f32 %v1327, %v1399
  %1401 = vmatmul.bf16.gmra.mxu0 %v1116
  %v1402 = vpop.f32.mrf.mxu0
  %v1403 = vadd.f32 %v1330, %v1402
  %v1404 = vpop.f32.mrf.mxu0
  %v1405 = vadd.f32 %v1332, %v1404
  %1406 = vmatmul.bf16.gmra.mxu0 %v1120
  %v1407 = vpop.f32.mrf.mxu0
  %v1408 = vadd.f32 %v1335, %v1407
  %v1409 = vpop.f32.mrf.mxu0
  %v1410 = vadd.f32 %v1337, %v1409
  %1411 = vmatmul.bf16.gmra.mxu0 %v1124
  %v1412 = vpop.f32.mrf.mxu0
  %v1413 = vadd.f32 %v1340, %v1412
  %v1414 = vpop.f32.mrf.mxu0
  %v1415 = vadd.f32 %v1342, %v1414
  %1416 = vmatmul.bf16.gmra.mxu0 %v1128
  %v1417 = vpop.f32.mrf.mxu0
  %v1418 = vadd.f32 %v1345, %v1417
  %v1419 = vpop.f32.mrf.mxu0
  %v1420 = vadd.f32 %v1347, %v1419
  %1421 = vmatmul.bf16.gmra.mxu0 %v1132
  %v1422 = vpop.f32.mrf.mxu0
  %v1423 = vadd.f32 %v1350, %v1422
  %v1424 = vpop.f32.mrf.mxu0
  %v1425 = vadd.f32 %v1352, %v1424
  %1426 = vmatmul.bf16.gmra.mxu0 %v1136
  %v1427 = vpop.f32.mrf.mxu0
  %v1428 = vadd.f32 %v1355, %v1427
  %v1429 = vpop.f32.mrf.mxu0
  %v1430 = vadd.f32 %v1357, %v1429
  %1431 = vmatmul.bf16.gmra.mxu0 %v1140
  %v1432 = vpop.f32.mrf.mxu0
  %v1433 = vadd.f32 %v1360, %v1432
  %v1434 = vpop.f32.mrf.mxu0
  %v1435 = vadd.f32 %v1362, %v1434
  %1436 = vmatmul.bf16.gmra.mxu0 %v1144
  %v1437 = vpop.f32.mrf.mxu0
  %v1438 = vadd.f32 %v1365, %v1437
  %v1439 = vpop.f32.mrf.mxu0
  %v1440 = vadd.f32 %v1367, %v1439
  %1441 = vmatmul.bf16.gmra.mxu0 %v1148
  %v1442 = vpop.f32.mrf.mxu0
  %v1443 = vadd.f32 %v1370, %v1442
  %v1444 = vpop.f32.mrf.mxu0
  %v1445 = vadd.f32 %v1372, %v1444
  %1446 = vmatmul.bf16.gmra.mxu0 %v1152
  %v1447 = vpop.f32.mrf.mxu0
  %v1448 = vadd.f32 %v1375, %v1447
  %v1449 = vpop.f32.mrf.mxu0
  %1450 = vdwg.mxu0
  %1451 = vmatpush.bf16.msra.mxu0 %v608
  %1452 = vmatpush.bf16.msra.mxu0 %v533
  %1453 = vmatpush.bf16.msra.mxu0 %v532
  %1454 = vmatpush.bf16.msra.mxu0 %v531
  %1455 = vmatpush.bf16.msra.mxu0 %v530
  %1456 = vmatpush.bf16.msra.mxu0 %v529
  %1457 = vmatpush.bf16.msra.mxu0 %v528
  %1458 = vmatpush.bf16.msra.mxu0 %v527
  %1459 = vmatmul.bf16.gmra.mxu0 %v1194
  %v1460 = vpop.f32.mrf.mxu0
  %v1461 = vadd.f32 %v1388, %v1460
  %v1462 = vpop.f32.mrf.mxu0
  %v1463 = vadd.f32 %v1390, %v1462
  %1464 = vmatmul.bf16.gmra.mxu0 %v1197
  %v1465 = vpop.f32.mrf.mxu0
  %v1466 = vadd.f32 %v1393, %v1465
  %v1467 = vpop.f32.mrf.mxu0
  %v1468 = vadd.f32 %v1395, %v1467
  %1469 = vmatmul.bf16.gmra.mxu0 %v1200
  %v1470 = vpop.f32.mrf.mxu0
  %v1471 = vadd.f32 %v1398, %v1470
  %v1472 = vpop.f32.mrf.mxu0
  %v1473 = vadd.f32 %v1400, %v1472
  %1474 = vmatmul.bf16.gmra.mxu0 %v1203
  %v1475 = vpop.f32.mrf.mxu0
  %v1476 = vadd.f32 %v1403, %v1475
  %v1477 = vpop.f32.mrf.mxu0
  %v1478 = vadd.f32 %v1405, %v1477
  %1479 = vmatmul.bf16.gmra.mxu0 %v1206
  %v1480 = vpop.f32.mrf.mxu0
  %v1481 = vadd.f32 %v1408, %v1480
  %v1482 = vpop.f32.mrf.mxu0
  %v1483 = vadd.f32 %v1410, %v1482
  %1484 = vmatmul.bf16.gmra.mxu0 %v1209
  %v1485 = vpop.f32.mrf.mxu0
  %v1486 = vadd.f32 %v1413, %v1485
  %v1487 = vpop.f32.mrf.mxu0
  %v1488 = vadd.f32 %v1415, %v1487
  %1489 = vmatmul.bf16.gmra.mxu0 %v1212
  %v1490 = vpop.f32.mrf.mxu0
  %v1491 = vadd.f32 %v1418, %v1490
  %v1492 = vpop.f32.mrf.mxu0
  %v1493 = vadd.f32 %v1420, %v1492
  %1494 = vmatmul.bf16.gmra.mxu0 %v1215
  %v1495 = vpop.f32.mrf.mxu0
  %v1496 = vadd.f32 %v1423, %v1495
  %v1497 = vpop.f32.mrf.mxu0
  %v1498 = vadd.f32 %v1425, %v1497
  %1499 = vmatmul.bf16.gmra.mxu0 %v1218
  %v1500 = vpop.f32.mrf.mxu0
  %v1501 = vadd.f32 %v1428, %v1500
  %v1502 = vpop.f32.mrf.mxu0
  %v1503 = vadd.f32 %v1430, %v1502
  %1504 = vmatmul.bf16.gmra.mxu0 %v1221
  %v1505 = vpop.f32.mrf.mxu0
  %v1506 = vadd.f32 %v1433, %v1505
  %v1507 = vpop.f32.mrf.mxu0
  %v1508 = vadd.f32 %v1435, %v1507
  %1509 = vmatmul.bf16.gmra.mxu0 %v1224
  %v1510 = vpop.f32.mrf.mxu0
  %v1511 = vadd.f32 %v1438, %v1510
  %v1512 = vpop.f32.mrf.mxu0
  %v1513 = vadd.f32 %v1440, %v1512
  %1514 = vmatmul.bf16.gmra.mxu0 %v1227
  %v1515 = vpop.f32.mrf.mxu0
  %v1516 = vadd.f32 %v1443, %v1515
  %v1517 = vpop.f32.mrf.mxu0
  %v1518 = vadd.f32 %v1445, %v1517
  %1519 = vmatmul.bf16.gmra.mxu0 %v1230
  %v1520 = vpop.f32.mrf.mxu0
  %v1521 = vadd.f32 %v1448, %v1520
  %v1522 = vpop.f32.mrf.mxu0
  %1523 = vdwg.mxu0
  %v1524 = vld [vmem:[%s2] sm:$0xff]
  %v1525 = vld [vmem:[%s2 + $0x8] sm:$0xff]
  %v1526 = vld [vmem:[%s2 + $0x10] sm:$0xff]
  %v1527 = vld [vmem:[%s2 + $0x18] sm:$0xff]
  %v1528 = vld [vmem:[%s2 + $0x20] sm:$0xff]
  %v1529 = vld [vmem:[%s2 + $0x28] sm:$0xff]
  %v1530 = vld [vmem:[%s2 + $0x30] sm:$0xff]
  %v1531 = vld [vmem:[%s2 + $0x38] sm:$0xff]
  %v1532 = vld [vmem:[%s2 + $0x40] sm:$0xff]
  %v1533 = vld [vmem:[%s2 + $0x48] sm:$0xff]
  %v1534 = vld [vmem:[%s2 + $0x50] sm:$0xff]
  %v1535 = vld [vmem:[%s2 + $0x58] sm:$0xff]
  %v1536 = vld [vmem:[%s2 + $0x60] sm:$0xff]
  %v1537 = vld [vmem:[%s2 + $0x68] sm:$0xff]
  %v1538 = vld [vmem:[%s2 + $0x70] sm:$0xff]
  %v1539 = vld [vmem:[%s2 + $0x78] sm:$0xff]
  %v1540 = vld [vmem:[%s2 + $0x80] sm:$0xff]
  %v1541 = vld [vmem:[%s2 + $0x88] sm:$0xff]
  %v1542 = vld [vmem:[%s2 + $0x90] sm:$0xff]
  %v1543 = vld [vmem:[%s2 + $0x98] sm:$0xff]
  %v1544 = vld [vmem:[%s2 + $0xa0] sm:$0xff]
  %v1545 = vld [vmem:[%s2 + $0xa8] sm:$0xff]
  %v1546 = vld [vmem:[%s2 + $0xb0] sm:$0xff]
  %v1547 = vld [vmem:[%s2 + $0xb8] sm:$0xff]
  %v1548 = vld [vmem:[%s2 + $0xc0] sm:$0xff]
  %v1549 = vld [vmem:[%s2 + $0xc8] sm:$0xff]
  %v1550 = vld [vmem:[%s2 + $0xd0] sm:$0xff]
  %v1551 = vld [vmem:[%s2 + $0xd8] sm:$0xff]
  %v1552 = vld [vmem:[%s2 + $0xe0] sm:$0xff]
  %v1553 = vld [vmem:[%s2 + $0xe8] sm:$0xff]
  %v1554 = vld [vmem:[%s2 + $0xf0] sm:$0xff]
  %v1555 = vld [vmem:[%s2 + $0xf8] sm:$0xff]
  %v1556 = vld [vmem:[%s2 + $0x100] sm:$0xff]
  %v1557 = vld [vmem:[%s2 + $0x108] sm:$0xff]
  %v1558 = vld [vmem:[%s2 + $0x110] sm:$0xff]
  %v1559 = vld [vmem:[%s2 + $0x118] sm:$0xff]
  %v1560 = vld [vmem:[%s2 + $0x120] sm:$0xff]
  %v1561 = vld [vmem:[%s2 + $0x128] sm:$0xff]
  %v1562 = vld [vmem:[%s2 + $0x130] sm:$0xff]
  %v1563 = vld [vmem:[%s2 + $0x138] sm:$0xff]
  %v1564 = vld [vmem:[%s2 + $0x140] sm:$0xff]
  %v1565 = vld [vmem:[%s2 + $0x148] sm:$0xff]
  %v1566 = vld [vmem:[%s2 + $0x150] sm:$0xff]
  %v1567 = vld [vmem:[%s2 + $0x158] sm:$0xff]
  %v1568 = vld [vmem:[%s2 + $0x160] sm:$0xff]
  %v1569 = vld [vmem:[%s2 + $0x168] sm:$0xff]
  %v1570 = vld [vmem:[%s2 + $0x170] sm:$0xff]
  %v1571 = vld [vmem:[%s2 + $0x178] sm:$0xff]
  %v1572 = vld [vmem:[%s2 + $0x180] sm:$0xff]
  %v1573 = vld [vmem:[%s2 + $0x188] sm:$0xff]
  %v1624 = vunpack.c.l.b16 %v1524
  %v1625 = vunpack.c.h.b16 %v1524
  %v1626 = vunpack.c.l.b16 %v1525
  %v1627 = vunpack.c.h.b16 %v1525
  %v1628 = vunpack.c.l.b16 %v1526
  %v1629 = vunpack.c.h.b16 %v1526
  %v1630 = vunpack.c.l.b16 %v1527
  %v1631 = vunpack.c.h.b16 %v1527
  %v1632 = vunpack.c.l.b16 %v1528
  %v1633 = vunpack.c.h.b16 %v1528
  %v1634 = vunpack.c.l.b16 %v1529
  %v1635 = vunpack.c.h.b16 %v1529
  %v1636 = vunpack.c.l.b16 %v1530
  %v1637 = vunpack.c.h.b16 %v1530
  %v1638 = vunpack.c.l.b16 %v1531
  %v1639 = vunpack.c.h.b16 %v1531
  %v1640 = vunpack.c.l.b16 %v1532
  %v1641 = vunpack.c.h.b16 %v1532
  %v1642 = vunpack.c.l.b16 %v1533
  %v1643 = vunpack.c.h.b16 %v1533
  %v1644 = vunpack.c.l.b16 %v1534
  %v1645 = vunpack.c.h.b16 %v1534
  %v1646 = vunpack.c.l.b16 %v1535
  %v1647 = vunpack.c.h.b16 %v1535
  %v1648 = vunpack.c.l.b16 %v1536
  %v1649 = vunpack.c.h.b16 %v1536
  %v1650 = vunpack.c.l.b16 %v1537
  %v1651 = vunpack.c.h.b16 %v1537
  %v1652 = vunpack.c.l.b16 %v1538
  %v1653 = vunpack.c.h.b16 %v1538
  %v1654 = vunpack.c.l.b16 %v1539
  %v1655 = vunpack.c.h.b16 %v1539
  %v1656 = vunpack.c.l.b16 %v1540
  %v1657 = vunpack.c.h.b16 %v1540
  %v1658 = vunpack.c.l.b16 %v1541
  %v1659 = vunpack.c.h.b16 %v1541
  %v1660 = vunpack.c.l.b16 %v1542
  %v1661 = vunpack.c.h.b16 %v1542
  %v1662 = vunpack.c.l.b16 %v1543
  %v1663 = vunpack.c.h.b16 %v1543
  %v1664 = vunpack.c.l.b16 %v1544
  %v1665 = vunpack.c.h.b16 %v1544
  %v1666 = vunpack.c.l.b16 %v1545
  %v1667 = vunpack.c.h.b16 %v1545
  %v1668 = vunpack.c.l.b16 %v1546
  %v1669 = vunpack.c.h.b16 %v1546
  %v1670 = vunpack.c.l.b16 %v1547
  %v1671 = vunpack.c.h.b16 %v1547
  %v1672 = vunpack.c.l.b16 %v1548
  %v1673 = vunpack.c.h.b16 %v1548
  %v1674 = vunpack.c.l.b16 %v1549
  %v1675 = vunpack.c.h.b16 %v1549
  %v1676 = vunpack.c.l.b16 %v1550
  %v1677 = vunpack.c.h.b16 %v1550
  %v1678 = vunpack.c.l.b16 %v1551
  %v1679 = vunpack.c.h.b16 %v1551
  %v1680 = vunpack.c.l.b16 %v1552
  %v1681 = vunpack.c.h.b16 %v1552
  %v1682 = vunpack.c.l.b16 %v1553
  %v1683 = vunpack.c.h.b16 %v1553
  %v1684 = vunpack.c.l.b16 %v1554
  %v1685 = vunpack.c.h.b16 %v1554
  %v1686 = vunpack.c.l.b16 %v1555
  %v1687 = vunpack.c.h.b16 %v1555
  %v1688 = vunpack.c.l.b16 %v1556
  %v1689 = vunpack.c.h.b16 %v1556
  %v1690 = vunpack.c.l.b16 %v1557
  %v1691 = vunpack.c.h.b16 %v1557
  %v1692 = vunpack.c.l.b16 %v1558
  %v1693 = vunpack.c.h.b16 %v1558
  %v1694 = vunpack.c.l.b16 %v1559
  %v1695 = vunpack.c.h.b16 %v1559
  %v1696 = vunpack.c.l.b16 %v1560
  %v1697 = vunpack.c.h.b16 %v1560
  %v1698 = vunpack.c.l.b16 %v1561
  %v1699 = vunpack.c.h.b16 %v1561
  %v1700 = vunpack.c.l.b16 %v1562
  %v1701 = vunpack.c.h.b16 %v1562
  %v1702 = vunpack.c.l.b16 %v1563
  %v1703 = vunpack.c.h.b16 %v1563
  %v1704 = vunpack.c.l.b16 %v1564
  %v1705 = vunpack.c.h.b16 %v1564
  %v1706 = vunpack.c.l.b16 %v1565
  %v1707 = vunpack.c.h.b16 %v1565
  %v1708 = vunpack.c.l.b16 %v1566
  %v1709 = vunpack.c.h.b16 %v1566
  %v1710 = vunpack.c.l.b16 %v1567
  %v1711 = vunpack.c.h.b16 %v1567
  %v1712 = vunpack.c.l.b16 %v1568
  %v1713 = vunpack.c.h.b16 %v1568
  %v1714 = vunpack.c.l.b16 %v1569
  %v1715 = vunpack.c.h.b16 %v1569
  %v1716 = vunpack.c.l.b16 %v1570
  %v1717 = vunpack.c.h.b16 %v1570
  %v1718 = vunpack.c.l.b16 %v1571
  %v1719 = vunpack.c.h.b16 %v1571
  %v1720 = vunpack.c.l.b16 %v1572
  %v1721 = vunpack.c.h.b16 %v1572
  %v1722 = vunpack.c.l.b16 %v1573
  %v1723 = vunpack.c.h.b16 %v1573
  %v1724 = vpack.c.b16 %v1628, %v1624
  %v1725 = vpack.c.b16 %v1629, %v1625
  %v1726 = vpack.c.b16 %v1630, %v1626
  %v1727 = vpack.c.b16 %v1631, %v1627
  %v1728 = vpack.c.b16 %v1636, %v1632
  %v1729 = vpack.c.b16 %v1637, %v1633
  %v1730 = vpack.c.b16 %v1638, %v1634
  %v1731 = vpack.c.b16 %v1639, %v1635
  %v1732 = vpack.c.b16 %v1644, %v1640
  %v1733 = vpack.c.b16 %v1645, %v1641
  %v1734 = vpack.c.b16 %v1646, %v1642
  %v1735 = vpack.c.b16 %v1647, %v1643
  %v1736 = vpack.c.b16 %v1652, %v1648
  %v1737 = vpack.c.b16 %v1653, %v1649
  %v1738 = vpack.c.b16 %v1654, %v1650
  %v1739 = vpack.c.b16 %v1655, %v1651
  %v1740 = vpack.c.b16 %v1660, %v1656
  %v1741 = vpack.c.b16 %v1661, %v1657
  %v1742 = vpack.c.b16 %v1662, %v1658
  %v1743 = vpack.c.b16 %v1663, %v1659
  %v1744 = vpack.c.b16 %v1668, %v1664
  %v1745 = vpack.c.b16 %v1669, %v1665
  %v1746 = vpack.c.b16 %v1670, %v1666
  %v1747 = vpack.c.b16 %v1671, %v1667
  %v1748 = vpack.c.b16 %v1676, %v1672
  %v1749 = vpack.c.b16 %v1677, %v1673
  %v1750 = vpack.c.b16 %v1678, %v1674
  %v1751 = vpack.c.b16 %v1679, %v1675
  %v1752 = vpack.c.b16 %v1684, %v1680
  %v1753 = vpack.c.b16 %v1685, %v1681
  %v1754 = vpack.c.b16 %v1686, %v1682
  %v1755 = vpack.c.b16 %v1687, %v1683
  %v1756 = vpack.c.b16 %v1692, %v1688
  %v1757 = vpack.c.b16 %v1693, %v1689
  %v1758 = vpack.c.b16 %v1694, %v1690
  %v1759 = vpack.c.b16 %v1695, %v1691
  %v1760 = vpack.c.b16 %v1700, %v1696
  %v1761 = vpack.c.b16 %v1701, %v1697
  %v1762 = vpack.c.b16 %v1702, %v1698
  %v1763 = vpack.c.b16 %v1703, %v1699
  %v1764 = vpack.c.b16 %v1708, %v1704
  %v1765 = vpack.c.b16 %v1709, %v1705
  %v1766 = vpack.c.b16 %v1710, %v1706
  %v1767 = vpack.c.b16 %v1711, %v1707
  %v1768 = vpack.c.b16 %v1716, %v1712
  %v1769 = vpack.c.b16 %v1717, %v1713
  %v1770 = vpack.c.b16 %v1718, %v1714
  %v1771 = vpack.c.b16 %v1719, %v1715
  %v1772 = vpack.c.b16 %v1720, %v1720
  %v1773 = vpack.c.b16 %v1721, %v1721
  %v1774 = vpack.c.b16 %v1722, %v1722
  %v1775 = vpack.c.b16 %v1723, %v1723
  %v1816 = vsel %vm566, %v1727, 0
  %v1819 = vsel %vm566, %v1731, 0
  %v1822 = vsel %vm566, %v1735, 0
  %v1825 = vsel %vm566, %v1739, 0
  %v1828 = vsel %vm566, %v1743, 0
  %v1831 = vsel %vm566, %v1747, 0
  %v1834 = vsel %vm566, %v1751, 0
  %v1837 = vsel %vm566, %v1755, 0
  %v1840 = vsel %vm566, %v1759, 0
  %v1843 = vsel %vm566, %v1763, 0
  %v1846 = vsel %vm566, %v1767, 0
  %v1849 = vsel %vm566, %v1771, 0
  %v1852 = vsel %vm566, %v1775, 0
  %1854 = vmatpush.bf16.msra.mxu0 %v510
  %1855 = vmatpush.bf16.msra.mxu0 %v509
  %1856 = vmatpush.bf16.msra.mxu0 %v508
  %1857 = vmatpush.bf16.msra.mxu0 %v507
  %1858 = vmatpush.bf16.msra.mxu0 %v506
  %1859 = vmatpush.bf16.msra.mxu0 %v505
  %1860 = vmatpush.bf16.msra.mxu0 %v504
  %1861 = vmatpush.bf16.msra.mxu0 %v503
  %1862 = vmatmul.bf16.gmra.mxu0 %v1724
  %v1863 = vpop.f32.mrf.mxu0
  %v1864 = vadd.f32 0.0, %v1863
  %v1865 = vpop.f32.mrf.mxu0
  %v1866 = vadd.f32 0.0, %v1865
  %1867 = vmatmul.bf16.gmra.mxu0 %v1728
  %v1868 = vpop.f32.mrf.mxu0
  %v1869 = vadd.f32 0.0, %v1868
  %v1870 = vpop.f32.mrf.mxu0
  %v1871 = vadd.f32 0.0, %v1870
  %1872 = vmatmul.bf16.gmra.mxu0 %v1732
  %v1873 = vpop.f32.mrf.mxu0
  %v1874 = vadd.f32 0.0, %v1873
  %v1875 = vpop.f32.mrf.mxu0
  %v1876 = vadd.f32 0.0, %v1875
  %1877 = vmatmul.bf16.gmra.mxu0 %v1736
  %v1878 = vpop.f32.mrf.mxu0
  %v1879 = vadd.f32 0.0, %v1878
  %v1880 = vpop.f32.mrf.mxu0
  %v1881 = vadd.f32 0.0, %v1880
  %1882 = vmatmul.bf16.gmra.mxu0 %v1740
  %v1883 = vpop.f32.mrf.mxu0
  %v1884 = vadd.f32 0.0, %v1883
  %v1885 = vpop.f32.mrf.mxu0
  %v1886 = vadd.f32 0.0, %v1885
  %1887 = vmatmul.bf16.gmra.mxu0 %v1744
  %v1888 = vpop.f32.mrf.mxu0
  %v1889 = vadd.f32 0.0, %v1888
  %v1890 = vpop.f32.mrf.mxu0
  %v1891 = vadd.f32 0.0, %v1890
  %1892 = vmatmul.bf16.gmra.mxu0 %v1748
  %v1893 = vpop.f32.mrf.mxu0
  %v1894 = vadd.f32 0.0, %v1893
  %v1895 = vpop.f32.mrf.mxu0
  %v1896 = vadd.f32 0.0, %v1895
  %1897 = vmatmul.bf16.gmra.mxu0 %v1752
  %v1898 = vpop.f32.mrf.mxu0
  %v1899 = vadd.f32 0.0, %v1898
  %v1900 = vpop.f32.mrf.mxu0
  %v1901 = vadd.f32 0.0, %v1900
  %1902 = vmatmul.bf16.gmra.mxu0 %v1756
  %v1903 = vpop.f32.mrf.mxu0
  %v1904 = vadd.f32 0.0, %v1903
  %v1905 = vpop.f32.mrf.mxu0
  %v1906 = vadd.f32 0.0, %v1905
  %1907 = vmatmul.bf16.gmra.mxu0 %v1760
  %v1908 = vpop.f32.mrf.mxu0
  %v1909 = vadd.f32 0.0, %v1908
  %v1910 = vpop.f32.mrf.mxu0
  %v1911 = vadd.f32 0.0, %v1910
  %1912 = vmatmul.bf16.gmra.mxu0 %v1764
  %v1913 = vpop.f32.mrf.mxu0
  %v1914 = vadd.f32 0.0, %v1913
  %v1915 = vpop.f32.mrf.mxu0
  %v1916 = vadd.f32 0.0, %v1915
  %1917 = vmatmul.bf16.gmra.mxu0 %v1768
  %v1918 = vpop.f32.mrf.mxu0
  %v1919 = vadd.f32 0.0, %v1918
  %v1920 = vpop.f32.mrf.mxu0
  %v1921 = vadd.f32 0.0, %v1920
  %1922 = vmatmul.bf16.gmra.mxu0 %v1772
  %v1923 = vpop.f32.mrf.mxu0
  %v1924 = vadd.f32 0.0, %v1923
  %v1925 = vpop.f32.mrf.mxu0
  %1926 = vdwg.mxu0
  %1927 = vmatpush.bf16.msra.mxu0 %v518
  %1928 = vmatpush.bf16.msra.mxu0 %v517
  %1929 = vmatpush.bf16.msra.mxu0 %v516
  %1930 = vmatpush.bf16.msra.mxu0 %v515
  %1931 = vmatpush.bf16.msra.mxu0 %v514
  %1932 = vmatpush.bf16.msra.mxu0 %v513
  %1933 = vmatpush.bf16.msra.mxu0 %v512
  %1934 = vmatpush.bf16.msra.mxu0 %v511
  %1935 = vmatmul.bf16.gmra.mxu0 %v1725
  %v1936 = vpop.f32.mrf.mxu0
  %v1937 = vadd.f32 %v1864, %v1936
  %v1938 = vpop.f32.mrf.mxu0
  %v1939 = vadd.f32 %v1866, %v1938
  %1940 = vmatmul.bf16.gmra.mxu0 %v1729
  %v1941 = vpop.f32.mrf.mxu0
  %v1942 = vadd.f32 %v1869, %v1941
  %v1943 = vpop.f32.mrf.mxu0
  %v1944 = vadd.f32 %v1871, %v1943
  %1945 = vmatmul.bf16.gmra.mxu0 %v1733
  %v1946 = vpop.f32.mrf.mxu0
  %v1947 = vadd.f32 %v1874, %v1946
  %v1948 = vpop.f32.mrf.mxu0
  %v1949 = vadd.f32 %v1876, %v1948
  %1950 = vmatmul.bf16.gmra.mxu0 %v1737
  %v1951 = vpop.f32.mrf.mxu0
  %v1952 = vadd.f32 %v1879, %v1951
  %v1953 = vpop.f32.mrf.mxu0
  %v1954 = vadd.f32 %v1881, %v1953
  %1955 = vmatmul.bf16.gmra.mxu0 %v1741
  %v1956 = vpop.f32.mrf.mxu0
  %v1957 = vadd.f32 %v1884, %v1956
  %v1958 = vpop.f32.mrf.mxu0
  %v1959 = vadd.f32 %v1886, %v1958
  %1960 = vmatmul.bf16.gmra.mxu0 %v1745
  %v1961 = vpop.f32.mrf.mxu0
  %v1962 = vadd.f32 %v1889, %v1961
  %v1963 = vpop.f32.mrf.mxu0
  %v1964 = vadd.f32 %v1891, %v1963
  %1965 = vmatmul.bf16.gmra.mxu0 %v1749
  %v1966 = vpop.f32.mrf.mxu0
  %v1967 = vadd.f32 %v1894, %v1966
  %v1968 = vpop.f32.mrf.mxu0
  %v1969 = vadd.f32 %v1896, %v1968
  %1970 = vmatmul.bf16.gmra.mxu0 %v1753
  %v1971 = vpop.f32.mrf.mxu0
  %v1972 = vadd.f32 %v1899, %v1971
  %v1973 = vpop.f32.mrf.mxu0
  %v1974 = vadd.f32 %v1901, %v1973
  %1975 = vmatmul.bf16.gmra.mxu0 %v1757
  %v1976 = vpop.f32.mrf.mxu0
  %v1977 = vadd.f32 %v1904, %v1976
  %v1978 = vpop.f32.mrf.mxu0
  %v1979 = vadd.f32 %v1906, %v1978
  %1980 = vmatmul.bf16.gmra.mxu0 %v1761
  %v1981 = vpop.f32.mrf.mxu0
  %v1982 = vadd.f32 %v1909, %v1981
  %v1983 = vpop.f32.mrf.mxu0
  %v1984 = vadd.f32 %v1911, %v1983
  %1985 = vmatmul.bf16.gmra.mxu0 %v1765
  %v1986 = vpop.f32.mrf.mxu0
  %v1987 = vadd.f32 %v1914, %v1986
  %v1988 = vpop.f32.mrf.mxu0
  %v1989 = vadd.f32 %v1916, %v1988
  %1990 = vmatmul.bf16.gmra.mxu0 %v1769
  %v1991 = vpop.f32.mrf.mxu0
  %v1992 = vadd.f32 %v1919, %v1991
  %v1993 = vpop.f32.mrf.mxu0
  %v1994 = vadd.f32 %v1921, %v1993
  %1995 = vmatmul.bf16.gmra.mxu0 %v1773
  %v1996 = vpop.f32.mrf.mxu0
  %v1997 = vadd.f32 %v1924, %v1996
  %v1998 = vpop.f32.mrf.mxu0
  %1999 = vdwg.mxu0
  %2000 = vmatpush.bf16.msra.mxu0 %v526
  %2001 = vmatpush.bf16.msra.mxu0 %v525
  %2002 = vmatpush.bf16.msra.mxu0 %v524
  %2003 = vmatpush.bf16.msra.mxu0 %v523
  %2004 = vmatpush.bf16.msra.mxu0 %v522
  %2005 = vmatpush.bf16.msra.mxu0 %v521
  %2006 = vmatpush.bf16.msra.mxu0 %v520
  %2007 = vmatpush.bf16.msra.mxu0 %v519
  %2008 = vmatmul.bf16.gmra.mxu0 %v1726
  %v2009 = vpop.f32.mrf.mxu0
  %v2010 = vadd.f32 %v1937, %v2009
  %v2011 = vpop.f32.mrf.mxu0
  %v2012 = vadd.f32 %v1939, %v2011
  %2013 = vmatmul.bf16.gmra.mxu0 %v1730
  %v2014 = vpop.f32.mrf.mxu0
  %v2015 = vadd.f32 %v1942, %v2014
  %v2016 = vpop.f32.mrf.mxu0
  %v2017 = vadd.f32 %v1944, %v2016
  %2018 = vmatmul.bf16.gmra.mxu0 %v1734
  %v2019 = vpop.f32.mrf.mxu0
  %v2020 = vadd.f32 %v1947, %v2019
  %v2021 = vpop.f32.mrf.mxu0
  %v2022 = vadd.f32 %v1949, %v2021
  %2023 = vmatmul.bf16.gmra.mxu0 %v1738
  %v2024 = vpop.f32.mrf.mxu0
  %v2025 = vadd.f32 %v1952, %v2024
  %v2026 = vpop.f32.mrf.mxu0
  %v2027 = vadd.f32 %v1954, %v2026
  %2028 = vmatmul.bf16.gmra.mxu0 %v1742
  %v2029 = vpop.f32.mrf.mxu0
  %v2030 = vadd.f32 %v1957, %v2029
  %v2031 = vpop.f32.mrf.mxu0
  %v2032 = vadd.f32 %v1959, %v2031
  %2033 = vmatmul.bf16.gmra.mxu0 %v1746
  %v2034 = vpop.f32.mrf.mxu0
  %v2035 = vadd.f32 %v1962, %v2034
  %v2036 = vpop.f32.mrf.mxu0
  %v2037 = vadd.f32 %v1964, %v2036
  %2038 = vmatmul.bf16.gmra.mxu0 %v1750
  %v2039 = vpop.f32.mrf.mxu0
  %v2040 = vadd.f32 %v1967, %v2039
  %v2041 = vpop.f32.mrf.mxu0
  %v2042 = vadd.f32 %v1969, %v2041
  %2043 = vmatmul.bf16.gmra.mxu0 %v1754
  %v2044 = vpop.f32.mrf.mxu0
  %v2045 = vadd.f32 %v1972, %v2044
  %v2046 = vpop.f32.mrf.mxu0
  %v2047 = vadd.f32 %v1974, %v2046
  %2048 = vmatmul.bf16.gmra.mxu0 %v1758
  %v2049 = vpop.f32.mrf.mxu0
  %v2050 = vadd.f32 %v1977, %v2049
  %v2051 = vpop.f32.mrf.mxu0
  %v2052 = vadd.f32 %v1979, %v2051
  %2053 = vmatmul.bf16.gmra.mxu0 %v1762
  %v2054 = vpop.f32.mrf.mxu0
  %v2055 = vadd.f32 %v1982, %v2054
  %v2056 = vpop.f32.mrf.mxu0
  %v2057 = vadd.f32 %v1984, %v2056
  %2058 = vmatmul.bf16.gmra.mxu0 %v1766
  %v2059 = vpop.f32.mrf.mxu0
  %v2060 = vadd.f32 %v1987, %v2059
  %v2061 = vpop.f32.mrf.mxu0
  %v2062 = vadd.f32 %v1989, %v2061
  %2063 = vmatmul.bf16.gmra.mxu0 %v1770
  %v2064 = vpop.f32.mrf.mxu0
  %v2065 = vadd.f32 %v1992, %v2064
  %v2066 = vpop.f32.mrf.mxu0
  %v2067 = vadd.f32 %v1994, %v2066
  %2068 = vmatmul.bf16.gmra.mxu0 %v1774
  %v2069 = vpop.f32.mrf.mxu0
  %v2070 = vadd.f32 %v1997, %v2069
  %v2071 = vpop.f32.mrf.mxu0
  %2072 = vdwg.mxu0
  %2073 = vmatpush.bf16.msra.mxu0 %v608
  %2074 = vmatpush.bf16.msra.mxu0 %v533
  %2075 = vmatpush.bf16.msra.mxu0 %v532
  %2076 = vmatpush.bf16.msra.mxu0 %v531
  %2077 = vmatpush.bf16.msra.mxu0 %v530
  %2078 = vmatpush.bf16.msra.mxu0 %v529
  %2079 = vmatpush.bf16.msra.mxu0 %v528
  %2080 = vmatpush.bf16.msra.mxu0 %v527
  %2081 = vmatmul.bf16.gmra.mxu0 %v1816
  %v2082 = vpop.f32.mrf.mxu0
  %v2083 = vadd.f32 %v2010, %v2082
  %v2084 = vpop.f32.mrf.mxu0
  %v2085 = vadd.f32 %v2012, %v2084
  %2086 = vmatmul.bf16.gmra.mxu0 %v1819
  %v2087 = vpop.f32.mrf.mxu0
  %v2088 = vadd.f32 %v2015, %v2087
  %v2089 = vpop.f32.mrf.mxu0
  %v2090 = vadd.f32 %v2017, %v2089
  %2091 = vmatmul.bf16.gmra.mxu0 %v1822
  %v2092 = vpop.f32.mrf.mxu0
  %v2093 = vadd.f32 %v2020, %v2092
  %v2094 = vpop.f32.mrf.mxu0
  %v2095 = vadd.f32 %v2022, %v2094
  %2096 = vmatmul.bf16.gmra.mxu0 %v1825
  %v2097 = vpop.f32.mrf.mxu0
  %v2098 = vadd.f32 %v2025, %v2097
  %v2099 = vpop.f32.mrf.mxu0
  %v2100 = vadd.f32 %v2027, %v2099
  %2101 = vmatmul.bf16.gmra.mxu0 %v1828
  %v2102 = vpop.f32.mrf.mxu0
  %v2103 = vadd.f32 %v2030, %v2102
  %v2104 = vpop.f32.mrf.mxu0
  %v2105 = vadd.f32 %v2032, %v2104
  %2106 = vmatmul.bf16.gmra.mxu0 %v1831
  %v2107 = vpop.f32.mrf.mxu0
  %v2108 = vadd.f32 %v2035, %v2107
  %v2109 = vpop.f32.mrf.mxu0
  %v2110 = vadd.f32 %v2037, %v2109
  %2111 = vmatmul.bf16.gmra.mxu0 %v1834
  %v2112 = vpop.f32.mrf.mxu0
  %v2113 = vadd.f32 %v2040, %v2112
  %v2114 = vpop.f32.mrf.mxu0
  %v2115 = vadd.f32 %v2042, %v2114
  %2116 = vmatmul.bf16.gmra.mxu0 %v1837
  %v2117 = vpop.f32.mrf.mxu0
  %v2118 = vadd.f32 %v2045, %v2117
  %v2119 = vpop.f32.mrf.mxu0
  %v2120 = vadd.f32 %v2047, %v2119
  %2121 = vmatmul.bf16.gmra.mxu0 %v1840
  %v2122 = vpop.f32.mrf.mxu0
  %v2123 = vadd.f32 %v2050, %v2122
  %v2124 = vpop.f32.mrf.mxu0
  %v2125 = vadd.f32 %v2052, %v2124
  %2126 = vmatmul.bf16.gmra.mxu0 %v1843
  %v2127 = vpop.f32.mrf.mxu0
  %v2128 = vadd.f32 %v2055, %v2127
  %v2129 = vpop.f32.mrf.mxu0
  %v2130 = vadd.f32 %v2057, %v2129
  %2131 = vmatmul.bf16.gmra.mxu0 %v1846
  %v2132 = vpop.f32.mrf.mxu0
  %v2133 = vadd.f32 %v2060, %v2132
  %v2134 = vpop.f32.mrf.mxu0
  %v2135 = vadd.f32 %v2062, %v2134
  %2136 = vmatmul.bf16.gmra.mxu0 %v1849
  %v2137 = vpop.f32.mrf.mxu0
  %v2138 = vadd.f32 %v2065, %v2137
  %v2139 = vpop.f32.mrf.mxu0
  %v2140 = vadd.f32 %v2067, %v2139
  %2141 = vmatmul.bf16.gmra.mxu0 %v1852
  %v2142 = vpop.f32.mrf.mxu0
  %v2143 = vadd.f32 %v2070, %v2142
  %v2144 = vpop.f32.mrf.mxu0
  %2145 = vdwg.mxu0
  %v2146 = vld [vmem:[%s3] sm:$0xff]
  %v2147 = vld [vmem:[%s3 + $0x8] sm:$0xff]
  %v2148 = vld [vmem:[%s3 + $0x10] sm:$0xff]
  %v2149 = vld [vmem:[%s3 + $0x18] sm:$0xff]
  %v2150 = vld [vmem:[%s3 + $0x20] sm:$0xff]
  %v2151 = vld [vmem:[%s3 + $0x28] sm:$0xff]
  %v2152 = vld [vmem:[%s3 + $0x30] sm:$0xff]
  %v2153 = vld [vmem:[%s3 + $0x38] sm:$0xff]
  %v2154 = vld [vmem:[%s3 + $0x40] sm:$0xff]
  %v2155 = vld [vmem:[%s3 + $0x48] sm:$0xff]
  %v2156 = vld [vmem:[%s3 + $0x50] sm:$0xff]
  %v2157 = vld [vmem:[%s3 + $0x58] sm:$0xff]
  %v2158 = vld [vmem:[%s3 + $0x60] sm:$0xff]
  %v2159 = vld [vmem:[%s3 + $0x68] sm:$0xff]
  %v2160 = vld [vmem:[%s3 + $0x70] sm:$0xff]
  %v2161 = vld [vmem:[%s3 + $0x78] sm:$0xff]
  %v2162 = vld [vmem:[%s3 + $0x80] sm:$0xff]
  %v2163 = vld [vmem:[%s3 + $0x88] sm:$0xff]
  %v2164 = vld [vmem:[%s3 + $0x90] sm:$0xff]
  %v2165 = vld [vmem:[%s3 + $0x98] sm:$0xff]
  %v2166 = vld [vmem:[%s3 + $0xa0] sm:$0xff]
  %v2167 = vld [vmem:[%s3 + $0xa8] sm:$0xff]
  %v2168 = vld [vmem:[%s3 + $0xb0] sm:$0xff]
  %v2169 = vld [vmem:[%s3 + $0xb8] sm:$0xff]
  %v2170 = vld [vmem:[%s3 + $0xc0] sm:$0xff]
  %v2171 = vld [vmem:[%s3 + $0xc8] sm:$0xff]
  %v2172 = vld [vmem:[%s3 + $0xd0] sm:$0xff]
  %v2173 = vld [vmem:[%s3 + $0xd8] sm:$0xff]
  %v2174 = vld [vmem:[%s3 + $0xe0] sm:$0xff]
  %v2175 = vld [vmem:[%s3 + $0xe8] sm:$0xff]
  %v2176 = vld [vmem:[%s3 + $0xf0] sm:$0xff]
  %v2177 = vld [vmem:[%s3 + $0xf8] sm:$0xff]
  %v2178 = vld [vmem:[%s3 + $0x100] sm:$0xff]
  %v2179 = vld [vmem:[%s3 + $0x108] sm:$0xff]
  %v2180 = vld [vmem:[%s3 + $0x110] sm:$0xff]
  %v2181 = vld [vmem:[%s3 + $0x118] sm:$0xff]
  %v2182 = vld [vmem:[%s3 + $0x120] sm:$0xff]
  %v2183 = vld [vmem:[%s3 + $0x128] sm:$0xff]
  %v2184 = vld [vmem:[%s3 + $0x130] sm:$0xff]
  %v2185 = vld [vmem:[%s3 + $0x138] sm:$0xff]
  %v2186 = vld [vmem:[%s3 + $0x140] sm:$0xff]
  %v2187 = vld [vmem:[%s3 + $0x148] sm:$0xff]
  %v2188 = vld [vmem:[%s3 + $0x150] sm:$0xff]
  %v2189 = vld [vmem:[%s3 + $0x158] sm:$0xff]
  %v2190 = vld [vmem:[%s3 + $0x160] sm:$0xff]
  %v2191 = vld [vmem:[%s3 + $0x168] sm:$0xff]
  %v2192 = vld [vmem:[%s3 + $0x170] sm:$0xff]
  %v2193 = vld [vmem:[%s3 + $0x178] sm:$0xff]
  %v2194 = vld [vmem:[%s3 + $0x180] sm:$0xff]
  %v2195 = vld [vmem:[%s3 + $0x188] sm:$0xff]
  %v2246 = vunpack.c.l.b16 %v2146
  %v2247 = vunpack.c.h.b16 %v2146
  %v2248 = vunpack.c.l.b16 %v2147
  %v2249 = vunpack.c.h.b16 %v2147
  %v2250 = vunpack.c.l.b16 %v2148
  %v2251 = vunpack.c.h.b16 %v2148
  %v2252 = vunpack.c.l.b16 %v2149
  %v2253 = vunpack.c.h.b16 %v2149
  %v2254 = vunpack.c.l.b16 %v2150
  %v2255 = vunpack.c.h.b16 %v2150
  %v2256 = vunpack.c.l.b16 %v2151
  %v2257 = vunpack.c.h.b16 %v2151
  %v2258 = vunpack.c.l.b16 %v2152
  %v2259 = vunpack.c.h.b16 %v2152
  %v2260 = vunpack.c.l.b16 %v2153
  %v2261 = vunpack.c.h.b16 %v2153
  %v2262 = vunpack.c.l.b16 %v2154
  %v2263 = vunpack.c.h.b16 %v2154
  %v2264 = vunpack.c.l.b16 %v2155
  %v2265 = vunpack.c.h.b16 %v2155
  %v2266 = vunpack.c.l.b16 %v2156
  %v2267 = vunpack.c.h.b16 %v2156
  %v2268 = vunpack.c.l.b16 %v2157
  %v2269 = vunpack.c.h.b16 %v2157
  %v2270 = vunpack.c.l.b16 %v2158
  %v2271 = vunpack.c.h.b16 %v2158
  %v2272 = vunpack.c.l.b16 %v2159
  %v2273 = vunpack.c.h.b16 %v2159
  %v2274 = vunpack.c.l.b16 %v2160
  %v2275 = vunpack.c.h.b16 %v2160
  %v2276 = vunpack.c.l.b16 %v2161
  %v2277 = vunpack.c.h.b16 %v2161
  %v2278 = vunpack.c.l.b16 %v2162
  %v2279 = vunpack.c.h.b16 %v2162
  %v2280 = vunpack.c.l.b16 %v2163
  %v2281 = vunpack.c.h.b16 %v2163
  %v2282 = vunpack.c.l.b16 %v2164
  %v2283 = vunpack.c.h.b16 %v2164
  %v2284 = vunpack.c.l.b16 %v2165
  %v2285 = vunpack.c.h.b16 %v2165
  %v2286 = vunpack.c.l.b16 %v2166
  %v2287 = vunpack.c.h.b16 %v2166
  %v2288 = vunpack.c.l.b16 %v2167
  %v2289 = vunpack.c.h.b16 %v2167
  %v2290 = vunpack.c.l.b16 %v2168
  %v2291 = vunpack.c.h.b16 %v2168
  %v2292 = vunpack.c.l.b16 %v2169
  %v2293 = vunpack.c.h.b16 %v2169
  %v2294 = vunpack.c.l.b16 %v2170
  %v2295 = vunpack.c.h.b16 %v2170
  %v2296 = vunpack.c.l.b16 %v2171
  %v2297 = vunpack.c.h.b16 %v2171
  %v2298 = vunpack.c.l.b16 %v2172
  %v2299 = vunpack.c.h.b16 %v2172
  %v2300 = vunpack.c.l.b16 %v2173
  %v2301 = vunpack.c.h.b16 %v2173
  %v2302 = vunpack.c.l.b16 %v2174
  %v2303 = vunpack.c.h.b16 %v2174
  %v2304 = vunpack.c.l.b16 %v2175
  %v2305 = vunpack.c.h.b16 %v2175
  %v2306 = vunpack.c.l.b16 %v2176
  %v2307 = vunpack.c.h.b16 %v2176
  %v2308 = vunpack.c.l.b16 %v2177
  %v2309 = vunpack.c.h.b16 %v2177
  %v2310 = vunpack.c.l.b16 %v2178
  %v2311 = vunpack.c.h.b16 %v2178
  %v2312 = vunpack.c.l.b16 %v2179
  %v2313 = vunpack.c.h.b16 %v2179
  %v2314 = vunpack.c.l.b16 %v2180
  %v2315 = vunpack.c.h.b16 %v2180
  %v2316 = vunpack.c.l.b16 %v2181
  %v2317 = vunpack.c.h.b16 %v2181
  %v2318 = vunpack.c.l.b16 %v2182
  %v2319 = vunpack.c.h.b16 %v2182
  %v2320 = vunpack.c.l.b16 %v2183
  %v2321 = vunpack.c.h.b16 %v2183
  %v2322 = vunpack.c.l.b16 %v2184
  %v2323 = vunpack.c.h.b16 %v2184
  %v2324 = vunpack.c.l.b16 %v2185
  %v2325 = vunpack.c.h.b16 %v2185
  %v2326 = vunpack.c.l.b16 %v2186
  %v2327 = vunpack.c.h.b16 %v2186
  %v2328 = vunpack.c.l.b16 %v2187
  %v2329 = vunpack.c.h.b16 %v2187
  %v2330 = vunpack.c.l.b16 %v2188
  %v2331 = vunpack.c.h.b16 %v2188
  %v2332 = vunpack.c.l.b16 %v2189
  %v2333 = vunpack.c.h.b16 %v2189
  %v2334 = vunpack.c.l.b16 %v2190
  %v2335 = vunpack.c.h.b16 %v2190
  %v2336 = vunpack.c.l.b16 %v2191
  %v2337 = vunpack.c.h.b16 %v2191
  %v2338 = vunpack.c.l.b16 %v2192
  %v2339 = vunpack.c.h.b16 %v2192
  %v2340 = vunpack.c.l.b16 %v2193
  %v2341 = vunpack.c.h.b16 %v2193
  %v2342 = vunpack.c.l.b16 %v2194
  %v2343 = vunpack.c.h.b16 %v2194
  %v2344 = vunpack.c.l.b16 %v2195
  %v2345 = vunpack.c.h.b16 %v2195
  %v2346 = vpack.c.b16 %v2250, %v2246
  %v2347 = vpack.c.b16 %v2251, %v2247
  %v2348 = vpack.c.b16 %v2252, %v2248
  %v2349 = vpack.c.b16 %v2253, %v2249
  %v2350 = vpack.c.b16 %v2258, %v2254
  %v2351 = vpack.c.b16 %v2259, %v2255
  %v2352 = vpack.c.b16 %v2260, %v2256
  %v2353 = vpack.c.b16 %v2261, %v2257
  %v2354 = vpack.c.b16 %v2266, %v2262
  %v2355 = vpack.c.b16 %v2267, %v2263
  %v2356 = vpack.c.b16 %v2268, %v2264
  %v2357 = vpack.c.b16 %v2269, %v2265
  %v2358 = vpack.c.b16 %v2274, %v2270
  %v2359 = vpack.c.b16 %v2275, %v2271
  %v2360 = vpack.c.b16 %v2276, %v2272
  %v2361 = vpack.c.b16 %v2277, %v2273
  %v2362 = vpack.c.b16 %v2282, %v2278
  %v2363 = vpack.c.b16 %v2283, %v2279
  %v2364 = vpack.c.b16 %v2284, %v2280
  %v2365 = vpack.c.b16 %v2285, %v2281
  %v2366 = vpack.c.b16 %v2290, %v2286
  %v2367 = vpack.c.b16 %v2291, %v2287
  %v2368 = vpack.c.b16 %v2292, %v2288
  %v2369 = vpack.c.b16 %v2293, %v2289
  %v2370 = vpack.c.b16 %v2298, %v2294
  %v2371 = vpack.c.b16 %v2299, %v2295
  %v2372 = vpack.c.b16 %v2300, %v2296
  %v2373 = vpack.c.b16 %v2301, %v2297
  %v2374 = vpack.c.b16 %v2306, %v2302
  %v2375 = vpack.c.b16 %v2307, %v2303
  %v2376 = vpack.c.b16 %v2308, %v2304
  %v2377 = vpack.c.b16 %v2309, %v2305
  %v2378 = vpack.c.b16 %v2314, %v2310
  %v2379 = vpack.c.b16 %v2315, %v2311
  %v2380 = vpack.c.b16 %v2316, %v2312
  %v2381 = vpack.c.b16 %v2317, %v2313
  %v2382 = vpack.c.b16 %v2322, %v2318
  %v2383 = vpack.c.b16 %v2323, %v2319
  %v2384 = vpack.c.b16 %v2324, %v2320
  %v2385 = vpack.c.b16 %v2325, %v2321
  %v2386 = vpack.c.b16 %v2330, %v2326
  %v2387 = vpack.c.b16 %v2331, %v2327
  %v2388 = vpack.c.b16 %v2332, %v2328
  %v2389 = vpack.c.b16 %v2333, %v2329
  %v2390 = vpack.c.b16 %v2338, %v2334
  %v2391 = vpack.c.b16 %v2339, %v2335
  %v2392 = vpack.c.b16 %v2340, %v2336
  %v2393 = vpack.c.b16 %v2341, %v2337
  %v2394 = vpack.c.b16 %v2342, %v2342
  %v2395 = vpack.c.b16 %v2343, %v2343
  %v2396 = vpack.c.b16 %v2344, %v2344
  %v2397 = vpack.c.b16 %v2345, %v2345
  %v2438 = vsel %vm566, %v2349, 0
  %v2441 = vsel %vm566, %v2353, 0
  %v2444 = vsel %vm566, %v2357, 0
  %v2447 = vsel %vm566, %v2361, 0
  %v2450 = vsel %vm566, %v2365, 0
  %v2453 = vsel %vm566, %v2369, 0
  %v2456 = vsel %vm566, %v2373, 0
  %v2459 = vsel %vm566, %v2377, 0
  %v2462 = vsel %vm566, %v2381, 0
  %v2465 = vsel %vm566, %v2385, 0
  %v2468 = vsel %vm566, %v2389, 0
  %v2471 = vsel %vm566, %v2393, 0
  %v2474 = vsel %vm566, %v2397, 0
  %2476 = vmatpush.bf16.msra.mxu0 %v510
  %2477 = vmatpush.bf16.msra.mxu0 %v509
  %2478 = vmatpush.bf16.msra.mxu0 %v508
  %2479 = vmatpush.bf16.msra.mxu0 %v507
  %2480 = vmatpush.bf16.msra.mxu0 %v506
  %2481 = vmatpush.bf16.msra.mxu0 %v505
  %2482 = vmatpush.bf16.msra.mxu0 %v504
  %2483 = vmatpush.bf16.msra.mxu0 %v503
  %2484 = vmatmul.bf16.gmra.mxu0 %v2346
  %v2485 = vpop.f32.mrf.mxu0
  %v2486 = vadd.f32 0.0, %v2485
  %v2487 = vpop.f32.mrf.mxu0
  %v2488 = vadd.f32 0.0, %v2487
  %2489 = vmatmul.bf16.gmra.mxu0 %v2350
  %v2490 = vpop.f32.mrf.mxu0
  %v2491 = vadd.f32 0.0, %v2490
  %v2492 = vpop.f32.mrf.mxu0
  %v2493 = vadd.f32 0.0, %v2492
  %2494 = vmatmul.bf16.gmra.mxu0 %v2354
  %v2495 = vpop.f32.mrf.mxu0
  %v2496 = vadd.f32 0.0, %v2495
  %v2497 = vpop.f32.mrf.mxu0
  %v2498 = vadd.f32 0.0, %v2497
  %2499 = vmatmul.bf16.gmra.mxu0 %v2358
  %v2500 = vpop.f32.mrf.mxu0
  %v2501 = vadd.f32 0.0, %v2500
  %v2502 = vpop.f32.mrf.mxu0
  %v2503 = vadd.f32 0.0, %v2502
  %2504 = vmatmul.bf16.gmra.mxu0 %v2362
  %v2505 = vpop.f32.mrf.mxu0
  %v2506 = vadd.f32 0.0, %v2505
  %v2507 = vpop.f32.mrf.mxu0
  %v2508 = vadd.f32 0.0, %v2507
  %2509 = vmatmul.bf16.gmra.mxu0 %v2366
  %v2510 = vpop.f32.mrf.mxu0
  %v2511 = vadd.f32 0.0, %v2510
  %v2512 = vpop.f32.mrf.mxu0
  %v2513 = vadd.f32 0.0, %v2512
  %2514 = vmatmul.bf16.gmra.mxu0 %v2370
  %v2515 = vpop.f32.mrf.mxu0
  %v2516 = vadd.f32 0.0, %v2515
  %v2517 = vpop.f32.mrf.mxu0
  %v2518 = vadd.f32 0.0, %v2517
  %2519 = vmatmul.bf16.gmra.mxu0 %v2374
  %v2520 = vpop.f32.mrf.mxu0
  %v2521 = vadd.f32 0.0, %v2520
  %v2522 = vpop.f32.mrf.mxu0
  %v2523 = vadd.f32 0.0, %v2522
  %2524 = vmatmul.bf16.gmra.mxu0 %v2378
  %v2525 = vpop.f32.mrf.mxu0
  %v2526 = vadd.f32 0.0, %v2525
  %v2527 = vpop.f32.mrf.mxu0
  %v2528 = vadd.f32 0.0, %v2527
  %2529 = vmatmul.bf16.gmra.mxu0 %v2382
  %v2530 = vpop.f32.mrf.mxu0
  %v2531 = vadd.f32 0.0, %v2530
  %v2532 = vpop.f32.mrf.mxu0
  %v2533 = vadd.f32 0.0, %v2532
  %2534 = vmatmul.bf16.gmra.mxu0 %v2386
  %v2535 = vpop.f32.mrf.mxu0
  %v2536 = vadd.f32 0.0, %v2535
  %v2537 = vpop.f32.mrf.mxu0
  %v2538 = vadd.f32 0.0, %v2537
  %2539 = vmatmul.bf16.gmra.mxu0 %v2390
  %v2540 = vpop.f32.mrf.mxu0
  %v2541 = vadd.f32 0.0, %v2540
  %v2542 = vpop.f32.mrf.mxu0
  %v2543 = vadd.f32 0.0, %v2542
  %2544 = vmatmul.bf16.gmra.mxu0 %v2394
  %v2545 = vpop.f32.mrf.mxu0
  %v2546 = vadd.f32 0.0, %v2545
  %v2547 = vpop.f32.mrf.mxu0
  %2548 = vdwg.mxu0
  %2549 = vmatpush.bf16.msra.mxu0 %v518
  %2550 = vmatpush.bf16.msra.mxu0 %v517
  %2551 = vmatpush.bf16.msra.mxu0 %v516
  %2552 = vmatpush.bf16.msra.mxu0 %v515
  %2553 = vmatpush.bf16.msra.mxu0 %v514
  %2554 = vmatpush.bf16.msra.mxu0 %v513
  %2555 = vmatpush.bf16.msra.mxu0 %v512
  %2556 = vmatpush.bf16.msra.mxu0 %v511
  %2557 = vmatmul.bf16.gmra.mxu0 %v2347
  %v2558 = vpop.f32.mrf.mxu0
  %v2559 = vadd.f32 %v2486, %v2558
  %v2560 = vpop.f32.mrf.mxu0
  %v2561 = vadd.f32 %v2488, %v2560
  %2562 = vmatmul.bf16.gmra.mxu0 %v2351
  %v2563 = vpop.f32.mrf.mxu0
  %v2564 = vadd.f32 %v2491, %v2563
  %v2565 = vpop.f32.mrf.mxu0
  %v2566 = vadd.f32 %v2493, %v2565
  %2567 = vmatmul.bf16.gmra.mxu0 %v2355
  %v2568 = vpop.f32.mrf.mxu0
  %v2569 = vadd.f32 %v2496, %v2568
  %v2570 = vpop.f32.mrf.mxu0
  %v2571 = vadd.f32 %v2498, %v2570
  %2572 = vmatmul.bf16.gmra.mxu0 %v2359
  %v2573 = vpop.f32.mrf.mxu0
  %v2574 = vadd.f32 %v2501, %v2573
  %v2575 = vpop.f32.mrf.mxu0
  %v2576 = vadd.f32 %v2503, %v2575
  %2577 = vmatmul.bf16.gmra.mxu0 %v2363
  %v2578 = vpop.f32.mrf.mxu0
  %v2579 = vadd.f32 %v2506, %v2578
  %v2580 = vpop.f32.mrf.mxu0
  %v2581 = vadd.f32 %v2508, %v2580
  %2582 = vmatmul.bf16.gmra.mxu0 %v2367
  %v2583 = vpop.f32.mrf.mxu0
  %v2584 = vadd.f32 %v2511, %v2583
  %v2585 = vpop.f32.mrf.mxu0
  %v2586 = vadd.f32 %v2513, %v2585
  %2587 = vmatmul.bf16.gmra.mxu0 %v2371
  %v2588 = vpop.f32.mrf.mxu0
  %v2589 = vadd.f32 %v2516, %v2588
  %v2590 = vpop.f32.mrf.mxu0
  %v2591 = vadd.f32 %v2518, %v2590
  %2592 = vmatmul.bf16.gmra.mxu0 %v2375
  %v2593 = vpop.f32.mrf.mxu0
  %v2594 = vadd.f32 %v2521, %v2593
  %v2595 = vpop.f32.mrf.mxu0
  %v2596 = vadd.f32 %v2523, %v2595
  %2597 = vmatmul.bf16.gmra.mxu0 %v2379
  %v2598 = vpop.f32.mrf.mxu0
  %v2599 = vadd.f32 %v2526, %v2598
  %v2600 = vpop.f32.mrf.mxu0
  %v2601 = vadd.f32 %v2528, %v2600
  %2602 = vmatmul.bf16.gmra.mxu0 %v2383
  %v2603 = vpop.f32.mrf.mxu0
  %v2604 = vadd.f32 %v2531, %v2603
  %v2605 = vpop.f32.mrf.mxu0
  %v2606 = vadd.f32 %v2533, %v2605
  %2607 = vmatmul.bf16.gmra.mxu0 %v2387
  %v2608 = vpop.f32.mrf.mxu0
  %v2609 = vadd.f32 %v2536, %v2608
  %v2610 = vpop.f32.mrf.mxu0
  %v2611 = vadd.f32 %v2538, %v2610
  %2612 = vmatmul.bf16.gmra.mxu0 %v2391
  %v2613 = vpop.f32.mrf.mxu0
  %v2614 = vadd.f32 %v2541, %v2613
  %v2615 = vpop.f32.mrf.mxu0
  %v2616 = vadd.f32 %v2543, %v2615
  %2617 = vmatmul.bf16.gmra.mxu0 %v2395
  %v2618 = vpop.f32.mrf.mxu0
  %v2619 = vadd.f32 %v2546, %v2618
  %v2620 = vpop.f32.mrf.mxu0
  %2621 = vdwg.mxu0
  %2622 = vmatpush.bf16.msra.mxu0 %v526
  %2623 = vmatpush.bf16.msra.mxu0 %v525
  %2624 = vmatpush.bf16.msra.mxu0 %v524
  %2625 = vmatpush.bf16.msra.mxu0 %v523
  %2626 = vmatpush.bf16.msra.mxu0 %v522
  %2627 = vmatpush.bf16.msra.mxu0 %v521
  %2628 = vmatpush.bf16.msra.mxu0 %v520
  %2629 = vmatpush.bf16.msra.mxu0 %v519
  %2630 = vmatmul.bf16.gmra.mxu0 %v2348
  %v2631 = vpop.f32.mrf.mxu0
  %v2632 = vadd.f32 %v2559, %v2631
  %v2633 = vpop.f32.mrf.mxu0
  %v2634 = vadd.f32 %v2561, %v2633
  %2635 = vmatmul.bf16.gmra.mxu0 %v2352
  %v2636 = vpop.f32.mrf.mxu0
  %v2637 = vadd.f32 %v2564, %v2636
  %v2638 = vpop.f32.mrf.mxu0
  %v2639 = vadd.f32 %v2566, %v2638
  %2640 = vmatmul.bf16.gmra.mxu0 %v2356
  %v2641 = vpop.f32.mrf.mxu0
  %v2642 = vadd.f32 %v2569, %v2641
  %v2643 = vpop.f32.mrf.mxu0
  %v2644 = vadd.f32 %v2571, %v2643
  %2645 = vmatmul.bf16.gmra.mxu0 %v2360
  %v2646 = vpop.f32.mrf.mxu0
  %v2647 = vadd.f32 %v2574, %v2646
  %v2648 = vpop.f32.mrf.mxu0
  %v2649 = vadd.f32 %v2576, %v2648
  %2650 = vmatmul.bf16.gmra.mxu0 %v2364
  %v2651 = vpop.f32.mrf.mxu0
  %v2652 = vadd.f32 %v2579, %v2651
  %v2653 = vpop.f32.mrf.mxu0
  %v2654 = vadd.f32 %v2581, %v2653
  %2655 = vmatmul.bf16.gmra.mxu0 %v2368
  %v2656 = vpop.f32.mrf.mxu0
  %v2657 = vadd.f32 %v2584, %v2656
  %v2658 = vpop.f32.mrf.mxu0
  %v2659 = vadd.f32 %v2586, %v2658
  %2660 = vmatmul.bf16.gmra.mxu0 %v2372
  %v2661 = vpop.f32.mrf.mxu0
  %v2662 = vadd.f32 %v2589, %v2661
  %v2663 = vpop.f32.mrf.mxu0
  %v2664 = vadd.f32 %v2591, %v2663
  %2665 = vmatmul.bf16.gmra.mxu0 %v2376
  %v2666 = vpop.f32.mrf.mxu0
  %v2667 = vadd.f32 %v2594, %v2666
  %v2668 = vpop.f32.mrf.mxu0
  %v2669 = vadd.f32 %v2596, %v2668
  %2670 = vmatmul.bf16.gmra.mxu0 %v2380
  %v2671 = vpop.f32.mrf.mxu0
  %v2672 = vadd.f32 %v2599, %v2671
  %v2673 = vpop.f32.mrf.mxu0
  %v2674 = vadd.f32 %v2601, %v2673
  %2675 = vmatmul.bf16.gmra.mxu0 %v2384
  %v2676 = vpop.f32.mrf.mxu0
  %v2677 = vadd.f32 %v2604, %v2676
  %v2678 = vpop.f32.mrf.mxu0
  %v2679 = vadd.f32 %v2606, %v2678
  %2680 = vmatmul.bf16.gmra.mxu0 %v2388
  %v2681 = vpop.f32.mrf.mxu0
  %v2682 = vadd.f32 %v2609, %v2681
  %v2683 = vpop.f32.mrf.mxu0
  %v2684 = vadd.f32 %v2611, %v2683
  %2685 = vmatmul.bf16.gmra.mxu0 %v2392
  %v2686 = vpop.f32.mrf.mxu0
  %v2687 = vadd.f32 %v2614, %v2686
  %v2688 = vpop.f32.mrf.mxu0
  %v2689 = vadd.f32 %v2616, %v2688
  %2690 = vmatmul.bf16.gmra.mxu0 %v2396
  %v2691 = vpop.f32.mrf.mxu0
  %v2692 = vadd.f32 %v2619, %v2691
  %v2693 = vpop.f32.mrf.mxu0
  %2694 = vdwg.mxu0
  %2695 = vmatpush.bf16.msra.mxu0 %v608
  %2696 = vmatpush.bf16.msra.mxu0 %v533
  %2697 = vmatpush.bf16.msra.mxu0 %v532
  %2698 = vmatpush.bf16.msra.mxu0 %v531
  %2699 = vmatpush.bf16.msra.mxu0 %v530
  %2700 = vmatpush.bf16.msra.mxu0 %v529
  %2701 = vmatpush.bf16.msra.mxu0 %v528
  %2702 = vmatpush.bf16.msra.mxu0 %v527
  %2703 = vmatmul.bf16.gmra.mxu0 %v2438
  %v2704 = vpop.f32.mrf.mxu0
  %v2705 = vadd.f32 %v2632, %v2704
  %v2706 = vpop.f32.mrf.mxu0
  %v2707 = vadd.f32 %v2634, %v2706
  %2708 = vmatmul.bf16.gmra.mxu0 %v2441
  %v2709 = vpop.f32.mrf.mxu0
  %v2710 = vadd.f32 %v2637, %v2709
  %v2711 = vpop.f32.mrf.mxu0
  %v2712 = vadd.f32 %v2639, %v2711
  %2713 = vmatmul.bf16.gmra.mxu0 %v2444
  %v2714 = vpop.f32.mrf.mxu0
  %v2715 = vadd.f32 %v2642, %v2714
  %v2716 = vpop.f32.mrf.mxu0
  %v2717 = vadd.f32 %v2644, %v2716
  %2718 = vmatmul.bf16.gmra.mxu0 %v2447
  %v2719 = vpop.f32.mrf.mxu0
  %v2720 = vadd.f32 %v2647, %v2719
  %v2721 = vpop.f32.mrf.mxu0
  %v2722 = vadd.f32 %v2649, %v2721
  %2723 = vmatmul.bf16.gmra.mxu0 %v2450
  %v2724 = vpop.f32.mrf.mxu0
  %v2725 = vadd.f32 %v2652, %v2724
  %v2726 = vpop.f32.mrf.mxu0
  %v2727 = vadd.f32 %v2654, %v2726
  %2728 = vmatmul.bf16.gmra.mxu0 %v2453
  %v2729 = vpop.f32.mrf.mxu0
  %v2730 = vadd.f32 %v2657, %v2729
  %v2731 = vpop.f32.mrf.mxu0
  %v2732 = vadd.f32 %v2659, %v2731
  %2733 = vmatmul.bf16.gmra.mxu0 %v2456
  %v2734 = vpop.f32.mrf.mxu0
  %v2735 = vadd.f32 %v2662, %v2734
  %v2736 = vpop.f32.mrf.mxu0
  %v2737 = vadd.f32 %v2664, %v2736
  %2738 = vmatmul.bf16.gmra.mxu0 %v2459
  %v2739 = vpop.f32.mrf.mxu0
  %v2740 = vadd.f32 %v2667, %v2739
  %v2741 = vpop.f32.mrf.mxu0
  %v2742 = vadd.f32 %v2669, %v2741
  %2743 = vmatmul.bf16.gmra.mxu0 %v2462
  %v2744 = vpop.f32.mrf.mxu0
  %v2745 = vadd.f32 %v2672, %v2744
  %v2746 = vpop.f32.mrf.mxu0
  %v2747 = vadd.f32 %v2674, %v2746
  %2748 = vmatmul.bf16.gmra.mxu0 %v2465
  %v2749 = vpop.f32.mrf.mxu0
  %v2750 = vadd.f32 %v2677, %v2749
  %v2751 = vpop.f32.mrf.mxu0
  %v2752 = vadd.f32 %v2679, %v2751
  %2753 = vmatmul.bf16.gmra.mxu0 %v2468
  %v2754 = vpop.f32.mrf.mxu0
  %v2755 = vadd.f32 %v2682, %v2754
  %v2756 = vpop.f32.mrf.mxu0
  %v2757 = vadd.f32 %v2684, %v2756
  %2758 = vmatmul.bf16.gmra.mxu0 %v2471
  %v2759 = vpop.f32.mrf.mxu0
  %v2760 = vadd.f32 %v2687, %v2759
  %v2761 = vpop.f32.mrf.mxu0
  %v2762 = vadd.f32 %v2689, %v2761
  %2763 = vmatmul.bf16.gmra.mxu0 %v2474
  %v2764 = vpop.f32.mrf.mxu0
  %v2765 = vadd.f32 %v2692, %v2764
  %v2766 = vpop.f32.mrf.mxu0
  %2767 = vdwg.mxu0
  %v2768 = vmax.f32 %v839, %v1461
  %v2769 = vmax.f32 %v841, %v1463
  %v2770 = vmax.f32 %v844, %v1466
  %v2771 = vmax.f32 %v846, %v1468
  %v2772 = vmax.f32 %v849, %v1471
  %v2773 = vmax.f32 %v851, %v1473
  %v2774 = vmax.f32 %v854, %v1476
  %v2775 = vmax.f32 %v856, %v1478
  %v2776 = vmax.f32 %v859, %v1481
  %v2777 = vmax.f32 %v861, %v1483
  %v2778 = vmax.f32 %v864, %v1486
  %v2779 = vmax.f32 %v866, %v1488
  %v2780 = vmax.f32 %v869, %v1491
  %v2781 = vmax.f32 %v871, %v1493
  %v2782 = vmax.f32 %v874, %v1496
  %v2783 = vmax.f32 %v876, %v1498
  %v2784 = vmax.f32 %v879, %v1501
  %v2785 = vmax.f32 %v881, %v1503
  %v2786 = vmax.f32 %v884, %v1506
  %v2787 = vmax.f32 %v886, %v1508
  %v2788 = vmax.f32 %v889, %v1511
  %v2789 = vmax.f32 %v891, %v1513
  %v2790 = vmax.f32 %v894, %v1516
  %v2791 = vmax.f32 %v896, %v1518
  %v2792 = vmax.f32 %v899, %v1521
  %v2793 = vmax.f32 %v2083, %v2705
  %v2794 = vmax.f32 %v2085, %v2707
  %v2795 = vmax.f32 %v2088, %v2710
  %v2796 = vmax.f32 %v2090, %v2712
  %v2797 = vmax.f32 %v2093, %v2715
  %v2798 = vmax.f32 %v2095, %v2717
  %v2799 = vmax.f32 %v2098, %v2720
  %v2800 = vmax.f32 %v2100, %v2722
  %v2801 = vmax.f32 %v2103, %v2725
  %v2802 = vmax.f32 %v2105, %v2727
  %v2803 = vmax.f32 %v2108, %v2730
  %v2804 = vmax.f32 %v2110, %v2732
  %v2805 = vmax.f32 %v2113, %v2735
  %v2806 = vmax.f32 %v2115, %v2737
  %v2807 = vmax.f32 %v2118, %v2740
  %v2808 = vmax.f32 %v2120, %v2742
  %v2809 = vmax.f32 %v2123, %v2745
  %v2810 = vmax.f32 %v2125, %v2747
  %v2811 = vmax.f32 %v2128, %v2750
  %v2812 = vmax.f32 %v2130, %v2752
  %v2813 = vmax.f32 %v2133, %v2755
  %v2814 = vmax.f32 %v2135, %v2757
  %v2815 = vmax.f32 %v2138, %v2760
  %v2816 = vmax.f32 %v2140, %v2762
  %v2817 = vmax.f32 %v2143, %v2765
  %v2818 = vmax.f32 %v2768, %v2793
  %v2819 = vmax.f32 %v2769, %v2794
  %v2820 = vmax.f32 %v2770, %v2795
  %v2821 = vmax.f32 %v2771, %v2796
  %v2822 = vmax.f32 %v2772, %v2797
  %v2823 = vmax.f32 %v2773, %v2798
  %v2824 = vmax.f32 %v2774, %v2799
  %v2825 = vmax.f32 %v2775, %v2800
  %v2826 = vmax.f32 %v2776, %v2801
  %v2827 = vmax.f32 %v2777, %v2802
  %v2828 = vmax.f32 %v2778, %v2803
  %v2829 = vmax.f32 %v2779, %v2804
  %v2830 = vmax.f32 %v2780, %v2805
  %v2831 = vmax.f32 %v2781, %v2806
  %v2832 = vmax.f32 %v2782, %v2807
  %v2833 = vmax.f32 %v2783, %v2808
  %v2834 = vmax.f32 %v2784, %v2809
  %v2835 = vmax.f32 %v2785, %v2810
  %v2836 = vmax.f32 %v2786, %v2811
  %v2837 = vmax.f32 %v2787, %v2812
  %v2838 = vmax.f32 %v2788, %v2813
  %v2839 = vmax.f32 %v2789, %v2814
  %v2840 = vmax.f32 %v2790, %v2815
  %v2841 = vmax.f32 %v2791, %v2816
  %v2842 = vmax.f32 %v2792, %v2817
  %v2843 = vld [vmem:[%s5] sm:$0x1]
  %v2845 = vperm.slane %v2843, 0
  %v2847 = vadd.f32 %v2818, %v2845
  %v2848 = vadd.f32 %v2819, %v2845
  %v2849 = vadd.f32 %v2820, %v2845
  %v2850 = vadd.f32 %v2821, %v2845
  %v2851 = vadd.f32 %v2822, %v2845
  %v2852 = vadd.f32 %v2823, %v2845
  %v2853 = vadd.f32 %v2824, %v2845
  %v2854 = vadd.f32 %v2825, %v2845
  %v2855 = vadd.f32 %v2826, %v2845
  %v2856 = vadd.f32 %v2827, %v2845
  %v2857 = vadd.f32 %v2828, %v2845
  %v2858 = vadd.f32 %v2829, %v2845
  %v2859 = vadd.f32 %v2830, %v2845
  %v2860 = vadd.f32 %v2831, %v2845
  %v2861 = vadd.f32 %v2832, %v2845
  %v2862 = vadd.f32 %v2833, %v2845
  %v2863 = vadd.f32 %v2834, %v2845
  %v2864 = vadd.f32 %v2835, %v2845
  %v2865 = vadd.f32 %v2836, %v2845
  %v2866 = vadd.f32 %v2837, %v2845
  %v2867 = vadd.f32 %v2838, %v2845
  %v2868 = vadd.f32 %v2839, %v2845
  %v2869 = vadd.f32 %v2840, %v2845
  %v2870 = vadd.f32 %v2841, %v2845
  %v2871 = vadd.f32 %v2842, %v2845
  %v2872 = vmax.f32 %v2847, 0.0
  %v2873 = vmax.f32 %v2848, 0.0
  %v2874 = vmax.f32 %v2849, 0.0
  %v2875 = vmax.f32 %v2850, 0.0
  %v2876 = vmax.f32 %v2851, 0.0
  %v2877 = vmax.f32 %v2852, 0.0
  %v2878 = vmax.f32 %v2853, 0.0
  %v2879 = vmax.f32 %v2854, 0.0
  %v2880 = vmax.f32 %v2855, 0.0
  %v2881 = vmax.f32 %v2856, 0.0
  %v2882 = vmax.f32 %v2857, 0.0
  %v2883 = vmax.f32 %v2858, 0.0
  %v2884 = vmax.f32 %v2859, 0.0
  %v2885 = vmax.f32 %v2860, 0.0
  %v2886 = vmax.f32 %v2861, 0.0
  %v2887 = vmax.f32 %v2862, 0.0
  %v2888 = vmax.f32 %v2863, 0.0
  %v2889 = vmax.f32 %v2864, 0.0
  %v2890 = vmax.f32 %v2865, 0.0
  %v2891 = vmax.f32 %v2866, 0.0
  %v2892 = vmax.f32 %v2867, 0.0
  %v2893 = vmax.f32 %v2868, 0.0
  %v2894 = vmax.f32 %v2869, 0.0
  %v2895 = vmax.f32 %v2870, 0.0
  %v2896 = vmax.f32 %v2871, 0.0
  %v2897 = vpack.c.bf16 %v2872, %v2872
  %v2898 = vpack.c.bf16 %v2873, %v2873
  %v2899 = vpack.c.bf16 %v2874, %v2874
  %v2900 = vpack.c.bf16 %v2875, %v2875
  %v2901 = vpack.c.bf16 %v2876, %v2876
  %v2902 = vpack.c.bf16 %v2877, %v2877
  %v2903 = vpack.c.bf16 %v2878, %v2878
  %v2904 = vpack.c.bf16 %v2879, %v2879
  %v2905 = vpack.c.bf16 %v2880, %v2880
  %v2906 = vpack.c.bf16 %v2881, %v2881
  %v2907 = vpack.c.bf16 %v2882, %v2882
  %v2908 = vpack.c.bf16 %v2883, %v2883
  %v2909 = vpack.c.bf16 %v2884, %v2884
  %v2910 = vpack.c.bf16 %v2885, %v2885
  %v2911 = vpack.c.bf16 %v2886, %v2886
  %v2912 = vpack.c.bf16 %v2887, %v2887
  %v2913 = vpack.c.bf16 %v2888, %v2888
  %v2914 = vpack.c.bf16 %v2889, %v2889
  %v2915 = vpack.c.bf16 %v2890, %v2890
  %v2916 = vpack.c.bf16 %v2891, %v2891
  %v2917 = vpack.c.bf16 %v2892, %v2892
  %v2918 = vpack.c.bf16 %v2893, %v2893
  %v2919 = vpack.c.bf16 %v2894, %v2894
  %v2920 = vpack.c.bf16 %v2895, %v2895
  %v2921 = vpack.c.bf16 %v2896, %v2896
  %vm2922 = vcmask 240640
  %2923 = vst.msk [vmem:[%s6] sm:$0xf] %vm2922, %v2897
  %2924 = vst.msk [vmem:[%s6 + $0x4] sm:$0xf] %vm2922, %v2898
  %2925 = vst.msk [vmem:[%s6 + $0x8] sm:$0xf] %vm2922, %v2899
  %2926 = vst.msk [vmem:[%s6 + $0xc] sm:$0xf] %vm2922, %v2900
  %2927 = vst.msk [vmem:[%s6 + $0x10] sm:$0xf] %vm2922, %v2901
  %2928 = vst.msk [vmem:[%s6 + $0x14] sm:$0xf] %vm2922, %v2902
  %2929 = vst.msk [vmem:[%s6 + $0x18] sm:$0xf] %vm2922, %v2903
  %2930 = vst.msk [vmem:[%s6 + $0x1c] sm:$0xf] %vm2922, %v2904
  %2931 = vst.msk [vmem:[%s6 + $0x20] sm:$0xf] %vm2922, %v2905
  %2932 = vst.msk [vmem:[%s6 + $0x24] sm:$0xf] %vm2922, %v2906
  %2933 = vst.msk [vmem:[%s6 + $0x28] sm:$0xf] %vm2922, %v2907
  %2934 = vst.msk [vmem:[%s6 + $0x2c] sm:$0xf] %vm2922, %v2908
  %2935 = vst.msk [vmem:[%s6 + $0x30] sm:$0xf] %vm2922, %v2909
  %2936 = vst.msk [vmem:[%s6 + $0x34] sm:$0xf] %vm2922, %v2910
  %2937 = vst.msk [vmem:[%s6 + $0x38] sm:$0xf] %vm2922, %v2911
  %2938 = vst.msk [vmem:[%s6 + $0x3c] sm:$0xf] %vm2922, %v2912
  %2939 = vst.msk [vmem:[%s6 + $0x40] sm:$0xf] %vm2922, %v2913
  %2940 = vst.msk [vmem:[%s6 + $0x44] sm:$0xf] %vm2922, %v2914
  %2941 = vst.msk [vmem:[%s6 + $0x48] sm:$0xf] %vm2922, %v2915
  %2942 = vst.msk [vmem:[%s6 + $0x4c] sm:$0xf] %vm2922, %v2916
  %2943 = vst.msk [vmem:[%s6 + $0x50] sm:$0xf] %vm2922, %v2917
  %2944 = vst.msk [vmem:[%s6 + $0x54] sm:$0xf] %vm2922, %v2918
  %2945 = vst.msk [vmem:[%s6 + $0x58] sm:$0xf] %vm2922, %v2919
  %2946 = vst.msk [vmem:[%s6 + $0x5c] sm:$0xf] %vm2922, %v2920
  %2947 = vst.msk [vmem:[%s6 + $0x60] sm:$0xf] %vm2922, %v2921
  // Predicated region
  $region26: #{mnist_cnn_forward.5} parent=0 // pred_check
    _
  $region27: #{mnist_cnn_forward.5} parent=0 // pred_check_branch
    %2949 = sbr.rel (0) target = $region29
  $region28: #{mnist_cnn_forward.5} parent=0 // pred_region
    _
  $region29: #{mnist_cnn_forward.5} parent=0 // pred_fallthru
    _
  // Predicated region
  $region30: #{mnist_cnn_forward.5} parent=0 // pred_check
    _
  $region31: #{mnist_cnn_forward.5} parent=0 // pred_check_branch
    %2951 = sbr.rel (0) target = $region33
  $region32: #{mnist_cnn_forward.5} parent=0 // pred_region
    _
  $region33: #{mnist_cnn_forward.5} parent=0 // pred_fallthru
    _

// kernel: mnist_cnn_forward.7
$region0: #{mnist_cnn_forward.7}
  #allocation0 [shape = 'u32[]', space=smem, size = 0x4, offset = 0x4, fixed_abs, tag = 'smem constant byte address 0x4 - core index']
  #allocation1 [shape = 'u32[72,128]{1,0:T(1,128)}', space=vmem, size = 0x9000, scoped, tag = 'internal scratch']
  %s0 = inlined_call_operand.vmem [shape: bf16[2,512], index: 0, kind: input, shape index: {}]
  %s1 = inlined_call_operand.vmem [shape: bf16[512,10], index: 1, kind: input, shape index: {}]
  %s2 = inlined_call_operand.vmem [shape: f32[1,10], index: 2, kind: input, shape index: {}]
  %s3 = inlined_call_operand.hbm [shape: f32[2,10], index: 3, kind: output, shape index: {}]
  %s4 = sld [smem:[#allocation0]]
  $region22: #{mnist_cnn_forward.7} parent=0
    _
  %s6 = ssub.s32 1, %s4
  %s7 = scalar_select 0, %s6, %s4
  $region1: #{mnist_cnn_forward.7} parent=0
    #allocation2 [shape = 'u8[1024]{0}', space=vmem, size = 0x400, scoped, tag = 'output window, operand 0, single buffered']
    #allocation3 [shape = 's32[1]{0}', space=sflag, size = 0x4, scoped, tag = 'scoped memory for mnist_cnn_forward.7']
    %8 = vsyncpa [#allocation3], 0
    // Predicated region
    $region2: #{mnist_cnn_forward.7} parent=1 // pred_check
      _
    $region3: #{mnist_cnn_forward.7} parent=1 // pred_check_branch
      %10 = sbr.rel (0) target = $region5
    $region4: #{mnist_cnn_forward.7} parent=1 // pred_region
      _
    $region5: #{mnist_cnn_forward.7} parent=1 // pred_fallthru
      _
    // Predicated region
    $region6: #{mnist_cnn_forward.7} parent=1 // pred_check
      _
    $region7: #{mnist_cnn_forward.7} parent=1 // pred_check_branch
      %12 = sbr.rel (0) target = $region9
    $region8: #{mnist_cnn_forward.7} parent=1 // pred_region
      _
    $region9: #{mnist_cnn_forward.7} parent=1 // pred_fallthru
      _
    // Predicated region
    $region10: #{mnist_cnn_forward.7} parent=1 // pred_check
      _
    $region11: #{mnist_cnn_forward.7} parent=1 // pred_check_branch
      %14 = sbr.rel (0) target = $region13
    $region12: #{mnist_cnn_forward.7} parent=1 // pred_region
      _
    $region13: #{mnist_cnn_forward.7} parent=1 // pred_fallthru
      _
    %v15 = vld [vmem:[%s0] sm:$0xf]
    %v16 = vld [vmem:[%s1] sm:$0xf]
    %v17 = vld [vmem:[%s1 + $0x4] sm:$0xf]
    %v18 = vld [vmem:[%s1 + $0x8] sm:$0xf]
    %v19 = vld [vmem:[%s1 + $0xc] sm:$0xf]
    %v20 = vld [vmem:[%s1 + $0x10] sm:$0xf]
    %v21 = vld [vmem:[%s1 + $0x14] sm:$0xf]
    %v22 = vld [vmem:[%s1 + $0x18] sm:$0xf]
    %v23 = vld [vmem:[%s1 + $0x1c] sm:$0xf]
    %v24 = vld [vmem:[%s1 + $0x20] sm:$0xf]
    %v25 = vld [vmem:[%s1 + $0x24] sm:$0xf]
    %v26 = vld [vmem:[%s1 + $0x28] sm:$0xf]
    %v27 = vld [vmem:[%s1 + $0x2c] sm:$0xf]
    %v28 = vld [vmem:[%s1 + $0x30] sm:$0xf]
    %v29 = vld [vmem:[%s1 + $0x34] sm:$0xf]
    %v30 = vld [vmem:[%s1 + $0x38] sm:$0xf]
    %v31 = vld [vmem:[%s1 + $0x3c] sm:$0xf]
    %v32 = vld [vmem:[%s1 + $0x40] sm:$0xf]
    %v33 = vld [vmem:[%s1 + $0x44] sm:$0xf]
    %v34 = vld [vmem:[%s1 + $0x48] sm:$0xf]
    %v35 = vld [vmem:[%s1 + $0x4c] sm:$0xf]
    %v36 = vld [vmem:[%s1 + $0x50] sm:$0xf]
    %v37 = vld [vmem:[%s1 + $0x54] sm:$0xf]
    %v38 = vld [vmem:[%s1 + $0x58] sm:$0xf]
    %v39 = vld [vmem:[%s1 + $0x5c] sm:$0xf]
    %v40 = vld [vmem:[%s1 + $0x60] sm:$0xf]
    %v41 = vld [vmem:[%s1 + $0x64] sm:$0xf]
    %v42 = vld [vmem:[%s1 + $0x68] sm:$0xf]
    %v43 = vld [vmem:[%s1 + $0x6c] sm:$0xf]
    %v44 = vld [vmem:[%s1 + $0x70] sm:$0xf]
    %v45 = vld [vmem:[%s1 + $0x74] sm:$0xf]
    %v46 = vld [vmem:[%s1 + $0x78] sm:$0xf]
    %v47 = vld [vmem:[%s1 + $0x7c] sm:$0xf]
    %v48 = vld [vmem:[%s1 + $0x80] sm:$0xf]
    %v49 = vld [vmem:[%s1 + $0x84] sm:$0xf]
    %v50 = vld [vmem:[%s1 + $0x88] sm:$0xf]
    %v51 = vld [vmem:[%s1 + $0x8c] sm:$0xf]
    %v52 = vld [vmem:[%s1 + $0x90] sm:$0xf]
    %v53 = vld [vmem:[%s1 + $0x94] sm:$0xf]
    %v54 = vld [vmem:[%s1 + $0x98] sm:$0xf]
    %v55 = vld [vmem:[%s1 + $0x9c] sm:$0xf]
    %v56 = vld [vmem:[%s1 + $0xa0] sm:$0xf]
    %v57 = vld [vmem:[%s1 + $0xa4] sm:$0xf]
    %v58 = vld [vmem:[%s1 + $0xa8] sm:$0xf]
    %v59 = vld [vmem:[%s1 + $0xac] sm:$0xf]
    %v60 = vld [vmem:[%s1 + $0xb0] sm:$0xf]
    %v61 = vld [vmem:[%s1 + $0xb4] sm:$0xf]
    %v62 = vld [vmem:[%s1 + $0xb8] sm:$0xf]
    %v63 = vld [vmem:[%s1 + $0xbc] sm:$0xf]
    %v64 = vld [vmem:[%s1 + $0xc0] sm:$0xf]
    %v65 = vld [vmem:[%s1 + $0xc4] sm:$0xf]
    %v66 = vld [vmem:[%s1 + $0xc8] sm:$0xf]
    %v67 = vld [vmem:[%s1 + $0xcc] sm:$0xf]
    %v68 = vld [vmem:[%s1 + $0xd0] sm:$0xf]
    %v69 = vld [vmem:[%s1 + $0xd4] sm:$0xf]
    %v70 = vld [vmem:[%s1 + $0xd8] sm:$0xf]
    %v71 = vld [vmem:[%s1 + $0xdc] sm:$0xf]
    %v72 = vld [vmem:[%s1 + $0xe0] sm:$0xf]
    %v73 = vld [vmem:[%s1 + $0xe4] sm:$0xf]
    %v74 = vld [vmem:[%s1 + $0xe8] sm:$0xf]
    %v75 = vld [vmem:[%s1 + $0xec] sm:$0xf]
    %v76 = vld [vmem:[%s1 + $0xf0] sm:$0xf]
    %v77 = vld [vmem:[%s1 + $0xf4] sm:$0xf]
    %v78 = vld [vmem:[%s1 + $0xf8] sm:$0xf]
    %v79 = vld [vmem:[%s1 + $0xfc] sm:$0xf]
    %v80 = vld [vmem:[%s2] sm:$0x1]
    %v82 = vperm.slane %v80, 0
    %85 = vst [vmem:[#allocation1] ss:$9 sm:$0xff] %v15
    %v86 = vld [vmem:[#allocation1] sm:$0xff]
    %v87 = vld [vmem:[#allocation1 + $0x9] sm:$0xff]
    %v88 = vld [vmem:[#allocation1 + $0x12] sm:$0xff]
    %v89 = vld [vmem:[#allocation1 + $0x1b] sm:$0xff]
    %v158 = vunpack.c.l.b16 %v16
    %v159 = vunpack.c.l.b16 %v17
    %v160 = vunpack.c.l.b16 %v18
    %v161 = vunpack.c.l.b16 %v19
    %v162 = vunpack.c.l.b16 %v20
    %v163 = vunpack.c.l.b16 %v21
    %v164 = vunpack.c.l.b16 %v22
    %v165 = vunpack.c.l.b16 %v23
    %v166 = vunpack.c.l.b16 %v24
    %v167 = vunpack.c.l.b16 %v25
    %v168 = vunpack.c.l.b16 %v26
    %v169 = vunpack.c.l.b16 %v27
    %v170 = vunpack.c.l.b16 %v28
    %v171 = vunpack.c.l.b16 %v29
    %v172 = vunpack.c.l.b16 %v30
    %v173 = vunpack.c.l.b16 %v31
    %v174 = vunpack.c.l.b16 %v32
    %v175 = vunpack.c.l.b16 %v33
    %v176 = vunpack.c.l.b16 %v34
    %v177 = vunpack.c.l.b16 %v35
    %v178 = vunpack.c.l.b16 %v36
    %v179 = vunpack.c.l.b16 %v37
    %v180 = vunpack.c.l.b16 %v38
    %v181 = vunpack.c.l.b16 %v39
    %v182 = vunpack.c.l.b16 %v40
    %v183 = vunpack.c.l.b16 %v41
    %v184 = vunpack.c.l.b16 %v42
    %v185 = vunpack.c.l.b16 %v43
    %v186 = vunpack.c.l.b16 %v44
    %v187 = vunpack.c.l.b16 %v45
    %v188 = vunpack.c.l.b16 %v46
    %v189 = vunpack.c.l.b16 %v47
    %v190 = vunpack.c.l.b16 %v48
    %v191 = vunpack.c.l.b16 %v49
    %v192 = vunpack.c.l.b16 %v50
    %v193 = vunpack.c.l.b16 %v51
    %v194 = vunpack.c.l.b16 %v52
    %v195 = vunpack.c.l.b16 %v53
    %v196 = vunpack.c.l.b16 %v54
    %v197 = vunpack.c.l.b16 %v55
    %v198 = vunpack.c.l.b16 %v56
    %v199 = vunpack.c.l.b16 %v57
    %v200 = vunpack.c.l.b16 %v58
    %v201 = vunpack.c.l.b16 %v59
    %v202 = vunpack.c.l.b16 %v60
    %v203 = vunpack.c.l.b16 %v61
    %v204 = vunpack.c.l.b16 %v62
    %v205 = vunpack.c.l.b16 %v63
    %v206 = vunpack.c.l.b16 %v64
    %v207 = vunpack.c.l.b16 %v65
    %v208 = vunpack.c.l.b16 %v66
    %v209 = vunpack.c.l.b16 %v67
    %v210 = vunpack.c.l.b16 %v68
    %v211 = vunpack.c.l.b16 %v69
    %v212 = vunpack.c.l.b16 %v70
    %v213 = vunpack.c.l.b16 %v71
    %v214 = vunpack.c.l.b16 %v72
    %v215 = vunpack.c.l.b16 %v73
    %v216 = vunpack.c.l.b16 %v74
    %v217 = vunpack.c.l.b16 %v75
    %v218 = vunpack.c.l.b16 %v76
    %v219 = vunpack.c.l.b16 %v77
    %v220 = vunpack.c.l.b16 %v78
    %v221 = vunpack.c.l.b16 %v79
    %v222 = vpack.c.b16 %v159, %v158
    %v223 = vpack.c.b16 %v161, %v160
    %v224 = vpack.c.b16 %v163, %v162
    %v225 = vpack.c.b16 %v165, %v164
    %v226 = vpack.c.b16 %v167, %v166
    %v227 = vpack.c.b16 %v169, %v168
    %v228 = vpack.c.b16 %v171, %v170
    %v229 = vpack.c.b16 %v173, %v172
    %v230 = vpack.c.b16 %v175, %v174
    %v231 = vpack.c.b16 %v177, %v176
    %v232 = vpack.c.b16 %v179, %v178
    %v233 = vpack.c.b16 %v181, %v180
    %v234 = vpack.c.b16 %v183, %v182
    %v235 = vpack.c.b16 %v185, %v184
    %v236 = vpack.c.b16 %v187, %v186
    %v237 = vpack.c.b16 %v189, %v188
    %v238 = vpack.c.b16 %v191, %v190
    %v239 = vpack.c.b16 %v193, %v192
    %v240 = vpack.c.b16 %v195, %v194
    %v241 = vpack.c.b16 %v197, %v196
    %v242 = vpack.c.b16 %v199, %v198
    %v243 = vpack.c.b16 %v201, %v200
    %v244 = vpack.c.b16 %v203, %v202
    %v245 = vpack.c.b16 %v205, %v204
    %v246 = vpack.c.b16 %v207, %v206
    %v247 = vpack.c.b16 %v209, %v208
    %v248 = vpack.c.b16 %v211, %v210
    %v249 = vpack.c.b16 %v213, %v212
    %v250 = vpack.c.b16 %v215, %v214
    %v251 = vpack.c.b16 %v217, %v216
    %v252 = vpack.c.b16 %v219, %v218
    %v253 = vpack.c.b16 %v221, %v220
    %286 = vmatpush.bf16.msra.mxu0 %v229
    %287 = vmatpush.bf16.msra.mxu0 %v228
    %288 = vmatpush.bf16.msra.mxu0 %v227
    %289 = vmatpush.bf16.msra.mxu0 %v226
    %290 = vmatpush.bf16.msra.mxu0 %v225
    %291 = vmatpush.bf16.msra.mxu0 %v224
    %292 = vmatpush.bf16.msra.mxu0 %v223
    %293 = vmatpush.bf16.msra.mxu0 %v222
    %294 = vmatmul.bf16.gmra.mxu0 %v86
    %v295 = vpop.f32.mrf.mxu0
    %v296 = vadd.f32 %v82, %v295
    %v297 = vpop.f32.mrf.mxu0
    %298 = vdwg.mxu0
    %299 = vmatpush.bf16.msra.mxu0 %v237
    %300 = vmatpush.bf16.msra.mxu0 %v236
    %301 = vmatpush.bf16.msra.mxu0 %v235
    %302 = vmatpush.bf16.msra.mxu0 %v234
    %303 = vmatpush.bf16.msra.mxu0 %v233
    %304 = vmatpush.bf16.msra.mxu0 %v232
    %305 = vmatpush.bf16.msra.mxu0 %v231
    %306 = vmatpush.bf16.msra.mxu0 %v230
    %307 = vmatmul.bf16.gmra.mxu0 %v87
    %v308 = vpop.f32.mrf.mxu0
    %v309 = vadd.f32 %v296, %v308
    %v310 = vpop.f32.mrf.mxu0
    %311 = vdwg.mxu0
    %312 = vmatpush.bf16.msra.mxu0 %v245
    %313 = vmatpush.bf16.msra.mxu0 %v244
    %314 = vmatpush.bf16.msra.mxu0 %v243
    %315 = vmatpush.bf16.msra.mxu0 %v242
    %316 = vmatpush.bf16.msra.mxu0 %v241
    %317 = vmatpush.bf16.msra.mxu0 %v240
    %318 = vmatpush.bf16.msra.mxu0 %v239
    %319 = vmatpush.bf16.msra.mxu0 %v238
    %320 = vmatmul.bf16.gmra.mxu0 %v88
    %v321 = vpop.f32.mrf.mxu0
    %v322 = vadd.f32 %v309, %v321
    %v323 = vpop.f32.mrf.mxu0
    %324 = vdwg.mxu0
    %325 = vmatpush.bf16.msra.mxu0 %v253
    %326 = vmatpush.bf16.msra.mxu0 %v252
    %327 = vmatpush.bf16.msra.mxu0 %v251
    %328 = vmatpush.bf16.msra.mxu0 %v250
    %329 = vmatpush.bf16.msra.mxu0 %v249
    %330 = vmatpush.bf16.msra.mxu0 %v248
    %331 = vmatpush.bf16.msra.mxu0 %v247
    %332 = vmatpush.bf16.msra.mxu0 %v246
    %333 = vmatmul.bf16.gmra.mxu0 %v89
    %v334 = vpop.f32.mrf.mxu0
    %v335 = vadd.f32 %v322, %v334
    %v336 = vpop.f32.mrf.mxu0
    %337 = vdwg.mxu0
    %vm338 = vcmask 74752
    %339 = vst.msk [vmem:[#allocation2] sm:$0x3] %vm338, %v335
    // Predicated region
    $region14: #{mnist_cnn_forward.7} parent=1 // pred_check
      _
    $region15: #{mnist_cnn_forward.7} parent=1 // pred_check_branch
      %341 = sbr.rel (0) target = $region17
    $region16: #{mnist_cnn_forward.7} parent=1 // pred_region
      %343 = vsyncadd [#allocation3], 0
      %s345 = sshll.u32 [#allocation2], 4
      %s346 = int_to_ptr.vmem [resolvable:$true] %s345
      %s347 = sshll.u32 %s3, 4
      %s348 = int_to_ptr.hbm [resolvable:$true] %s347
      %350 = dma.vmem_to_hbm [thread:$0]  %s346, 32, %s348, [#allocation3]
    $region17: #{mnist_cnn_forward.7} parent=1 // pred_fallthru
      _
    // Predicated region
    $region18: #{mnist_cnn_forward.7} parent=1 // pred_check
      _
    $region19: #{mnist_cnn_forward.7} parent=1 // pred_check_branch
      %352 = sbr.rel (0) target = $region21
    $region20: #{mnist_cnn_forward.7} parent=1 // pred_region
      %354 = dma.done [#allocation3], 32
    $region21: #{mnist_cnn_forward.7} parent=1 // pred_fallthru
      _
    %355 = vsyncpa [#allocation3], 1

</llo_original>
